<compile_context>
chip_gen: v7x
topology: tpu7x:2x2x1
jax: 0.10.0
libtpu: 0.0.40
codegen_flags: <defaults>
</compile_context>

<pallas_src>
import functools
import numpy as np
import jax
import jax.numpy as jnp
from jax import lax
from jax.experimental import pallas as pl
from jax.experimental.pallas import tpu as pltpu


def _relu6(v):
    return jnp.minimum(jnp.maximum(v, 0.0), 6.0)


def _mutilscal_mhsa_kernel(x_ref, w01_ref, b01_ref, dww_ref, dwb_ref, wmask_ref,
                           wb3_ref, bb3_ref, w3_ref, b3_ref, pmt_ref, wkv_ref,
                           mblk_ref, wfc1_ref, bfc1_ref, wfc2_ref, bfc2_ref,
                           out_ref, pad_ref,
                           *, C, Cm, W, HW, num_heads, P2, dmax, dilations):
    f32 = jnp.float32
    bf16 = jnp.bfloat16

    x = x_ref[0]                                       # (C, HW) f32 channels-first
    xb = x.astype(bf16)

    # ---- MutilScal: conv0_1 (1x1, C->Cm) + folded BN + ReLU6 -------------------
    a1 = _relu6(jnp.dot(w01_ref[...], xb, preferred_element_type=f32)
                + b01_ref[...])                        # (Cm, HW) f32

    # ---- stage a1 into a flat H-padded buffer (Cm, (H + 2*dmax) * W) -----------
    # Halo rows implement the conv's zero padding along H.  Re-zeroing the halo
    # every grid step is 2 dense, 128-lane-aligned stores (a program_id==0-only
    # zero would be unsafe under megacore grid partitioning).
    halo = dmax * W
    zeros_halo = jnp.zeros((Cm, halo), f32)
    pad_ref[:, pl.ds(0, halo)] = zeros_halo
    pad_ref[:, pl.ds(halo + HW, halo)] = zeros_halo
    pad_ref[:, pl.ds(halo, HW)] = a1

    # ---- three dilated depthwise 3x3 branches (folded BN) + ReLU6 --------------
    # Compact per-tap weights (Cm scalars) + per-(branch, column) W-boundary
    # masks; H-boundary handled by the zero halo.  The center column (kj==1)
    # needs no mask.  These slice reads share the vex slots with vmatmul pushes
    # only after further fusion -- today they are serialized by data deps.
    a2_list = []
    for b, d in enumerate(dilations):
        acc = jnp.zeros((Cm, HW), f32)
        for ki in range(3):
            for kj in range(3):
                t = b * 9 + ki * 3 + kj
                start = halo + (ki - 1) * d * W + (kj - 1) * d
                tap = pad_ref[:, pl.ds(start, HW)] * dww_ref[t]
                if kj != 1:
                    tap = tap * wmask_ref[b * 3 + kj]
                acc = acc + tap
        a2_list.append(_relu6(acc + dwb_ref[b]))       # (Cm, HW) f32
    a2cat = jnp.concatenate(a2_list, axis=0).astype(bf16)        # (3*Cm, HW) bf16

    # ---- three 1x1 branch projections fused into one K=3*Cm matmul -------------
    a3 = _relu6(jnp.dot(wb3_ref[...], a2cat, preferred_element_type=f32)
                + bb3_ref[...])                        # (3C, HW) f32
    attn = a3[0:C] + a3[C:2 * C] + a3[2 * C:3 * C]     # (C, HW)

    # ---- conv3 (1x1) + folded BN + ReLU6, residual re-weighting ----------------
    attn = _relu6(jnp.dot(w3_ref[...], attn.astype(bf16),
                          preferred_element_type=f32) + b3_ref[...])
    attn = attn * x                                    # (C, HW) f32

    # ---- AdaptiveAvgPool2d(P) + kv 1x1 conv, head-replicated -------------------
    # pmt is the exact adaptive-pool matrix tiled num_heads times along its
    # columns, so pool_rep / kv already carry the per-head replication needed
    # for the block-diagonal attention (no in-kernel concat or transpose).
    pool_rep = jnp.dot(attn.astype(bf16), pmt_ref[...],
                       preferred_element_type=f32)      # (C, nh*P2) f32
    kv = jnp.dot(wkv_ref[...], pool_rep.astype(bf16),
                 preferred_element_type=f32)            # (2C, nh*P2) f32
    mblk = mblk_ref[...]                                # (C, nh*P2) bf16 0/1
    k_blk = kv[0:C].astype(bf16) * mblk                 # scale pre-folded into wkv
    v_blk = kv[C:2 * C].astype(bf16) * mblk

    # ---- fused multi-head attention, channels-first ----------------------------
    # dots[h*P2+p, s] = scale * sum_d k[h,p,d] * q[s,d]  (q comes straight from x)
    dots = lax.dot_general(k_blk, xb, (((0,), (0,)), ((), ())),
                           preferred_element_type=f32)  # (nh*P2, HW) f32
    p_blocks = []
    for h in range(num_heads):
        blk = dots[h * P2:(h + 1) * P2, :]              # (P2, HW) lane-dense
        m = jnp.max(blk, axis=0, keepdims=True)
        e = jnp.exp(blk - m)
        s = jnp.sum(e, axis=0, keepdims=True)
        p_blocks.append((e * pl.reciprocal(s, approx=True)).astype(bf16))
    p_all = jnp.concatenate(p_blocks, axis=0)           # (nh*P2, HW) bf16
    attn_msa = jnp.dot(v_blk, p_all, preferred_element_type=f32)   # (C, HW) f32
    # atten_drop / proj_drop: p = 0.0 (eval mode) -> identity.

    # ---- channel attention: avgpool -> fc1 -> ReLU6 -> fc2 -> sigmoid ----------
    # Pre-reduce x over HW (one XLU lane reduction), then two tiny MXU matvecs.
    xmean = jnp.sum(x, axis=1, keepdims=True) * (1.0 / HW)          # (C, 1)
    h1 = _relu6(jnp.dot(wfc1_ref[...], xmean, preferred_element_type=f32)
                + bfc1_ref[...])                                    # (Cm, 1)
    catt = jnp.dot(wfc2_ref[...], h1, preferred_element_type=f32) + bfc2_ref[...]
    catt = 1.0 / (1.0 + jnp.exp(-catt))                             # sigmoid, (C,1)

    out_ref[0] = (attn_msa + catt * x).astype(out_ref.dtype)


def _fold_bn(w, b, gamma, beta, mean, var, eps=1e-5):
    """Fold eval-mode BatchNorm into a conv.  w: (Cout, ...), b: (Cout,)."""
    s = gamma / jnp.sqrt(var + eps)
    w_f = w * s.reshape((-1,) + (1,) * (w.ndim - 1))
    b_f = ((b - mean) * s + beta)[:, None]
    return w_f, b_f


def _adaptive_pool_matrix(H, W, P):
    """Exact nn.AdaptiveAvgPool2d(P) as a (P*P, H*W) averaging matrix (numpy)."""
    M = np.zeros((P * P, H * W), dtype=np.float32)
    for oh in range(P):
        hs = (oh * H) // P
        he = -(-((oh + 1) * H) // P)
        for ow in range(P):
            ws = (ow * W) // P
            we = -(-((ow + 1) * W) // P)
            cnt = float((he - hs) * (we - ws))
            for hh in range(hs, he):
                for ww in range(ws, we):
                    M[oh * P + ow, hh * W + ww] = 1.0 / cnt
    return M


def init_params(key, C, Cm, n_branches=3):
    ks = iter(jax.random.split(key, 64))

    def conv(shape):
        return 0.1 * jax.random.normal(next(ks), shape, jnp.float32)

    def bn(c):
        gamma = jax.random.uniform(next(ks), (c,), jnp.float32, 0.5, 1.5)
        beta = 0.1 * jax.random.normal(next(ks), (c,), jnp.float32)
        mean = 0.1 * jax.random.normal(next(ks), (c,), jnp.float32)
        var = jax.random.uniform(next(ks), (c,), jnp.float32, 0.5, 1.5)
        return gamma, beta, mean, var

    # MutilScal
    w01, b01 = _fold_bn(conv((Cm, C)), conv((Cm,)), *bn(Cm))
    dw_w, dw_b, wb3_list, bb3_list = [], [], [], []
    for _ in range(n_branches):
        wdw_f, bdw_f = _fold_bn(conv((Cm, 3, 3)), conv((Cm,)), *bn(Cm))
        dw_w.append(wdw_f)
        dw_b.append(bdw_f)
        wf, bf = _fold_bn(conv((C, Cm)), conv((C,)), *bn(C))
        wb3_list.append(wf)
        bb3_list.append(bf)
    w3, b3 = _fold_bn(conv((C, C)), conv((C,)), *bn(C))

    # fused block-diagonal weight for the three 1x1 branch projections
    wb3blk = jnp.zeros((n_branches * C, n_branches * Cm), jnp.float32)
    for i, wf in enumerate(wb3_list):
        wb3blk = wb3blk.at[i * C:(i + 1) * C, i * Cm:(i + 1) * Cm].set(wf)
    bb3 = jnp.concatenate(bb3_list, axis=0)               # (3C, 1)

    # Mutilscal_MHSA extras: kv conv (bias-free) + channel-attention fc
    wkv = conv((2 * C, C))
    wfc1, bfc1 = conv((Cm, C)), conv((Cm,))[:, None]
    wfc2, bfc2 = conv((C, Cm)), conv((C,))[:, None]

    return dict(w01=w01, b01=b01,
                dw_w=jnp.stack(dw_w), dw_b=jnp.stack(dw_b),
                wb3blk=wb3blk, bb3=bb3, w3=w3, b3=b3,
                wkv=wkv, wfc1=wfc1, bfc1=bfc1, wfc2=wfc2, bfc2=bfc2)


def mutilscal_mhsa_forward(x_nchw, params, *, num_heads, dilations=(3, 5, 7),
                           pool_ratio=4, out_dtype=jnp.float32):
    N, C, H, W = x_nchw.shape
    HW = H * W
    P = pool_ratio
    P2 = P * P
    Cm = params["w01"].shape[0]
    dh = C // num_heads
    dmax = max(dilations) + 1                  # H-halo rows (> max dilation)
    scale = dh ** -0.5
    assert C % num_heads == 0
    assert max(dilations) < W

    # channels-first (native NCHW) flat-spatial view
    x_cf = x_nchw.reshape(N, C, HW).astype(jnp.float32)

    # exact AdaptiveAvgPool2d(P), tiled num_heads times along the output columns
    # so the pooled kv is already head-replicated (fuses the block-diag build).
    pmt_np = _adaptive_pool_matrix(H, W, P).T              # (HW, P2)
    pmt_rep = jnp.asarray(np.tile(pmt_np, (1, num_heads)), dtype=jnp.bfloat16)

    # compact depthwise weights (27, Cm, 1) + per-(branch, kj) W-boundary masks
    dww = jnp.transpose(params["dw_w"], (0, 2, 3, 1)).reshape(27, Cm)[:, :, None]
    w_idx = np.arange(HW) % W
    masks = []
    for d in dilations:
        for kj in range(3):
            sj = (kj - 1) * d
            masks.append(((w_idx + sj >= 0) & (w_idx + sj < W)).astype(np.float32))
    wmask = jnp.asarray(np.stack(masks, axis=0))           # (9, HW)

    # block-diagonal head mask shared by the K and V assembly
    mblk_np = np.zeros((C, num_heads * P2), np.float32)
    for h in range(num_heads):
        mblk_np[h * dh:(h + 1) * dh, h * P2:(h + 1) * P2] = 1.0
    mblk = jnp.asarray(mblk_np, dtype=jnp.bfloat16)

    # kv weight with the attention scale folded into the K half (free, exact in f32)
    wkv_s = jnp.concatenate([params["wkv"][0:C] * scale,
                             params["wkv"][C:2 * C]], axis=0).astype(jnp.bfloat16)

    weights = [
        params["w01"].astype(jnp.bfloat16), params["b01"],
        dww, params["dw_b"], wmask,
        params["wb3blk"].astype(jnp.bfloat16), params["bb3"],
        params["w3"].astype(jnp.bfloat16), params["b3"],
        pmt_rep, wkv_s, mblk,
        params["wfc1"], params["bfc1"], params["wfc2"], params["bfc2"],
    ]

    def full_spec(arr):
        return pl.BlockSpec(arr.shape, lambda n, _nd=arr.ndim: (0,) * _nd)

    kernel = functools.partial(
        _mutilscal_mhsa_kernel, C=C, Cm=Cm, W=W, HW=HW,
        num_heads=num_heads, P2=P2, dmax=dmax, dilations=tuple(dilations))

    # cost estimate (updated for the restructured attention / channel gate)
    nhP2 = num_heads * P2
    mm_flops = (2 * Cm * C * HW                 # conv0_1
                + 2 * 27 * Cm * HW              # depthwise taps (VPU FMAs)
                + 2 * (3 * C) * (3 * Cm) * HW   # fused branch projections
                + 2 * C * C * HW                # conv3
                + 2 * C * HW * nhP2             # adaptive pool (head-replicated)
                + 2 * (2 * C) * C * nhP2        # kv conv
                + 2 * nhP2 * C * HW             # fused QK
                + 2 * C * nhP2 * HW             # fused PV
                + 4 * C * Cm)                   # channel-attention matvecs
    out_itemsize = jnp.dtype(out_dtype).itemsize
    bytes_accessed = int(N * C * HW * 4 + N * C * HW * out_itemsize
                         + sum(int(w.size) * w.dtype.itemsize for w in weights))
    cost = pl.CostEstimate(flops=int(N * mm_flops),
                           transcendentals=int(N * (nhP2 * HW + C)),
                           bytes_accessed=bytes_accessed)

    out = pl.pallas_call(
        kernel,
        out_shape=jax.ShapeDtypeStruct((N, C, HW), out_dtype),
        grid=(N,),
        in_specs=[pl.BlockSpec((1, C, HW), lambda n: (n, 0, 0))]
                 + [full_spec(w) for w in weights],
        out_specs=pl.BlockSpec((1, C, HW), lambda n: (n, 0, 0)),
        scratch_shapes=[pltpu.VMEM((Cm, (H + 2 * dmax) * W), jnp.float32)],
        compiler_params=pltpu.CompilerParams(
            dimension_semantics=("parallel",),
            vmem_limit_bytes=32 * 1024 * 1024),
        cost_estimate=cost,
    )(x_cf, *weights)

    return out.reshape(N, C, H, W)


if __name__ == "__main__":
    key = jax.random.PRNGKey(0)
    k_x, k_p = jax.random.split(key)

    # small shapes: dim=32, fc_ratio=4 -> Cm=8, 16x16 spatial, 4 heads, pool 4x4
    N, C, H, W = 2, 32, 16, 16
    num_heads, fc_ratio, pool_ratio = 4, 4, 4
    Cm = C // fc_ratio

    x = jax.random.normal(k_x, (N, C, H, W), jnp.float32)
    params = init_params(k_p, C, Cm)

    out = mutilscal_mhsa_forward(x, params, num_heads=num_heads,
                                 dilations=(3, 5, 7), pool_ratio=pool_ratio)
    jax.block_until_ready(out)
    assert out.shape == (N, C, H, W), out.shape
    assert bool(jnp.all(jnp.isfinite(out)))
    print("KERNEL_OK")
</pallas_src>

<mosaic_0001>
module attributes {stable_mosaic.version = 11 : i64} {
  func.func @_mutilscal_mhsa_kernel(%arg0: i32, %arg1: memref<1x32x256xf32, #tpu.memory_space<vmem>>, %arg2: memref<8x32xbf16, #tpu.memory_space<vmem>>, %arg3: memref<8x1xf32, #tpu.memory_space<vmem>>, %arg4: memref<27x8x1xf32, #tpu.memory_space<vmem>>, %arg5: memref<3x8x1xf32, #tpu.memory_space<vmem>>, %arg6: memref<9x256xf32, #tpu.memory_space<vmem>>, %arg7: memref<96x24xbf16, #tpu.memory_space<vmem>>, %arg8: memref<96x1xf32, #tpu.memory_space<vmem>>, %arg9: memref<32x32xbf16, #tpu.memory_space<vmem>>, %arg10: memref<32x1xf32, #tpu.memory_space<vmem>>, %arg11: memref<256x64xbf16, #tpu.memory_space<vmem>>, %arg12: memref<64x32xbf16, #tpu.memory_space<vmem>>, %arg13: memref<32x64xbf16, #tpu.memory_space<vmem>>, %arg14: memref<8x32xf32, #tpu.memory_space<vmem>>, %arg15: memref<8x1xf32, #tpu.memory_space<vmem>>, %arg16: memref<32x8xf32, #tpu.memory_space<vmem>>, %arg17: memref<32x1xf32, #tpu.memory_space<vmem>>, %arg18: memref<1x32x256xf32, #tpu.memory_space<vmem>>, %arg19: memref<8x512xf32, #tpu.memory_space<vmem>>) attributes {dimension_semantics = [#tpu.dimension_semantics<parallel>], iteration_bounds = array<i64: 2>, scalar_prefetch = 0 : i64, scratch_operands = 1 : i64, tpu.core_type = #tpu.core_type<tc>, window_params = [{transform_indices = @transform_0, window_bounds = array<i64: 1, 32, 256>}, {pipeline_mode = #tpu.pipeline_mode<synchronous>, transform_indices = @transform_1, window_bounds = array<i64: 8, 32>}, {pipeline_mode = #tpu.pipeline_mode<synchronous>, transform_indices = @transform_2, window_bounds = array<i64: 8, 1>}, {pipeline_mode = #tpu.pipeline_mode<synchronous>, transform_indices = @transform_3, window_bounds = array<i64: 27, 8, 1>}, {pipeline_mode = #tpu.pipeline_mode<synchronous>, transform_indices = @transform_4, window_bounds = array<i64: 3, 8, 1>}, {pipeline_mode = #tpu.pipeline_mode<synchronous>, transform_indices = @transform_5, window_bounds = array<i64: 9, 256>}, {pipeline_mode = #tpu.pipeline_mode<synchronous>, transform_indices = @transform_6, window_bounds = array<i64: 96, 24>}, {pipeline_mode = #tpu.pipeline_mode<synchronous>, transform_indices = @transform_7, window_bounds = array<i64: 96, 1>}, {pipeline_mode = #tpu.pipeline_mode<synchronous>, transform_indices = @transform_8, window_bounds = array<i64: 32, 32>}, {pipeline_mode = #tpu.pipeline_mode<synchronous>, transform_indices = @transform_9, window_bounds = array<i64: 32, 1>}, {pipeline_mode = #tpu.pipeline_mode<synchronous>, transform_indices = @transform_10, window_bounds = array<i64: 256, 64>}, {pipeline_mode = #tpu.pipeline_mode<synchronous>, transform_indices = @transform_11, window_bounds = array<i64: 64, 32>}, {pipeline_mode = #tpu.pipeline_mode<synchronous>, transform_indices = @transform_12, window_bounds = array<i64: 32, 64>}, {pipeline_mode = #tpu.pipeline_mode<synchronous>, transform_indices = @transform_13, window_bounds = array<i64: 8, 32>}, {pipeline_mode = #tpu.pipeline_mode<synchronous>, transform_indices = @transform_14, window_bounds = array<i64: 8, 1>}, {pipeline_mode = #tpu.pipeline_mode<synchronous>, transform_indices = @transform_15, window_bounds = array<i64: 32, 8>}, {pipeline_mode = #tpu.pipeline_mode<synchronous>, transform_indices = @transform_16, window_bounds = array<i64: 32, 1>}, {transform_indices = @transform_17, window_bounds = array<i64: 1, 32, 256>}]} {
    %c0 = arith.constant 0 : index
    %c0_0 = arith.constant 0 : index
    %c0_1 = arith.constant 0 : index
    %0 = vector.load %arg1[%c0, %c0_0, %c0_1] : memref<1x32x256xf32, #tpu.memory_space<vmem>>, vector<1x32x256xf32>
    %1 = vector.shape_cast %0 : vector<1x32x256xf32> to vector<32x256xf32>
    %2 = arith.truncf %1 : vector<32x256xf32> to vector<32x256xbf16>
    %c0_2 = arith.constant 0 : index
    %c0_3 = arith.constant 0 : index
    %3 = vector.load %arg2[%c0_2, %c0_3] : memref<8x32xbf16, #tpu.memory_space<vmem>>, vector<8x32xbf16>
    %cst = arith.constant dense<0.000000e+00> : vector<8x256xf32>
    %4 = tpu.matmul %3, %2, %cst {dimension_numbers = #tpu.dot_dimension_numbers<[1], [0], [0], [1], [0, 0, 1, 1], [], []>} : vector<8x32xbf16>, vector<32x256xbf16>, vector<8x256xf32> -> vector<8x256xf32>
    %c0_4 = arith.constant 0 : index
    %c0_5 = arith.constant 0 : index
    %5 = vector.load %arg3[%c0_4, %c0_5] : memref<8x1xf32, #tpu.memory_space<vmem>>, vector<8x1xf32>
    %6 = vector.broadcast %5 : vector<8x1xf32> to vector<8x256xf32>
    %7 = arith.addf %4, %6 : vector<8x256xf32>
    %cst_6 = arith.constant 0.000000e+00 : f32
    %8 = vector.broadcast %cst_6 : f32 to vector<8x256xf32>
    %9 = arith.maximumf %7, %8 : vector<8x256xf32>
    %cst_7 = arith.constant 6.000000e+00 : f32
    %10 = vector.broadcast %cst_7 : f32 to vector<8x256xf32>
    %11 = arith.minimumf %9, %10 : vector<8x256xf32>
    %cst_8 = arith.constant 0.000000e+00 : f32
    %12 = vector.broadcast %cst_8 : f32 to vector<8x128xf32>
    %c0_9 = arith.constant 0 : index
    %c0_10 = arith.constant 0 : index
    %13 = vector.load %arg19[%c0_9, %c0_10] : memref<8x512xf32, #tpu.memory_space<vmem>>, vector<8x128xf32>
    tpu.vector_store %arg19[%c0_9, %c0_10], %12 {strides = array<i32>} : memref<8x512xf32, #tpu.memory_space<vmem>>, vector<8x128xf32>,
    %c0_11 = arith.constant 0 : index
    %c384 = arith.constant 384 : index
    %14 = vector.load %arg19[%c0_11, %c384] : memref<8x512xf32, #tpu.memory_space<vmem>>, vector<8x128xf32>
    tpu.vector_store %arg19[%c0_11, %c384], %12 {strides = array<i32>} : memref<8x512xf32, #tpu.memory_space<vmem>>, vector<8x128xf32>,
    %c0_12 = arith.constant 0 : index
    %c128 = arith.constant 128 : index
    %15 = vector.load %arg19[%c0_12, %c128] : memref<8x512xf32, #tpu.memory_space<vmem>>, vector<8x256xf32>
    tpu.vector_store %arg19[%c0_12, %c128], %11 {strides = array<i32>} : memref<8x512xf32, #tpu.memory_space<vmem>>, vector<8x256xf32>,
    %cst_13 = arith.constant 0.000000e+00 : f32
    %16 = vector.broadcast %cst_13 : f32 to vector<8x256xf32>
    %c0_14 = arith.constant 0 : index
    %c77 = arith.constant 77 : index
    %17 = vector.load %arg19[%c0_14, %c77] : memref<8x512xf32, #tpu.memory_space<vmem>>, vector<8x256xf32>
    %c0_15 = arith.constant 0 : index
    %c0_16 = arith.constant 0 : index
    %c0_17 = arith.constant 0 : index
    %18 = vector.load %arg4[%c0_15, %c0_16, %c0_17] : memref<27x8x1xf32, #tpu.memory_space<vmem>>, vector<1x8x1xf32>
    %19 = vector.shape_cast %18 : vector<1x8x1xf32> to vector<8x1xf32>
    %20 = vector.broadcast %19 : vector<8x1xf32> to vector<8x256xf32>
    %21 = arith.mulf %17, %20 : vector<8x256xf32>
    %c0_18 = arith.constant 0 : index
    %c0_19 = arith.constant 0 : index
    %22 = vector.load %arg6[%c0_18, %c0_19] : memref<9x256xf32, #tpu.memory_space<vmem>>, vector<1x256xf32>
    %23 = vector.shape_cast %22 : vector<1x256xf32> to vector<256xf32>
    %24 = vector.shape_cast %23 : vector<256xf32> to vector<1x256xf32>
    %25 = vector.broadcast %24 : vector<1x256xf32> to vector<8x256xf32>
    %26 = arith.mulf %21, %25 : vector<8x256xf32>
    %27 = arith.addf %16, %26 : vector<8x256xf32>
    %c0_20 = arith.constant 0 : index
    %c80 = arith.constant 80 : index
    %28 = vector.load %arg19[%c0_20, %c80] : memref<8x512xf32, #tpu.memory_space<vmem>>, vector<8x256xf32>
    %c1 = arith.constant 1 : index
    %c0_21 = arith.constant 0 : index
    %c0_22 = arith.constant 0 : index
    %29 = vector.load %arg4[%c1, %c0_21, %c0_22] : memref<27x8x1xf32, #tpu.memory_space<vmem>>, vector<1x8x1xf32>
    %30 = vector.shape_cast %29 : vector<1x8x1xf32> to vector<8x1xf32>
    %31 = vector.broadcast %30 : vector<8x1xf32> to vector<8x256xf32>
    %32 = arith.mulf %28, %31 : vector<8x256xf32>
    %33 = arith.addf %27, %32 : vector<8x256xf32>
    %c0_23 = arith.constant 0 : index
    %c83 = arith.constant 83 : index
    %34 = vector.load %arg19[%c0_23, %c83] : memref<8x512xf32, #tpu.memory_space<vmem>>, vector<8x256xf32>
    %c2 = arith.constant 2 : index
    %c0_24 = arith.constant 0 : index
    %c0_25 = arith.constant 0 : index
    %35 = vector.load %arg4[%c2, %c0_24, %c0_25] : memref<27x8x1xf32, #tpu.memory_space<vmem>>, vector<1x8x1xf32>
    %36 = vector.shape_cast %35 : vector<1x8x1xf32> to vector<8x1xf32>
    %37 = vector.broadcast %36 : vector<8x1xf32> to vector<8x256xf32>
    %38 = arith.mulf %34, %37 : vector<8x256xf32>
    %c2_26 = arith.constant 2 : index
    %c0_27 = arith.constant 0 : index
    %39 = vector.load %arg6[%c2_26, %c0_27] : memref<9x256xf32, #tpu.memory_space<vmem>>, vector<1x256xf32>
    %40 = vector.shape_cast %39 : vector<1x256xf32> to vector<256xf32>
    %41 = vector.shape_cast %40 : vector<256xf32> to vector<1x256xf32>
    %42 = vector.broadcast %41 : vector<1x256xf32> to vector<8x256xf32>
    %43 = arith.mulf %38, %42 : vector<8x256xf32>
    %44 = arith.addf %33, %43 : vector<8x256xf32>
    %c0_28 = arith.constant 0 : index
    %c125 = arith.constant 125 : index
    %45 = vector.load %arg19[%c0_28, %c125] : memref<8x512xf32, #tpu.memory_space<vmem>>, vector<8x256xf32>
    %c3 = arith.constant 3 : index
    %c0_29 = arith.constant 0 : index
    %c0_30 = arith.constant 0 : index
    %46 = vector.load %arg4[%c3, %c0_29, %c0_30] : memref<27x8x1xf32, #tpu.memory_space<vmem>>, vector<1x8x1xf32>
    %47 = vector.shape_cast %46 : vector<1x8x1xf32> to vector<8x1xf32>
    %48 = vector.broadcast %47 : vector<8x1xf32> to vector<8x256xf32>
    %49 = arith.mulf %45, %48 : vector<8x256xf32>
    %c0_31 = arith.constant 0 : index
    %c0_32 = arith.constant 0 : index
    %50 = vector.load %arg6[%c0_31, %c0_32] : memref<9x256xf32, #tpu.memory_space<vmem>>, vector<1x256xf32>
    %51 = vector.shape_cast %50 : vector<1x256xf32> to vector<256xf32>
    %52 = vector.shape_cast %51 : vector<256xf32> to vector<1x256xf32>
    %53 = vector.broadcast %52 : vector<1x256xf32> to vector<8x256xf32>
    %54 = arith.mulf %49, %53 : vector<8x256xf32>
    %55 = arith.addf %44, %54 : vector<8x256xf32>
    %c0_33 = arith.constant 0 : index
    %c128_34 = arith.constant 128 : index
    %56 = vector.load %arg19[%c0_33, %c128_34] : memref<8x512xf32, #tpu.memory_space<vmem>>, vector<8x256xf32>
    %c4 = arith.constant 4 : index
    %c0_35 = arith.constant 0 : index
    %c0_36 = arith.constant 0 : index
    %57 = vector.load %arg4[%c4, %c0_35, %c0_36] : memref<27x8x1xf32, #tpu.memory_space<vmem>>, vector<1x8x1xf32>
    %58 = vector.shape_cast %57 : vector<1x8x1xf32> to vector<8x1xf32>
    %59 = vector.broadcast %58 : vector<8x1xf32> to vector<8x256xf32>
    %60 = arith.mulf %56, %59 : vector<8x256xf32>
    %61 = arith.addf %55, %60 : vector<8x256xf32>
    %c0_37 = arith.constant 0 : index
    %c131 = arith.constant 131 : index
    %62 = vector.load %arg19[%c0_37, %c131] : memref<8x512xf32, #tpu.memory_space<vmem>>, vector<8x256xf32>
    %c5 = arith.constant 5 : index
    %c0_38 = arith.constant 0 : index
    %c0_39 = arith.constant 0 : index
    %63 = vector.load %arg4[%c5, %c0_38, %c0_39] : memref<27x8x1xf32, #tpu.memory_space<vmem>>, vector<1x8x1xf32>
    %64 = vector.shape_cast %63 : vector<1x8x1xf32> to vector<8x1xf32>
    %65 = vector.broadcast %64 : vector<8x1xf32> to vector<8x256xf32>
    %66 = arith.mulf %62, %65 : vector<8x256xf32>
    %c2_40 = arith.constant 2 : index
    %c0_41 = arith.constant 0 : index
    %67 = vector.load %arg6[%c2_40, %c0_41] : memref<9x256xf32, #tpu.memory_space<vmem>>, vector<1x256xf32>
    %68 = vector.shape_cast %67 : vector<1x256xf32> to vector<256xf32>
    %69 = vector.shape_cast %68 : vector<256xf32> to vector<1x256xf32>
    %70 = vector.broadcast %69 : vector<1x256xf32> to vector<8x256xf32>
    %71 = arith.mulf %66, %70 : vector<8x256xf32>
    %72 = arith.addf %61, %71 : vector<8x256xf32>
    %c0_42 = arith.constant 0 : index
    %c173 = arith.constant 173 : index
    %73 = vector.load %arg19[%c0_42, %c173] : memref<8x512xf32, #tpu.memory_space<vmem>>, vector<8x256xf32>
    %c6 = arith.constant 6 : index
    %c0_43 = arith.constant 0 : index
    %c0_44 = arith.constant 0 : index
    %74 = vector.load %arg4[%c6, %c0_43, %c0_44] : memref<27x8x1xf32, #tpu.memory_space<vmem>>, vector<1x8x1xf32>
    %75 = vector.shape_cast %74 : vector<1x8x1xf32> to vector<8x1xf32>
    %76 = vector.broadcast %75 : vector<8x1xf32> to vector<8x256xf32>
    %77 = arith.mulf %73, %76 : vector<8x256xf32>
    %c0_45 = arith.constant 0 : index
    %c0_46 = arith.constant 0 : index
    %78 = vector.load %arg6[%c0_45, %c0_46] : memref<9x256xf32, #tpu.memory_space<vmem>>, vector<1x256xf32>
    %79 = vector.shape_cast %78 : vector<1x256xf32> to vector<256xf32>
    %80 = vector.shape_cast %79 : vector<256xf32> to vector<1x256xf32>
    %81 = vector.broadcast %80 : vector<1x256xf32> to vector<8x256xf32>
    %82 = arith.mulf %77, %81 : vector<8x256xf32>
    %83 = arith.addf %72, %82 : vector<8x256xf32>
    %c0_47 = arith.constant 0 : index
    %c176 = arith.constant 176 : index
    %84 = vector.load %arg19[%c0_47, %c176] : memref<8x512xf32, #tpu.memory_space<vmem>>, vector<8x256xf32>
    %c7 = arith.constant 7 : index
    %c0_48 = arith.constant 0 : index
    %c0_49 = arith.constant 0 : index
    %85 = vector.load %arg4[%c7, %c0_48, %c0_49] : memref<27x8x1xf32, #tpu.memory_space<vmem>>, vector<1x8x1xf32>
    %86 = vector.shape_cast %85 : vector<1x8x1xf32> to vector<8x1xf32>
    %87 = vector.broadcast %86 : vector<8x1xf32> to vector<8x256xf32>
    %88 = arith.mulf %84, %87 : vector<8x256xf32>
    %89 = arith.addf %83, %88 : vector<8x256xf32>
    %c0_50 = arith.constant 0 : index
    %c179 = arith.constant 179 : index
    %90 = vector.load %arg19[%c0_50, %c179] : memref<8x512xf32, #tpu.memory_space<vmem>>, vector<8x256xf32>
    %c8 = arith.constant 8 : index
    %c0_51 = arith.constant 0 : index
    %c0_52 = arith.constant 0 : index
    %91 = vector.load %arg4[%c8, %c0_51, %c0_52] : memref<27x8x1xf32, #tpu.memory_space<vmem>>, vector<1x8x1xf32>
    %92 = vector.shape_cast %91 : vector<1x8x1xf32> to vector<8x1xf32>
    %93 = vector.broadcast %92 : vector<8x1xf32> to vector<8x256xf32>
    %94 = arith.mulf %90, %93 : vector<8x256xf32>
    %c2_53 = arith.constant 2 : index
    %c0_54 = arith.constant 0 : index
    %95 = vector.load %arg6[%c2_53, %c0_54] : memref<9x256xf32, #tpu.memory_space<vmem>>, vector<1x256xf32>
    %96 = vector.shape_cast %95 : vector<1x256xf32> to vector<256xf32>
    %97 = vector.shape_cast %96 : vector<256xf32> to vector<1x256xf32>
    %98 = vector.broadcast %97 : vector<1x256xf32> to vector<8x256xf32>
    %99 = arith.mulf %94, %98 : vector<8x256xf32>
    %100 = arith.addf %89, %99 : vector<8x256xf32>
    %c0_55 = arith.constant 0 : index
    %c0_56 = arith.constant 0 : index
    %c0_57 = arith.constant 0 : index
    %101 = vector.load %arg5[%c0_55, %c0_56, %c0_57] : memref<3x8x1xf32, #tpu.memory_space<vmem>>, vector<1x8x1xf32>
    %102 = vector.shape_cast %101 : vector<1x8x1xf32> to vector<8x1xf32>
    %103 = vector.broadcast %102 : vector<8x1xf32> to vector<8x256xf32>
    %104 = arith.addf %100, %103 : vector<8x256xf32>
    %cst_58 = arith.constant 0.000000e+00 : f32
    %105 = vector.broadcast %cst_58 : f32 to vector<8x256xf32>
    %106 = arith.maximumf %104, %105 : vector<8x256xf32>
    %cst_59 = arith.constant 6.000000e+00 : f32
    %107 = vector.broadcast %cst_59 : f32 to vector<8x256xf32>
    %108 = arith.minimumf %106, %107 : vector<8x256xf32>
    %cst_60 = arith.constant 0.000000e+00 : f32
    %109 = vector.broadcast %cst_60 : f32 to vector<8x256xf32>
    %c0_61 = arith.constant 0 : index
    %c43 = arith.constant 43 : index
    %110 = vector.load %arg19[%c0_61, %c43] : memref<8x512xf32, #tpu.memory_space<vmem>>, vector<8x256xf32>
    %c9 = arith.constant 9 : index
    %c0_62 = arith.constant 0 : index
    %c0_63 = arith.constant 0 : index
    %111 = vector.load %arg4[%c9, %c0_62, %c0_63] : memref<27x8x1xf32, #tpu.memory_space<vmem>>, vector<1x8x1xf32>
    %112 = vector.shape_cast %111 : vector<1x8x1xf32> to vector<8x1xf32>
    %113 = vector.broadcast %112 : vector<8x1xf32> to vector<8x256xf32>
    %114 = arith.mulf %110, %113 : vector<8x256xf32>
    %c3_64 = arith.constant 3 : index
    %c0_65 = arith.constant 0 : index
    %115 = vector.load %arg6[%c3_64, %c0_65] : memref<9x256xf32, #tpu.memory_space<vmem>>, vector<1x256xf32>
    %116 = vector.shape_cast %115 : vector<1x256xf32> to vector<256xf32>
    %117 = vector.shape_cast %116 : vector<256xf32> to vector<1x256xf32>
    %118 = vector.broadcast %117 : vector<1x256xf32> to vector<8x256xf32>
    %119 = arith.mulf %114, %118 : vector<8x256xf32>
    %120 = arith.addf %109, %119 : vector<8x256xf32>
    %c0_66 = arith.constant 0 : index
    %c48 = arith.constant 48 : index
    %121 = vector.load %arg19[%c0_66, %c48] : memref<8x512xf32, #tpu.memory_space<vmem>>, vector<8x256xf32>
    %c10 = arith.constant 10 : index
    %c0_67 = arith.constant 0 : index
    %c0_68 = arith.constant 0 : index
    %122 = vector.load %arg4[%c10, %c0_67, %c0_68] : memref<27x8x1xf32, #tpu.memory_space<vmem>>, vector<1x8x1xf32>
    %123 = vector.shape_cast %122 : vector<1x8x1xf32> to vector<8x1xf32>
    %124 = vector.broadcast %123 : vector<8x1xf32> to vector<8x256xf32>
    %125 = arith.mulf %121, %124 : vector<8x256xf32>
    %126 = arith.addf %120, %125 : vector<8x256xf32>
    %c0_69 = arith.constant 0 : index
    %c53 = arith.constant 53 : index
    %127 = vector.load %arg19[%c0_69, %c53] : memref<8x512xf32, #tpu.memory_space<vmem>>, vector<8x256xf32>
    %c11 = arith.constant 11 : index
    %c0_70 = arith.constant 0 : index
    %c0_71 = arith.constant 0 : index
    %128 = vector.load %arg4[%c11, %c0_70, %c0_71] : memref<27x8x1xf32, #tpu.memory_space<vmem>>, vector<1x8x1xf32>
    %129 = vector.shape_cast %128 : vector<1x8x1xf32> to vector<8x1xf32>
    %130 = vector.broadcast %129 : vector<8x1xf32> to vector<8x256xf32>
    %131 = arith.mulf %127, %130 : vector<8x256xf32>
    %c5_72 = arith.constant 5 : index
    %c0_73 = arith.constant 0 : index
    %132 = vector.load %arg6[%c5_72, %c0_73] : memref<9x256xf32, #tpu.memory_space<vmem>>, vector<1x256xf32>
    %133 = vector.shape_cast %132 : vector<1x256xf32> to vector<256xf32>
    %134 = vector.shape_cast %133 : vector<256xf32> to vector<1x256xf32>
    %135 = vector.broadcast %134 : vector<1x256xf32> to vector<8x256xf32>
    %136 = arith.mulf %131, %135 : vector<8x256xf32>
    %137 = arith.addf %126, %136 : vector<8x256xf32>
    %c0_74 = arith.constant 0 : index
    %c123 = arith.constant 123 : index
    %138 = vector.load %arg19[%c0_74, %c123] : memref<8x512xf32, #tpu.memory_space<vmem>>, vector<8x256xf32>
    %c12 = arith.constant 12 : index
    %c0_75 = arith.constant 0 : index
    %c0_76 = arith.constant 0 : index
    %139 = vector.load %arg4[%c12, %c0_75, %c0_76] : memref<27x8x1xf32, #tpu.memory_space<vmem>>, vector<1x8x1xf32>
    %140 = vector.shape_cast %139 : vector<1x8x1xf32> to vector<8x1xf32>
    %141 = vector.broadcast %140 : vector<8x1xf32> to vector<8x256xf32>
    %142 = arith.mulf %138, %141 : vector<8x256xf32>
    %c3_77 = arith.constant 3 : index
    %c0_78 = arith.constant 0 : index
    %143 = vector.load %arg6[%c3_77, %c0_78] : memref<9x256xf32, #tpu.memory_space<vmem>>, vector<1x256xf32>
    %144 = vector.shape_cast %143 : vector<1x256xf32> to vector<256xf32>
    %145 = vector.shape_cast %144 : vector<256xf32> to vector<1x256xf32>
    %146 = vector.broadcast %145 : vector<1x256xf32> to vector<8x256xf32>
    %147 = arith.mulf %142, %146 : vector<8x256xf32>
    %148 = arith.addf %137, %147 : vector<8x256xf32>
    %c0_79 = arith.constant 0 : index
    %c128_80 = arith.constant 128 : index
    %149 = vector.load %arg19[%c0_79, %c128_80] : memref<8x512xf32, #tpu.memory_space<vmem>>, vector<8x256xf32>
    %c13 = arith.constant 13 : index
    %c0_81 = arith.constant 0 : index
    %c0_82 = arith.constant 0 : index
    %150 = vector.load %arg4[%c13, %c0_81, %c0_82] : memref<27x8x1xf32, #tpu.memory_space<vmem>>, vector<1x8x1xf32>
    %151 = vector.shape_cast %150 : vector<1x8x1xf32> to vector<8x1xf32>
    %152 = vector.broadcast %151 : vector<8x1xf32> to vector<8x256xf32>
    %153 = arith.mulf %149, %152 : vector<8x256xf32>
    %154 = arith.addf %148, %153 : vector<8x256xf32>
    %c0_83 = arith.constant 0 : index
    %c133 = arith.constant 133 : index
    %155 = vector.load %arg19[%c0_83, %c133] : memref<8x512xf32, #tpu.memory_space<vmem>>, vector<8x256xf32>
    %c14 = arith.constant 14 : index
    %c0_84 = arith.constant 0 : index
    %c0_85 = arith.constant 0 : index
    %156 = vector.load %arg4[%c14, %c0_84, %c0_85] : memref<27x8x1xf32, #tpu.memory_space<vmem>>, vector<1x8x1xf32>
    %157 = vector.shape_cast %156 : vector<1x8x1xf32> to vector<8x1xf32>
    %158 = vector.broadcast %157 : vector<8x1xf32> to vector<8x256xf32>
    %159 = arith.mulf %155, %158 : vector<8x256xf32>
    %c5_86 = arith.constant 5 : index
    %c0_87 = arith.constant 0 : index
    %160 = vector.load %arg6[%c5_86, %c0_87] : memref<9x256xf32, #tpu.memory_space<vmem>>, vector<1x256xf32>
    %161 = vector.shape_cast %160 : vector<1x256xf32> to vector<256xf32>
    %162 = vector.shape_cast %161 : vector<256xf32> to vector<1x256xf32>
    %163 = vector.broadcast %162 : vector<1x256xf32> to vector<8x256xf32>
    %164 = arith.mulf %159, %163 : vector<8x256xf32>
    %165 = arith.addf %154, %164 : vector<8x256xf32>
    %c0_88 = arith.constant 0 : index
    %c203 = arith.constant 203 : index
    %166 = vector.load %arg19[%c0_88, %c203] : memref<8x512xf32, #tpu.memory_space<vmem>>, vector<8x256xf32>
    %c15 = arith.constant 15 : index
    %c0_89 = arith.constant 0 : index
    %c0_90 = arith.constant 0 : index
    %167 = vector.load %arg4[%c15, %c0_89, %c0_90] : memref<27x8x1xf32, #tpu.memory_space<vmem>>, vector<1x8x1xf32>
    %168 = vector.shape_cast %167 : vector<1x8x1xf32> to vector<8x1xf32>
    %169 = vector.broadcast %168 : vector<8x1xf32> to vector<8x256xf32>
    %170 = arith.mulf %166, %169 : vector<8x256xf32>
    %c3_91 = arith.constant 3 : index
    %c0_92 = arith.constant 0 : index
    %171 = vector.load %arg6[%c3_91, %c0_92] : memref<9x256xf32, #tpu.memory_space<vmem>>, vector<1x256xf32>
    %172 = vector.shape_cast %171 : vector<1x256xf32> to vector<256xf32>
    %173 = vector.shape_cast %172 : vector<256xf32> to vector<1x256xf32>
    %174 = vector.broadcast %173 : vector<1x256xf32> to vector<8x256xf32>
    %175 = arith.mulf %170, %174 : vector<8x256xf32>
    %176 = arith.addf %165, %175 : vector<8x256xf32>
    %c0_93 = arith.constant 0 : index
    %c208 = arith.constant 208 : index
    %177 = vector.load %arg19[%c0_93, %c208] : memref<8x512xf32, #tpu.memory_space<vmem>>, vector<8x256xf32>
    %c16 = arith.constant 16 : index
    %c0_94 = arith.constant 0 : index
    %c0_95 = arith.constant 0 : index
    %178 = vector.load %arg4[%c16, %c0_94, %c0_95] : memref<27x8x1xf32, #tpu.memory_space<vmem>>, vector<1x8x1xf32>
    %179 = vector.shape_cast %178 : vector<1x8x1xf32> to vector<8x1xf32>
    %180 = vector.broadcast %179 : vector<8x1xf32> to vector<8x256xf32>
    %181 = arith.mulf %177, %180 : vector<8x256xf32>
    %182 = arith.addf %176, %181 : vector<8x256xf32>
    %c0_96 = arith.constant 0 : index
    %c213 = arith.constant 213 : index
    %183 = vector.load %arg19[%c0_96, %c213] : memref<8x512xf32, #tpu.memory_space<vmem>>, vector<8x256xf32>
    %c17 = arith.constant 17 : index
    %c0_97 = arith.constant 0 : index
    %c0_98 = arith.constant 0 : index
    %184 = vector.load %arg4[%c17, %c0_97, %c0_98] : memref<27x8x1xf32, #tpu.memory_space<vmem>>, vector<1x8x1xf32>
    %185 = vector.shape_cast %184 : vector<1x8x1xf32> to vector<8x1xf32>
    %186 = vector.broadcast %185 : vector<8x1xf32> to vector<8x256xf32>
    %187 = arith.mulf %183, %186 : vector<8x256xf32>
    %c5_99 = arith.constant 5 : index
    %c0_100 = arith.constant 0 : index
    %188 = vector.load %arg6[%c5_99, %c0_100] : memref<9x256xf32, #tpu.memory_space<vmem>>, vector<1x256xf32>
    %189 = vector.shape_cast %188 : vector<1x256xf32> to vector<256xf32>
    %190 = vector.shape_cast %189 : vector<256xf32> to vector<1x256xf32>
    %191 = vector.broadcast %190 : vector<1x256xf32> to vector<8x256xf32>
    %192 = arith.mulf %187, %191 : vector<8x256xf32>
    %193 = arith.addf %182, %192 : vector<8x256xf32>
    %c1_101 = arith.constant 1 : index
    %c0_102 = arith.constant 0 : index
    %c0_103 = arith.constant 0 : index
    %194 = vector.load %arg5[%c1_101, %c0_102, %c0_103] : memref<3x8x1xf32, #tpu.memory_space<vmem>>, vector<1x8x1xf32>
    %195 = vector.shape_cast %194 : vector<1x8x1xf32> to vector<8x1xf32>
    %196 = vector.broadcast %195 : vector<8x1xf32> to vector<8x256xf32>
    %197 = arith.addf %193, %196 : vector<8x256xf32>
    %cst_104 = arith.constant 0.000000e+00 : f32
    %198 = vector.broadcast %cst_104 : f32 to vector<8x256xf32>
    %199 = arith.maximumf %197, %198 : vector<8x256xf32>
    %cst_105 = arith.constant 6.000000e+00 : f32
    %200 = vector.broadcast %cst_105 : f32 to vector<8x256xf32>
    %201 = arith.minimumf %199, %200 : vector<8x256xf32>
    %cst_106 = arith.constant 0.000000e+00 : f32
    %202 = vector.broadcast %cst_106 : f32 to vector<8x256xf32>
    %c0_107 = arith.constant 0 : index
    %c9_108 = arith.constant 9 : index
    %203 = vector.load %arg19[%c0_107, %c9_108] : memref<8x512xf32, #tpu.memory_space<vmem>>, vector<8x256xf32>
    %c18 = arith.constant 18 : index
    %c0_109 = arith.constant 0 : index
    %c0_110 = arith.constant 0 : index
    %204 = vector.load %arg4[%c18, %c0_109, %c0_110] : memref<27x8x1xf32, #tpu.memory_space<vmem>>, vector<1x8x1xf32>
    %205 = vector.shape_cast %204 : vector<1x8x1xf32> to vector<8x1xf32>
    %206 = vector.broadcast %205 : vector<8x1xf32> to vector<8x256xf32>
    %207 = arith.mulf %203, %206 : vector<8x256xf32>
    %c6_111 = arith.constant 6 : index
    %c0_112 = arith.constant 0 : index
    %208 = vector.load %arg6[%c6_111, %c0_112] : memref<9x256xf32, #tpu.memory_space<vmem>>, vector<1x256xf32>
    %209 = vector.shape_cast %208 : vector<1x256xf32> to vector<256xf32>
    %210 = vector.shape_cast %209 : vector<256xf32> to vector<1x256xf32>
    %211 = vector.broadcast %210 : vector<1x256xf32> to vector<8x256xf32>
    %212 = arith.mulf %207, %211 : vector<8x256xf32>
    %213 = arith.addf %202, %212 : vector<8x256xf32>
    %c0_113 = arith.constant 0 : index
    %c16_114 = arith.constant 16 : index
    %214 = vector.load %arg19[%c0_113, %c16_114] : memref<8x512xf32, #tpu.memory_space<vmem>>, vector<8x256xf32>
    %c19 = arith.constant 19 : index
    %c0_115 = arith.constant 0 : index
    %c0_116 = arith.constant 0 : index
    %215 = vector.load %arg4[%c19, %c0_115, %c0_116] : memref<27x8x1xf32, #tpu.memory_space<vmem>>, vector<1x8x1xf32>
    %216 = vector.shape_cast %215 : vector<1x8x1xf32> to vector<8x1xf32>
    %217 = vector.broadcast %216 : vector<8x1xf32> to vector<8x256xf32>
    %218 = arith.mulf %214, %217 : vector<8x256xf32>
    %219 = arith.addf %213, %218 : vector<8x256xf32>
    %c0_117 = arith.constant 0 : index
    %c23 = arith.constant 23 : index
    %220 = vector.load %arg19[%c0_117, %c23] : memref<8x512xf32, #tpu.memory_space<vmem>>, vector<8x256xf32>
    %c20 = arith.constant 20 : index
    %c0_118 = arith.constant 0 : index
    %c0_119 = arith.constant 0 : index
    %221 = vector.load %arg4[%c20, %c0_118, %c0_119] : memref<27x8x1xf32, #tpu.memory_space<vmem>>, vector<1x8x1xf32>
    %222 = vector.shape_cast %221 : vector<1x8x1xf32> to vector<8x1xf32>
    %223 = vector.broadcast %222 : vector<8x1xf32> to vector<8x256xf32>
    %224 = arith.mulf %220, %223 : vector<8x256xf32>
    %c8_120 = arith.constant 8 : index
    %c0_121 = arith.constant 0 : index
    %225 = vector.load %arg6[%c8_120, %c0_121] : memref<9x256xf32, #tpu.memory_space<vmem>>, vector<1x256xf32>
    %226 = vector.shape_cast %225 : vector<1x256xf32> to vector<256xf32>
    %227 = vector.shape_cast %226 : vector<256xf32> to vector<1x256xf32>
    %228 = vector.broadcast %227 : vector<1x256xf32> to vector<8x256xf32>
    %229 = arith.mulf %224, %228 : vector<8x256xf32>
    %230 = arith.addf %219, %229 : vector<8x256xf32>
    %c0_122 = arith.constant 0 : index
    %c121 = arith.constant 121 : index
    %231 = vector.load %arg19[%c0_122, %c121] : memref<8x512xf32, #tpu.memory_space<vmem>>, vector<8x256xf32>
    %c21 = arith.constant 21 : index
    %c0_123 = arith.constant 0 : index
    %c0_124 = arith.constant 0 : index
    %232 = vector.load %arg4[%c21, %c0_123, %c0_124] : memref<27x8x1xf32, #tpu.memory_space<vmem>>, vector<1x8x1xf32>
    %233 = vector.shape_cast %232 : vector<1x8x1xf32> to vector<8x1xf32>
    %234 = vector.broadcast %233 : vector<8x1xf32> to vector<8x256xf32>
    %235 = arith.mulf %231, %234 : vector<8x256xf32>
    %c6_125 = arith.constant 6 : index
    %c0_126 = arith.constant 0 : index
    %236 = vector.load %arg6[%c6_125, %c0_126] : memref<9x256xf32, #tpu.memory_space<vmem>>, vector<1x256xf32>
    %237 = vector.shape_cast %236 : vector<1x256xf32> to vector<256xf32>
    %238 = vector.shape_cast %237 : vector<256xf32> to vector<1x256xf32>
    %239 = vector.broadcast %238 : vector<1x256xf32> to vector<8x256xf32>
    %240 = arith.mulf %235, %239 : vector<8x256xf32>
    %241 = arith.addf %230, %240 : vector<8x256xf32>
    %c0_127 = arith.constant 0 : index
    %c128_128 = arith.constant 128 : index
    %242 = vector.load %arg19[%c0_127, %c128_128] : memref<8x512xf32, #tpu.memory_space<vmem>>, vector<8x256xf32>
    %c22 = arith.constant 22 : index
    %c0_129 = arith.constant 0 : index
    %c0_130 = arith.constant 0 : index
    %243 = vector.load %arg4[%c22, %c0_129, %c0_130] : memref<27x8x1xf32, #tpu.memory_space<vmem>>, vector<1x8x1xf32>
    %244 = vector.shape_cast %243 : vector<1x8x1xf32> to vector<8x1xf32>
    %245 = vector.broadcast %244 : vector<8x1xf32> to vector<8x256xf32>
    %246 = arith.mulf %242, %245 : vector<8x256xf32>
    %247 = arith.addf %241, %246 : vector<8x256xf32>
    %c0_131 = arith.constant 0 : index
    %c135 = arith.constant 135 : index
    %248 = vector.load %arg19[%c0_131, %c135] : memref<8x512xf32, #tpu.memory_space<vmem>>, vector<8x256xf32>
    %c23_132 = arith.constant 23 : index
    %c0_133 = arith.constant 0 : index
    %c0_134 = arith.constant 0 : index
    %249 = vector.load %arg4[%c23_132, %c0_133, %c0_134] : memref<27x8x1xf32, #tpu.memory_space<vmem>>, vector<1x8x1xf32>
    %250 = vector.shape_cast %249 : vector<1x8x1xf32> to vector<8x1xf32>
    %251 = vector.broadcast %250 : vector<8x1xf32> to vector<8x256xf32>
    %252 = arith.mulf %248, %251 : vector<8x256xf32>
    %c8_135 = arith.constant 8 : index
    %c0_136 = arith.constant 0 : index
    %253 = vector.load %arg6[%c8_135, %c0_136] : memref<9x256xf32, #tpu.memory_space<vmem>>, vector<1x256xf32>
    %254 = vector.shape_cast %253 : vector<1x256xf32> to vector<256xf32>
    %255 = vector.shape_cast %254 : vector<256xf32> to vector<1x256xf32>
    %256 = vector.broadcast %255 : vector<1x256xf32> to vector<8x256xf32>
    %257 = arith.mulf %252, %256 : vector<8x256xf32>
    %258 = arith.addf %247, %257 : vector<8x256xf32>
    %c0_137 = arith.constant 0 : index
    %c233 = arith.constant 233 : index
    %259 = vector.load %arg19[%c0_137, %c233] : memref<8x512xf32, #tpu.memory_space<vmem>>, vector<8x256xf32>
    %c24 = arith.constant 24 : index
    %c0_138 = arith.constant 0 : index
    %c0_139 = arith.constant 0 : index
    %260 = vector.load %arg4[%c24, %c0_138, %c0_139] : memref<27x8x1xf32, #tpu.memory_space<vmem>>, vector<1x8x1xf32>
    %261 = vector.shape_cast %260 : vector<1x8x1xf32> to vector<8x1xf32>
    %262 = vector.broadcast %261 : vector<8x1xf32> to vector<8x256xf32>
    %263 = arith.mulf %259, %262 : vector<8x256xf32>
    %c6_140 = arith.constant 6 : index
    %c0_141 = arith.constant 0 : index
    %264 = vector.load %arg6[%c6_140, %c0_141] : memref<9x256xf32, #tpu.memory_space<vmem>>, vector<1x256xf32>
    %265 = vector.shape_cast %264 : vector<1x256xf32> to vector<256xf32>
    %266 = vector.shape_cast %265 : vector<256xf32> to vector<1x256xf32>
    %267 = vector.broadcast %266 : vector<1x256xf32> to vector<8x256xf32>
    %268 = arith.mulf %263, %267 : vector<8x256xf32>
    %269 = arith.addf %258, %268 : vector<8x256xf32>
    %c0_142 = arith.constant 0 : index
    %c240 = arith.constant 240 : index
    %270 = vector.load %arg19[%c0_142, %c240] : memref<8x512xf32, #tpu.memory_space<vmem>>, vector<8x256xf32>
    %c25 = arith.constant 25 : index
    %c0_143 = arith.constant 0 : index
    %c0_144 = arith.constant 0 : index
    %271 = vector.load %arg4[%c25, %c0_143, %c0_144] : memref<27x8x1xf32, #tpu.memory_space<vmem>>, vector<1x8x1xf32>
    %272 = vector.shape_cast %271 : vector<1x8x1xf32> to vector<8x1xf32>
    %273 = vector.broadcast %272 : vector<8x1xf32> to vector<8x256xf32>
    %274 = arith.mulf %270, %273 : vector<8x256xf32>
    %275 = arith.addf %269, %274 : vector<8x256xf32>
    %c0_145 = arith.constant 0 : index
    %c247 = arith.constant 247 : index
    %276 = vector.load %arg19[%c0_145, %c247] : memref<8x512xf32, #tpu.memory_space<vmem>>, vector<8x256xf32>
    %c26 = arith.constant 26 : index
    %c0_146 = arith.constant 0 : index
    %c0_147 = arith.constant 0 : index
    %277 = vector.load %arg4[%c26, %c0_146, %c0_147] : memref<27x8x1xf32, #tpu.memory_space<vmem>>, vector<1x8x1xf32>
    %278 = vector.shape_cast %277 : vector<1x8x1xf32> to vector<8x1xf32>
    %279 = vector.broadcast %278 : vector<8x1xf32> to vector<8x256xf32>
    %280 = arith.mulf %276, %279 : vector<8x256xf32>
    %c8_148 = arith.constant 8 : index
    %c0_149 = arith.constant 0 : index
    %281 = vector.load %arg6[%c8_148, %c0_149] : memref<9x256xf32, #tpu.memory_space<vmem>>, vector<1x256xf32>
    %282 = vector.shape_cast %281 : vector<1x256xf32> to vector<256xf32>
    %283 = vector.shape_cast %282 : vector<256xf32> to vector<1x256xf32>
    %284 = vector.broadcast %283 : vector<1x256xf32> to vector<8x256xf32>
    %285 = arith.mulf %280, %284 : vector<8x256xf32>
    %286 = arith.addf %275, %285 : vector<8x256xf32>
    %c2_150 = arith.constant 2 : index
    %c0_151 = arith.constant 0 : index
    %c0_152 = arith.constant 0 : index
    %287 = vector.load %arg5[%c2_150, %c0_151, %c0_152] : memref<3x8x1xf32, #tpu.memory_space<vmem>>, vector<1x8x1xf32>
    %288 = vector.shape_cast %287 : vector<1x8x1xf32> to vector<8x1xf32>
    %289 = vector.broadcast %288 : vector<8x1xf32> to vector<8x256xf32>
    %290 = arith.addf %286, %289 : vector<8x256xf32>
    %cst_153 = arith.constant 0.000000e+00 : f32
    %291 = vector.broadcast %cst_153 : f32 to vector<8x256xf32>
    %292 = arith.maximumf %290, %291 : vector<8x256xf32>
    %cst_154 = arith.constant 6.000000e+00 : f32
    %293 = vector.broadcast %cst_154 : f32 to vector<8x256xf32>
    %294 = arith.minimumf %292, %293 : vector<8x256xf32>
    %295 = tpu.concatenate %108, %201, %294 in 0 : vector<8x256xf32>, vector<8x256xf32>, vector<8x256xf32> -> vector<24x256xf32>
    %296 = arith.truncf %295 : vector<24x256xf32> to vector<24x256xbf16>
    %c0_155 = arith.constant 0 : index
    %c0_156 = arith.constant 0 : index
    %297 = vector.load %arg7[%c0_155, %c0_156] : memref<96x24xbf16, #tpu.memory_space<vmem>>, vector<96x24xbf16>
    %cst_157 = arith.constant dense<0.000000e+00> : vector<96x256xf32>
    %298 = tpu.matmul %297, %296, %cst_157 {dimension_numbers = #tpu.dot_dimension_numbers<[1], [0], [0], [1], [0, 0, 1, 1], [], []>} : vector<96x24xbf16>, vector<24x256xbf16>, vector<96x256xf32> -> vector<96x256xf32>
    %c0_158 = arith.constant 0 : index
    %c0_159 = arith.constant 0 : index
    %299 = vector.load %arg8[%c0_158, %c0_159] : memref<96x1xf32, #tpu.memory_space<vmem>>, vector<96x1xf32>
    %300 = vector.broadcast %299 : vector<96x1xf32> to vector<96x256xf32>
    %301 = arith.addf %298, %300 : vector<96x256xf32>
    %cst_160 = arith.constant 0.000000e+00 : f32
    %302 = vector.broadcast %cst_160 : f32 to vector<96x256xf32>
    %303 = arith.maximumf %301, %302 : vector<96x256xf32>
    %cst_161 = arith.constant 6.000000e+00 : f32
    %304 = vector.broadcast %cst_161 : f32 to vector<96x256xf32>
    %305 = arith.minimumf %303, %304 : vector<96x256xf32>
    %306 = vector.extract_strided_slice %305 {offsets = [0, 0], sizes = [32, 256], strides = [1, 1]} : vector<96x256xf32> to vector<32x256xf32>
    %307 = vector.extract_strided_slice %305 {offsets = [32, 0], sizes = [32, 256], strides = [1, 1]} : vector<96x256xf32> to vector<32x256xf32>
    %308 = arith.addf %306, %307 : vector<32x256xf32>
    %309 = vector.extract_strided_slice %305 {offsets = [64, 0], sizes = [32, 256], strides = [1, 1]} : vector<96x256xf32> to vector<32x256xf32>
    %310 = arith.addf %308, %309 : vector<32x256xf32>
    %c0_162 = arith.constant 0 : index
    %c0_163 = arith.constant 0 : index
    %311 = vector.load %arg9[%c0_162, %c0_163] : memref<32x32xbf16, #tpu.memory_space<vmem>>, vector<32x32xbf16>
    %312 = arith.truncf %310 : vector<32x256xf32> to vector<32x256xbf16>
    %cst_164 = arith.constant dense<0.000000e+00> : vector<32x256xf32>
    %313 = tpu.matmul %311, %312, %cst_164 {dimension_numbers = #tpu.dot_dimension_numbers<[1], [0], [0], [1], [0, 0, 1, 1], [], []>} : vector<32x32xbf16>, vector<32x256xbf16>, vector<32x256xf32> -> vector<32x256xf32>
    %c0_165 = arith.constant 0 : index
    %c0_166 = arith.constant 0 : index
    %314 = vector.load %arg10[%c0_165, %c0_166] : memref<32x1xf32, #tpu.memory_space<vmem>>, vector<32x1xf32>
    %315 = vector.broadcast %314 : vector<32x1xf32> to vector<32x256xf32>
    %316 = arith.addf %313, %315 : vector<32x256xf32>
    %cst_167 = arith.constant 0.000000e+00 : f32
    %317 = vector.broadcast %cst_167 : f32 to vector<32x256xf32>
    %318 = arith.maximumf %316, %317 : vector<32x256xf32>
    %cst_168 = arith.constant 6.000000e+00 : f32
    %319 = vector.broadcast %cst_168 : f32 to vector<32x256xf32>
    %320 = arith.minimumf %318, %319 : vector<32x256xf32>
    %321 = arith.mulf %320, %1 : vector<32x256xf32>
    %322 = arith.truncf %321 : vector<32x256xf32> to vector<32x256xbf16>
    %c0_169 = arith.constant 0 : index
    %c0_170 = arith.constant 0 : index
    %323 = vector.load %arg11[%c0_169, %c0_170] : memref<256x64xbf16, #tpu.memory_space<vmem>>, vector<256x64xbf16>
    %cst_171 = arith.constant dense<0.000000e+00> : vector<32x64xf32>
    %324 = tpu.matmul %322, %323, %cst_171 {dimension_numbers = #tpu.dot_dimension_numbers<[1], [0], [0], [1], [0, 0, 1, 1], [], []>} : vector<32x256xbf16>, vector<256x64xbf16>, vector<32x64xf32> -> vector<32x64xf32>
    %c0_172 = arith.constant 0 : index
    %c0_173 = arith.constant 0 : index
    %325 = vector.load %arg12[%c0_172, %c0_173] : memref<64x32xbf16, #tpu.memory_space<vmem>>, vector<64x32xbf16>
    %326 = arith.truncf %324 : vector<32x64xf32> to vector<32x64xbf16>
    %cst_174 = arith.constant dense<0.000000e+00> : vector<64x64xf32>
    %327 = tpu.matmul %325, %326, %cst_174 {dimension_numbers = #tpu.dot_dimension_numbers<[1], [0], [0], [1], [0, 0, 1, 1], [], []>} : vector<64x32xbf16>, vector<32x64xbf16>, vector<64x64xf32> -> vector<64x64xf32>
    %c0_175 = arith.constant 0 : index
    %c0_176 = arith.constant 0 : index
    %328 = vector.load %arg13[%c0_175, %c0_176] : memref<32x64xbf16, #tpu.memory_space<vmem>>, vector<32x64xbf16>
    %329 = vector.extract_strided_slice %327 {offsets = [0, 0], sizes = [32, 64], strides = [1, 1]} : vector<64x64xf32> to vector<32x64xf32>
    %330 = arith.truncf %329 : vector<32x64xf32> to vector<32x64xbf16>
    %331 = arith.mulf %330, %328 : vector<32x64xbf16>
    %332 = vector.extract_strided_slice %327 {offsets = [32, 0], sizes = [32, 64], strides = [1, 1]} : vector<64x64xf32> to vector<32x64xf32>
    %333 = arith.truncf %332 : vector<32x64xf32> to vector<32x64xbf16>
    %334 = arith.mulf %333, %328 : vector<32x64xbf16>
    %cst_177 = arith.constant dense<0.000000e+00> : vector<64x256xf32>
    %335 = tpu.matmul %331, %2, %cst_177 {dimension_numbers = #tpu.dot_dimension_numbers<[0], [0], [1], [1], [0, 1, 1, 1], [], []>} : vector<32x64xbf16>, vector<32x256xbf16>, vector<64x256xf32> -> vector<64x256xf32>
    %336 = vector.extract_strided_slice %335 {offsets = [0, 0], sizes = [16, 256], strides = [1, 1]} : vector<64x256xf32> to vector<16x256xf32>
    %cst_178 = arith.constant dense<0xFF800000> : vector<256xf32>
    %337 = vector.multi_reduction <maximumf>, %336, %cst_178 [0] : vector<16x256xf32> to vector<256xf32>
    %338 = vector.shape_cast %337 : vector<256xf32> to vector<1x256xf32>
    %339 = vector.broadcast %338 : vector<1x256xf32> to vector<16x256xf32>
    %340 = arith.subf %336, %339 : vector<16x256xf32>
    %341 = math.exp %340 : vector<16x256xf32>
    %cst_179 = arith.constant dense<0.000000e+00> : vector<256xf32>
    %342 = vector.multi_reduction <add>, %341, %cst_179 [0] : vector<16x256xf32> to vector<256xf32>
    %343 = vector.shape_cast %342 : vector<256xf32> to vector<1x256xf32>
    %344 = tpu.reciprocal %343 {approx = true} : vector<1x256xf32> -> vector<1x256xf32>
    %345 = vector.broadcast %344 : vector<1x256xf32> to vector<16x256xf32>
    %346 = arith.mulf %341, %345 : vector<16x256xf32>
    %347 = arith.truncf %346 : vector<16x256xf32> to vector<16x256xbf16>
    %348 = vector.extract_strided_slice %335 {offsets = [16, 0], sizes = [16, 256], strides = [1, 1]} : vector<64x256xf32> to vector<16x256xf32>
    %cst_180 = arith.constant dense<0xFF800000> : vector<256xf32>
    %349 = vector.multi_reduction <maximumf>, %348, %cst_180 [0] : vector<16x256xf32> to vector<256xf32>
    %350 = vector.shape_cast %349 : vector<256xf32> to vector<1x256xf32>
    %351 = vector.broadcast %350 : vector<1x256xf32> to vector<16x256xf32>
    %352 = arith.subf %348, %351 : vector<16x256xf32>
    %353 = math.exp %352 : vector<16x256xf32>
    %cst_181 = arith.constant dense<0.000000e+00> : vector<256xf32>
    %354 = vector.multi_reduction <add>, %353, %cst_181 [0] : vector<16x256xf32> to vector<256xf32>
    %355 = vector.shape_cast %354 : vector<256xf32> to vector<1x256xf32>
    %356 = tpu.reciprocal %355 {approx = true} : vector<1x256xf32> -> vector<1x256xf32>
    %357 = vector.broadcast %356 : vector<1x256xf32> to vector<16x256xf32>
    %358 = arith.mulf %353, %357 : vector<16x256xf32>
    %359 = arith.truncf %358 : vector<16x256xf32> to vector<16x256xbf16>
    %360 = vector.extract_strided_slice %335 {offsets = [32, 0], sizes = [16, 256], strides = [1, 1]} : vector<64x256xf32> to vector<16x256xf32>
    %cst_182 = arith.constant dense<0xFF800000> : vector<256xf32>
    %361 = vector.multi_reduction <maximumf>, %360, %cst_182 [0] : vector<16x256xf32> to vector<256xf32>
    %362 = vector.shape_cast %361 : vector<256xf32> to vector<1x256xf32>
    %363 = vector.broadcast %362 : vector<1x256xf32> to vector<16x256xf32>
    %364 = arith.subf %360, %363 : vector<16x256xf32>
    %365 = math.exp %364 : vector<16x256xf32>
    %cst_183 = arith.constant dense<0.000000e+00> : vector<256xf32>
    %366 = vector.multi_reduction <add>, %365, %cst_183 [0] : vector<16x256xf32> to vector<256xf32>
    %367 = vector.shape_cast %366 : vector<256xf32> to vector<1x256xf32>
    %368 = tpu.reciprocal %367 {approx = true} : vector<1x256xf32> -> vector<1x256xf32>
    %369 = vector.broadcast %368 : vector<1x256xf32> to vector<16x256xf32>
    %370 = arith.mulf %365, %369 : vector<16x256xf32>
    %371 = arith.truncf %370 : vector<16x256xf32> to vector<16x256xbf16>
    %372 = vector.extract_strided_slice %335 {offsets = [48, 0], sizes = [16, 256], strides = [1, 1]} : vector<64x256xf32> to vector<16x256xf32>
    %cst_184 = arith.constant dense<0xFF800000> : vector<256xf32>
    %373 = vector.multi_reduction <maximumf>, %372, %cst_184 [0] : vector<16x256xf32> to vector<256xf32>
    %374 = vector.shape_cast %373 : vector<256xf32> to vector<1x256xf32>
    %375 = vector.broadcast %374 : vector<1x256xf32> to vector<16x256xf32>
    %376 = arith.subf %372, %375 : vector<16x256xf32>
    %377 = math.exp %376 : vector<16x256xf32>
    %cst_185 = arith.constant dense<0.000000e+00> : vector<256xf32>
    %378 = vector.multi_reduction <add>, %377, %cst_185 [0] : vector<16x256xf32> to vector<256xf32>
    %379 = vector.shape_cast %378 : vector<256xf32> to vector<1x256xf32>
    %380 = tpu.reciprocal %379 {approx = true} : vector<1x256xf32> -> vector<1x256xf32>
    %381 = vector.broadcast %380 : vector<1x256xf32> to vector<16x256xf32>
    %382 = arith.mulf %377, %381 : vector<16x256xf32>
    %383 = arith.truncf %382 : vector<16x256xf32> to vector<16x256xbf16>
    %384 = tpu.concatenate %347, %359, %371, %383 in 0 : vector<16x256xbf16>, vector<16x256xbf16>, vector<16x256xbf16>, vector<16x256xbf16> -> vector<64x256xbf16>
    %cst_186 = arith.constant dense<0.000000e+00> : vector<32x256xf32>
    %385 = tpu.matmul %334, %384, %cst_186 {dimension_numbers = #tpu.dot_dimension_numbers<[1], [0], [0], [1], [0, 0, 1, 1], [], []>} : vector<32x64xbf16>, vector<64x256xbf16>, vector<32x256xf32> -> vector<32x256xf32>
    %cst_187 = arith.constant dense<0.000000e+00> : vector<32xf32>
    %386 = vector.multi_reduction <add>, %1, %cst_187 [1] : vector<32x256xf32> to vector<32xf32>
    %387 = vector.shape_cast %386 : vector<32xf32> to vector<32x1xf32>
    %cst_188 = arith.constant 3.906250e-03 : f32
    %388 = vector.broadcast %cst_188 : f32 to vector<32x1xf32>
    %389 = arith.mulf %387, %388 : vector<32x1xf32>
    %c0_189 = arith.constant 0 : index
    %c0_190 = arith.constant 0 : index
    %390 = vector.load %arg14[%c0_189, %c0_190] : memref<8x32xf32, #tpu.memory_space<vmem>>, vector<8x32xf32>
    %cst_191 = arith.constant dense<0.000000e+00> : vector<8x1xf32>
    %391 = tpu.matmul %390, %389, %cst_191 {dimension_numbers = #tpu.dot_dimension_numbers<[1], [0], [0], [1], [0, 0, 1, 1], [], []>} : vector<8x32xf32>, vector<32x1xf32>, vector<8x1xf32> -> vector<8x1xf32>
    %c0_192 = arith.constant 0 : index
    %c0_193 = arith.constant 0 : index
    %392 = vector.load %arg15[%c0_192, %c0_193] : memref<8x1xf32, #tpu.memory_space<vmem>>, vector<8x1xf32>
    %393 = arith.addf %391, %392 : vector<8x1xf32>
    %cst_194 = arith.constant 0.000000e+00 : f32
    %394 = vector.broadcast %cst_194 : f32 to vector<8x1xf32>
    %395 = arith.maximumf %393, %394 : vector<8x1xf32>
    %cst_195 = arith.constant 6.000000e+00 : f32
    %396 = vector.broadcast %cst_195 : f32 to vector<8x1xf32>
    %397 = arith.minimumf %395, %396 : vector<8x1xf32>
    %c0_196 = arith.constant 0 : index
    %c0_197 = arith.constant 0 : index
    %398 = vector.load %arg16[%c0_196, %c0_197] : memref<32x8xf32, #tpu.memory_space<vmem>>, vector<32x8xf32>
    %cst_198 = arith.constant dense<0.000000e+00> : vector<32x1xf32>
    %399 = tpu.matmul %398, %397, %cst_198 {dimension_numbers = #tpu.dot_dimension_numbers<[1], [0], [0], [1], [0, 0, 1, 1], [], []>} : vector<32x8xf32>, vector<8x1xf32>, vector<32x1xf32> -> vector<32x1xf32>
    %c0_199 = arith.constant 0 : index
    %c0_200 = arith.constant 0 : index
    %400 = vector.load %arg17[%c0_199, %c0_200] : memref<32x1xf32, #tpu.memory_space<vmem>>, vector<32x1xf32>
    %401 = arith.addf %399, %400 : vector<32x1xf32>
    %cst_201 = arith.constant 0.000000e+00 : f32
    %402 = vector.broadcast %cst_201 : f32 to vector<32x1xf32>
    %403 = arith.subf %402, %401 : vector<32x1xf32>
    %404 = math.exp %403 : vector<32x1xf32>
    %cst_202 = arith.constant 1.000000e+00 : f32
    %405 = vector.broadcast %cst_202 : f32 to vector<32x1xf32>
    %406 = arith.addf %405, %404 : vector<32x1xf32>
    %cst_203 = arith.constant 1.000000e+00 : f32
    %407 = vector.broadcast %cst_203 : f32 to vector<32x1xf32>
    %408 = arith.divf %407, %406 : vector<32x1xf32>
    %409 = vector.broadcast %408 : vector<32x1xf32> to vector<32x256xf32>
    %410 = arith.mulf %409, %1 : vector<32x256xf32>
    %411 = arith.addf %385, %410 : vector<32x256xf32>
    %c0_204 = arith.constant 0 : index
    %c0_205 = arith.constant 0 : index
    %c0_206 = arith.constant 0 : index
    %412 = vector.load %arg18[%c0_204, %c0_205, %c0_206] : memref<1x32x256xf32, #tpu.memory_space<vmem>>, vector<1x32x256xf32>
    %413 = vector.shape_cast %412 : vector<1x32x256xf32> to vector<32x256xf32>
    %414 = vector.shape_cast %411 : vector<32x256xf32> to vector<1x32x256xf32>
    tpu.vector_store %arg18[%c0_204, %c0_205, %c0_206], %414 {strides = array<i32>} : memref<1x32x256xf32, #tpu.memory_space<vmem>>, vector<1x32x256xf32>,
    return
  }
  func.func @transform_0(%arg0: i32) -> (i32, i32, i32) {
    %c0_i32 = arith.constant 0 : i32
    %c0_i32_0 = arith.constant 0 : i32
    %c0_i32_1 = arith.constant 0 : i32
    return %arg0, %c0_i32, %c0_i32_0 : i32, i32, i32
  }
  func.func @transform_1(%arg0: i32) -> (i32, i32) {
    %c0_i32 = arith.constant 0 : i32
    %c0_i32_0 = arith.constant 0 : i32
    %c0_i32_1 = arith.constant 0 : i32
    return %c0_i32, %c0_i32_0 : i32, i32
  }
  func.func @transform_2(%arg0: i32) -> (i32, i32) {
    %c0_i32 = arith.constant 0 : i32
    %c0_i32_0 = arith.constant 0 : i32
    %c0_i32_1 = arith.constant 0 : i32
    return %c0_i32, %c0_i32_0 : i32, i32
  }
  func.func @transform_3(%arg0: i32) -> (i32, i32, i32) {
    %c0_i32 = arith.constant 0 : i32
    %c0_i32_0 = arith.constant 0 : i32
    %c0_i32_1 = arith.constant 0 : i32
    %c0_i32_2 = arith.constant 0 : i32
    return %c0_i32, %c0_i32_0, %c0_i32_1 : i32, i32, i32
  }
  func.func @transform_4(%arg0: i32) -> (i32, i32, i32) {
    %c0_i32 = arith.constant 0 : i32
    %c0_i32_0 = arith.constant 0 : i32
    %c0_i32_1 = arith.constant 0 : i32
    %c0_i32_2 = arith.constant 0 : i32
    return %c0_i32, %c0_i32_0, %c0_i32_1 : i32, i32, i32
  }
  func.func @transform_5(%arg0: i32) -> (i32, i32) {
    %c0_i32 = arith.constant 0 : i32
    %c0_i32_0 = arith.constant 0 : i32
    %c0_i32_1 = arith.constant 0 : i32
    return %c0_i32, %c0_i32_0 : i32, i32
  }
  func.func @transform_6(%arg0: i32) -> (i32, i32) {
    %c0_i32 = arith.constant 0 : i32
    %c0_i32_0 = arith.constant 0 : i32
    %c0_i32_1 = arith.constant 0 : i32
    return %c0_i32, %c0_i32_0 : i32, i32
  }
  func.func @transform_7(%arg0: i32) -> (i32, i32) {
    %c0_i32 = arith.constant 0 : i32
    %c0_i32_0 = arith.constant 0 : i32
    %c0_i32_1 = arith.constant 0 : i32
    return %c0_i32, %c0_i32_0 : i32, i32
  }
  func.func @transform_8(%arg0: i32) -> (i32, i32) {
    %c0_i32 = arith.constant 0 : i32
    %c0_i32_0 = arith.constant 0 : i32
    %c0_i32_1 = arith.constant 0 : i32
    return %c0_i32, %c0_i32_0 : i32, i32
  }
  func.func @transform_9(%arg0: i32) -> (i32, i32) {
    %c0_i32 = arith.constant 0 : i32
    %c0_i32_0 = arith.constant 0 : i32
    %c0_i32_1 = arith.constant 0 : i32
    return %c0_i32, %c0_i32_0 : i32, i32
  }
  func.func @transform_10(%arg0: i32) -> (i32, i32) {
    %c0_i32 = arith.constant 0 : i32
    %c0_i32_0 = arith.constant 0 : i32
    %c0_i32_1 = arith.constant 0 : i32
    return %c0_i32, %c0_i32_0 : i32, i32
  }
  func.func @transform_11(%arg0: i32) -> (i32, i32) {
    %c0_i32 = arith.constant 0 : i32
    %c0_i32_0 = arith.constant 0 : i32
    %c0_i32_1 = arith.constant 0 : i32
    return %c0_i32, %c0_i32_0 : i32, i32
  }
  func.func @transform_12(%arg0: i32) -> (i32, i32) {
    %c0_i32 = arith.constant 0 : i32
    %c0_i32_0 = arith.constant 0 : i32
    %c0_i32_1 = arith.constant 0 : i32
    return %c0_i32, %c0_i32_0 : i32, i32
  }
  func.func @transform_13(%arg0: i32) -> (i32, i32) {
    %c0_i32 = arith.constant 0 : i32
    %c0_i32_0 = arith.constant 0 : i32
    %c0_i32_1 = arith.constant 0 : i32
    return %c0_i32, %c0_i32_0 : i32, i32
  }
  func.func @transform_14(%arg0: i32) -> (i32, i32) {
    %c0_i32 = arith.constant 0 : i32
    %c0_i32_0 = arith.constant 0 : i32
    %c0_i32_1 = arith.constant 0 : i32
    return %c0_i32, %c0_i32_0 : i32, i32
  }
  func.func @transform_15(%arg0: i32) -> (i32, i32) {
    %c0_i32 = arith.constant 0 : i32
    %c0_i32_0 = arith.constant 0 : i32
    %c0_i32_1 = arith.constant 0 : i32
    return %c0_i32, %c0_i32_0 : i32, i32
  }
  func.func @transform_16(%arg0: i32) -> (i32, i32) {
    %c0_i32 = arith.constant 0 : i32
    %c0_i32_0 = arith.constant 0 : i32
    %c0_i32_1 = arith.constant 0 : i32
    return %c0_i32, %c0_i32_0 : i32, i32
  }
  func.func @transform_17(%arg0: i32) -> (i32, i32, i32) {
    %c0_i32 = arith.constant 0 : i32
    %c0_i32_0 = arith.constant 0 : i32
    %c0_i32_1 = arith.constant 0 : i32
    return %arg0, %c0_i32, %c0_i32_0 : i32, i32, i32
  }
}

</mosaic_0001>

<llo_original>
// kernel: tpu_custom_call.1
$region0: #{tpu_custom_call.1}
  #allocation0 [shape = 'u32[]', space=smem, size = 0x4, offset = 0x4, fixed_abs, tag = 'smem constant byte address 0x4 - core index']
  #allocation1 [shape = 'u32[144,128]{1,0:T(1,128)}', space=vmem, size = 0x12000, scoped, tag = 'internal scratch']
  #allocation2 [shape = 'f32[8,512]{1,0:T(8,128)}', space=vmem, size = 0x4000, scoped, tag = 'scratch operand']
  %s0 = inlined_call_operand.vmem [shape: f32[2,32,256], index: 0, kind: input, shape index: {}]
  %s1 = inlined_call_operand.vmem [shape: bf16[8,32], index: 1, kind: input, shape index: {}]
  %s2 = inlined_call_operand.vmem [shape: f32[8,1], index: 2, kind: input, shape index: {}]
  %s3 = inlined_call_operand.vmem [shape: f32[27,8,1], index: 3, kind: input, shape index: {}]
  %s4 = inlined_call_operand.vmem [shape: f32[3,8,1], index: 4, kind: input, shape index: {}]
  %s5 = inlined_call_operand.vmem [shape: f32[9,256], index: 5, kind: input, shape index: {}]
  %s6 = inlined_call_operand.vmem [shape: bf16[96,24], index: 6, kind: input, shape index: {}]
  %s7 = inlined_call_operand.vmem [shape: f32[96,1], index: 7, kind: input, shape index: {}]
  %s8 = inlined_call_operand.vmem [shape: bf16[32,32], index: 8, kind: input, shape index: {}]
  %s9 = inlined_call_operand.vmem [shape: f32[32,1], index: 9, kind: input, shape index: {}]
  %s10 = inlined_call_operand.vmem [shape: bf16[256,64], index: 10, kind: input, shape index: {}]
  %s11 = inlined_call_operand.vmem [shape: bf16[64,32], index: 11, kind: input, shape index: {}]
  %s12 = inlined_call_operand.vmem [shape: bf16[32,64], index: 12, kind: input, shape index: {}]
  %s13 = inlined_call_operand.vmem [shape: f32[8,32], index: 13, kind: input, shape index: {}]
  %s14 = inlined_call_operand.vmem [shape: f32[8,1], index: 14, kind: input, shape index: {}]
  %s15 = inlined_call_operand.vmem [shape: f32[32,8], index: 15, kind: input, shape index: {}]
  %s16 = inlined_call_operand.vmem [shape: f32[32,1], index: 16, kind: input, shape index: {}]
  %s17 = inlined_call_operand.hbm [shape: f32[2,32,256], index: 17, kind: output, shape index: {}]
  %s18 = sld [smem:[#allocation0]]
  $region101: #{tpu_custom_call.1} parent=0
    _
  %s20 = ssub.s32 1, %s18
  %s21 = scalar_select 0, %s20, %s18
  $region1: #{tpu_custom_call.1} parent=0
    #allocation3 [shape = 'u8[65536]{0}', space=vmem, size = 0x10000, scoped, tag = 'output window, operand 0']
    #allocation4 [shape = 's32[2]{0}', space=sflag, size = 0x8, scoped, tag = 'scoped memory for tpu_custom_call.1']
    %22 = vsyncpa [#allocation4], 0
    %s23 = scalar_lea.sflag [#allocation4], 1
    %24 = vsyncpa %s23, 0
    loop: start=0, step=1, limit=4
    $region2: #{tpu_custom_call.1} parent=1 // loop_pre_header
      _
    $region3: #{tpu_custom_call.1} parent=1 // loop_header
      %s26 = sphi 0, %s30
      %p27 = scmp.ge.s32.totalorder %s26, 4
      %s36 = sphi 0, %s38
      %s39 = sphi 0, %s36
      %s40 = sphi 0, %s39
      %s56 = sphi 0, %s40
      %s60 = sphi 0, %s60
      %s62 = sphi 0, %s60
      %s63 = sphi 0, %s62
      %s77 = sphi 0, %s63
      %s81 = sphi 0, %s81
      %s83 = sphi 0, %s81
      %s84 = sphi 0, %s83
      %s98 = sphi 0, %s84
      %s102 = sphi 0, %s102
      %s104 = sphi 0, %s102
      %s105 = sphi 0, %s104
      %s119 = sphi 0, %s105
      %s123 = sphi 0, %s123
      %s125 = sphi 0, %s123
      %s126 = sphi 0, %s125
      %s140 = sphi 0, %s126
      %s144 = sphi 0, %s144
      %s146 = sphi 0, %s144
      %s147 = sphi 0, %s146
      %s161 = sphi 0, %s147
      %s165 = sphi 0, %s165
      %s167 = sphi 0, %s165
      %s168 = sphi 0, %s167
      %s182 = sphi 0, %s168
      %s186 = sphi 0, %s186
      %s188 = sphi 0, %s186
      %s189 = sphi 0, %s188
      %s203 = sphi 0, %s189
      %s207 = sphi 0, %s207
      %s209 = sphi 0, %s207
      %s210 = sphi 0, %s209
      %s224 = sphi 0, %s210
      %s228 = sphi 0, %s228
      %s230 = sphi 0, %s228
      %s231 = sphi 0, %s230
      %s245 = sphi 0, %s231
      %s249 = sphi 0, %s249
      %s251 = sphi 0, %s249
      %s252 = sphi 0, %s251
      %s266 = sphi 0, %s252
      %s270 = sphi 0, %s270
      %s272 = sphi 0, %s270
      %s273 = sphi 0, %s272
      %s287 = sphi 0, %s273
      %s291 = sphi 0, %s291
      %s293 = sphi 0, %s291
      %s294 = sphi 0, %s293
      %s308 = sphi 0, %s294
      %s312 = sphi 0, %s312
      %s314 = sphi 0, %s312
      %s315 = sphi 0, %s314
      %s329 = sphi 0, %s315
      %s333 = sphi 0, %s333
      %s335 = sphi 0, %s333
      %s336 = sphi 0, %s335
      %s350 = sphi 0, %s336
      %s354 = sphi 0, %s354
      %s356 = sphi 0, %s354
      %s357 = sphi 0, %s356
      %s371 = sphi 0, %s357
      %s375 = sphi 0, %s375
      %s377 = sphi 0, %s375
      %s378 = sphi 0, %s377
      %s392 = sphi 0, %s378
      %s398 = sphi 0, %s400
      %s401 = sphi 0, %s398
      %s402 = sphi 0, %s401
      %s418 = sphi 0, %s402
    $region4: #{tpu_custom_call.1} parent=1 // loop_header_branch
      %29 = sbr.rel (%p27) target = $region8
    $region5: #{tpu_custom_call.1} parent=1 // loop_body
      %s31 = ssub.s32 %s26, 1
      %s32 = ssub.s32 %s26, 2
      %s33 = sadd.s32 %s26, 1
      %s34 = ssub.s32 %s26, %s33
      %p35 = scmp.eq.s32.totalorder %s34, 0
      %s37 = sadd.s32 %s36, 1
      %s38 = scalar_select %p35, %s36, %s37
      %p41 = pneg %p35
      %p42 = scmp.eq.s32.totalorder %s26, 1
      %p43 = por %p41, %p42
      %p44 = scmp.ne.s32.totalorder %s36, %s39
      %p45 = scmp.eq.s32.totalorder %s26, 0
      %p46 = por %p44, %p45
      %p47 = scmp.ne.s32.totalorder %s36, %s39
      %p48 = scmp.eq.s32.totalorder %s31, 1
      %p49 = por %p47, %p48
      %p50 = scmp.ne.s32.totalorder %s39, %s40
      %p51 = scmp.eq.s32.totalorder %s31, 0
      %p52 = por %p50, %p51
      %p53 = scmp.ne.s32.totalorder %s39, %s40
      %p54 = scmp.eq.s32.totalorder %s32, 1
      %p55 = por %p53, %p54
      %p57 = scmp.ne.s32.totalorder %s40, %s56
      %p58 = scmp.eq.s32.totalorder %s32, 0
      %p59 = por %p57, %p58
      %s61 = sadd.s32 %s60, 1
      %p64 = scmp.eq.s32.totalorder %s26, 1
      %p65 = scmp.ne.s32.totalorder %s60, %s62
      %p66 = scmp.eq.s32.totalorder %s26, 0
      %p67 = por %p65, %p66
      %p68 = scmp.ne.s32.totalorder %s60, %s62
      %p69 = scmp.eq.s32.totalorder %s31, 1
      %p70 = por %p68, %p69
      %p71 = scmp.ne.s32.totalorder %s62, %s63
      %p72 = scmp.eq.s32.totalorder %s31, 0
      %p73 = por %p71, %p72
      %p74 = scmp.ne.s32.totalorder %s62, %s63
      %p75 = scmp.eq.s32.totalorder %s32, 1
      %p76 = por %p74, %p75
      %p78 = scmp.ne.s32.totalorder %s63, %s77
      %p79 = scmp.eq.s32.totalorder %s32, 0
      %p80 = por %p78, %p79
      %s82 = sadd.s32 %s81, 1
      %p85 = scmp.eq.s32.totalorder %s26, 1
      %p86 = scmp.ne.s32.totalorder %s81, %s83
      %p87 = scmp.eq.s32.totalorder %s26, 0
      %p88 = por %p86, %p87
      %p89 = scmp.ne.s32.totalorder %s81, %s83
      %p90 = scmp.eq.s32.totalorder %s31, 1
      %p91 = por %p89, %p90
      %p92 = scmp.ne.s32.totalorder %s83, %s84
      %p93 = scmp.eq.s32.totalorder %s31, 0
      %p94 = por %p92, %p93
      %p95 = scmp.ne.s32.totalorder %s83, %s84
      %p96 = scmp.eq.s32.totalorder %s32, 1
      %p97 = por %p95, %p96
      %p99 = scmp.ne.s32.totalorder %s84, %s98
      %p100 = scmp.eq.s32.totalorder %s32, 0
      %p101 = por %p99, %p100
      %s103 = sadd.s32 %s102, 1
      %p106 = scmp.eq.s32.totalorder %s26, 1
      %p107 = scmp.ne.s32.totalorder %s102, %s104
      %p108 = scmp.eq.s32.totalorder %s26, 0
      %p109 = por %p107, %p108
      %p110 = scmp.ne.s32.totalorder %s102, %s104
      %p111 = scmp.eq.s32.totalorder %s31, 1
      %p112 = por %p110, %p111
      %p113 = scmp.ne.s32.totalorder %s104, %s105
      %p114 = scmp.eq.s32.totalorder %s31, 0
      %p115 = por %p113, %p114
      %p116 = scmp.ne.s32.totalorder %s104, %s105
      %p117 = scmp.eq.s32.totalorder %s32, 1
      %p118 = por %p116, %p117
      %p120 = scmp.ne.s32.totalorder %s105, %s119
      %p121 = scmp.eq.s32.totalorder %s32, 0
      %p122 = por %p120, %p121
      %s124 = sadd.s32 %s123, 1
      %p127 = scmp.eq.s32.totalorder %s26, 1
      %p128 = scmp.ne.s32.totalorder %s123, %s125
      %p129 = scmp.eq.s32.totalorder %s26, 0
      %p130 = por %p128, %p129
      %p131 = scmp.ne.s32.totalorder %s123, %s125
      %p132 = scmp.eq.s32.totalorder %s31, 1
      %p133 = por %p131, %p132
      %p134 = scmp.ne.s32.totalorder %s125, %s126
      %p135 = scmp.eq.s32.totalorder %s31, 0
      %p136 = por %p134, %p135
      %p137 = scmp.ne.s32.totalorder %s125, %s126
      %p138 = scmp.eq.s32.totalorder %s32, 1
      %p139 = por %p137, %p138
      %p141 = scmp.ne.s32.totalorder %s126, %s140
      %p142 = scmp.eq.s32.totalorder %s32, 0
      %p143 = por %p141, %p142
      %s145 = sadd.s32 %s144, 1
      %p148 = scmp.eq.s32.totalorder %s26, 1
      %p149 = scmp.ne.s32.totalorder %s144, %s146
      %p150 = scmp.eq.s32.totalorder %s26, 0
      %p151 = por %p149, %p150
      %p152 = scmp.ne.s32.totalorder %s144, %s146
      %p153 = scmp.eq.s32.totalorder %s31, 1
      %p154 = por %p152, %p153
      %p155 = scmp.ne.s32.totalorder %s146, %s147
      %p156 = scmp.eq.s32.totalorder %s31, 0
      %p157 = por %p155, %p156
      %p158 = scmp.ne.s32.totalorder %s146, %s147
      %p159 = scmp.eq.s32.totalorder %s32, 1
      %p160 = por %p158, %p159
      %p162 = scmp.ne.s32.totalorder %s147, %s161
      %p163 = scmp.eq.s32.totalorder %s32, 0
      %p164 = por %p162, %p163
      %s166 = sadd.s32 %s165, 1
      %p169 = scmp.eq.s32.totalorder %s26, 1
      %p170 = scmp.ne.s32.totalorder %s165, %s167
      %p171 = scmp.eq.s32.totalorder %s26, 0
      %p172 = por %p170, %p171
      %p173 = scmp.ne.s32.totalorder %s165, %s167
      %p174 = scmp.eq.s32.totalorder %s31, 1
      %p175 = por %p173, %p174
      %p176 = scmp.ne.s32.totalorder %s167, %s168
      %p177 = scmp.eq.s32.totalorder %s31, 0
      %p178 = por %p176, %p177
      %p179 = scmp.ne.s32.totalorder %s167, %s168
      %p180 = scmp.eq.s32.totalorder %s32, 1
      %p181 = por %p179, %p180
      %p183 = scmp.ne.s32.totalorder %s168, %s182
      %p184 = scmp.eq.s32.totalorder %s32, 0
      %p185 = por %p183, %p184
      %s187 = sadd.s32 %s186, 1
      %p190 = scmp.eq.s32.totalorder %s26, 1
      %p191 = scmp.ne.s32.totalorder %s186, %s188
      %p192 = scmp.eq.s32.totalorder %s26, 0
      %p193 = por %p191, %p192
      %p194 = scmp.ne.s32.totalorder %s186, %s188
      %p195 = scmp.eq.s32.totalorder %s31, 1
      %p196 = por %p194, %p195
      %p197 = scmp.ne.s32.totalorder %s188, %s189
      %p198 = scmp.eq.s32.totalorder %s31, 0
      %p199 = por %p197, %p198
      %p200 = scmp.ne.s32.totalorder %s188, %s189
      %p201 = scmp.eq.s32.totalorder %s32, 1
      %p202 = por %p200, %p201
      %p204 = scmp.ne.s32.totalorder %s189, %s203
      %p205 = scmp.eq.s32.totalorder %s32, 0
      %p206 = por %p204, %p205
      %s208 = sadd.s32 %s207, 1
      %p211 = scmp.eq.s32.totalorder %s26, 1
      %p212 = scmp.ne.s32.totalorder %s207, %s209
      %p213 = scmp.eq.s32.totalorder %s26, 0
      %p214 = por %p212, %p213
      %p215 = scmp.ne.s32.totalorder %s207, %s209
      %p216 = scmp.eq.s32.totalorder %s31, 1
      %p217 = por %p215, %p216
      %p218 = scmp.ne.s32.totalorder %s209, %s210
      %p219 = scmp.eq.s32.totalorder %s31, 0
      %p220 = por %p218, %p219
      %p221 = scmp.ne.s32.totalorder %s209, %s210
      %p222 = scmp.eq.s32.totalorder %s32, 1
      %p223 = por %p221, %p222
      %p225 = scmp.ne.s32.totalorder %s210, %s224
      %p226 = scmp.eq.s32.totalorder %s32, 0
      %p227 = por %p225, %p226
      %s229 = sadd.s32 %s228, 1
      %p232 = scmp.eq.s32.totalorder %s26, 1
      %p233 = scmp.ne.s32.totalorder %s228, %s230
      %p234 = scmp.eq.s32.totalorder %s26, 0
      %p235 = por %p233, %p234
      %p236 = scmp.ne.s32.totalorder %s228, %s230
      %p237 = scmp.eq.s32.totalorder %s31, 1
      %p238 = por %p236, %p237
      %p239 = scmp.ne.s32.totalorder %s230, %s231
      %p240 = scmp.eq.s32.totalorder %s31, 0
      %p241 = por %p239, %p240
      %p242 = scmp.ne.s32.totalorder %s230, %s231
      %p243 = scmp.eq.s32.totalorder %s32, 1
      %p244 = por %p242, %p243
      %p246 = scmp.ne.s32.totalorder %s231, %s245
      %p247 = scmp.eq.s32.totalorder %s32, 0
      %p248 = por %p246, %p247
      %s250 = sadd.s32 %s249, 1
      %p253 = scmp.eq.s32.totalorder %s26, 1
      %p254 = scmp.ne.s32.totalorder %s249, %s251
      %p255 = scmp.eq.s32.totalorder %s26, 0
      %p256 = por %p254, %p255
      %p257 = scmp.ne.s32.totalorder %s249, %s251
      %p258 = scmp.eq.s32.totalorder %s31, 1
      %p259 = por %p257, %p258
      %p260 = scmp.ne.s32.totalorder %s251, %s252
      %p261 = scmp.eq.s32.totalorder %s31, 0
      %p262 = por %p260, %p261
      %p263 = scmp.ne.s32.totalorder %s251, %s252
      %p264 = scmp.eq.s32.totalorder %s32, 1
      %p265 = por %p263, %p264
      %p267 = scmp.ne.s32.totalorder %s252, %s266
      %p268 = scmp.eq.s32.totalorder %s32, 0
      %p269 = por %p267, %p268
      %s271 = sadd.s32 %s270, 1
      %p274 = scmp.eq.s32.totalorder %s26, 1
      %p275 = scmp.ne.s32.totalorder %s270, %s272
      %p276 = scmp.eq.s32.totalorder %s26, 0
      %p277 = por %p275, %p276
      %p278 = scmp.ne.s32.totalorder %s270, %s272
      %p279 = scmp.eq.s32.totalorder %s31, 1
      %p280 = por %p278, %p279
      %p281 = scmp.ne.s32.totalorder %s272, %s273
      %p282 = scmp.eq.s32.totalorder %s31, 0
      %p283 = por %p281, %p282
      %p284 = scmp.ne.s32.totalorder %s272, %s273
      %p285 = scmp.eq.s32.totalorder %s32, 1
      %p286 = por %p284, %p285
      %p288 = scmp.ne.s32.totalorder %s273, %s287
      %p289 = scmp.eq.s32.totalorder %s32, 0
      %p290 = por %p288, %p289
      %s292 = sadd.s32 %s291, 1
      %p295 = scmp.eq.s32.totalorder %s26, 1
      %p296 = scmp.ne.s32.totalorder %s291, %s293
      %p297 = scmp.eq.s32.totalorder %s26, 0
      %p298 = por %p296, %p297
      %p299 = scmp.ne.s32.totalorder %s291, %s293
      %p300 = scmp.eq.s32.totalorder %s31, 1
      %p301 = por %p299, %p300
      %p302 = scmp.ne.s32.totalorder %s293, %s294
      %p303 = scmp.eq.s32.totalorder %s31, 0
      %p304 = por %p302, %p303
      %p305 = scmp.ne.s32.totalorder %s293, %s294
      %p306 = scmp.eq.s32.totalorder %s32, 1
      %p307 = por %p305, %p306
      %p309 = scmp.ne.s32.totalorder %s294, %s308
      %p310 = scmp.eq.s32.totalorder %s32, 0
      %p311 = por %p309, %p310
      %s313 = sadd.s32 %s312, 1
      %p316 = scmp.eq.s32.totalorder %s26, 1
      %p317 = scmp.ne.s32.totalorder %s312, %s314
      %p318 = scmp.eq.s32.totalorder %s26, 0
      %p319 = por %p317, %p318
      %p320 = scmp.ne.s32.totalorder %s312, %s314
      %p321 = scmp.eq.s32.totalorder %s31, 1
      %p322 = por %p320, %p321
      %p323 = scmp.ne.s32.totalorder %s314, %s315
      %p324 = scmp.eq.s32.totalorder %s31, 0
      %p325 = por %p323, %p324
      %p326 = scmp.ne.s32.totalorder %s314, %s315
      %p327 = scmp.eq.s32.totalorder %s32, 1
      %p328 = por %p326, %p327
      %p330 = scmp.ne.s32.totalorder %s315, %s329
      %p331 = scmp.eq.s32.totalorder %s32, 0
      %p332 = por %p330, %p331
      %s334 = sadd.s32 %s333, 1
      %p337 = scmp.eq.s32.totalorder %s26, 1
      %p338 = scmp.ne.s32.totalorder %s333, %s335
      %p339 = scmp.eq.s32.totalorder %s26, 0
      %p340 = por %p338, %p339
      %p341 = scmp.ne.s32.totalorder %s333, %s335
      %p342 = scmp.eq.s32.totalorder %s31, 1
      %p343 = por %p341, %p342
      %p344 = scmp.ne.s32.totalorder %s335, %s336
      %p345 = scmp.eq.s32.totalorder %s31, 0
      %p346 = por %p344, %p345
      %p347 = scmp.ne.s32.totalorder %s335, %s336
      %p348 = scmp.eq.s32.totalorder %s32, 1
      %p349 = por %p347, %p348
      %p351 = scmp.ne.s32.totalorder %s336, %s350
      %p352 = scmp.eq.s32.totalorder %s32, 0
      %p353 = por %p351, %p352
      %s355 = sadd.s32 %s354, 1
      %p358 = scmp.eq.s32.totalorder %s26, 1
      %p359 = scmp.ne.s32.totalorder %s354, %s356
      %p360 = scmp.eq.s32.totalorder %s26, 0
      %p361 = por %p359, %p360
      %p362 = scmp.ne.s32.totalorder %s354, %s356
      %p363 = scmp.eq.s32.totalorder %s31, 1
      %p364 = por %p362, %p363
      %p365 = scmp.ne.s32.totalorder %s356, %s357
      %p366 = scmp.eq.s32.totalorder %s31, 0
      %p367 = por %p365, %p366
      %p368 = scmp.ne.s32.totalorder %s356, %s357
      %p369 = scmp.eq.s32.totalorder %s32, 1
      %p370 = por %p368, %p369
      %p372 = scmp.ne.s32.totalorder %s357, %s371
      %p373 = scmp.eq.s32.totalorder %s32, 0
      %p374 = por %p372, %p373
      %s376 = sadd.s32 %s375, 1
      %p379 = scmp.eq.s32.totalorder %s26, 1
      %p380 = scmp.ne.s32.totalorder %s375, %s377
      %p381 = scmp.eq.s32.totalorder %s26, 0
      %p382 = por %p380, %p381
      %p383 = scmp.ne.s32.totalorder %s375, %s377
      %p384 = scmp.eq.s32.totalorder %s31, 1
      %p385 = por %p383, %p384
      %p386 = scmp.ne.s32.totalorder %s377, %s378
      %p387 = scmp.eq.s32.totalorder %s31, 0
      %p388 = por %p386, %p387
      %p389 = scmp.ne.s32.totalorder %s377, %s378
      %p390 = scmp.eq.s32.totalorder %s32, 1
      %p391 = por %p389, %p390
      %p393 = scmp.ne.s32.totalorder %s378, %s392
      %p394 = scmp.eq.s32.totalorder %s32, 0
      %p395 = por %p393, %p394
      %s396 = ssub.s32 %s26, %s33
      %p397 = scmp.eq.s32.totalorder %s396, 0
      %s399 = sadd.s32 %s398, 1
      %s400 = scalar_select %p397, %s398, %s399
      %p403 = pneg %p397
      %p404 = scmp.eq.s32.totalorder %s26, 1
      %p405 = por %p403, %p404
      %p406 = scmp.ne.s32.totalorder %s398, %s401
      %p407 = scmp.eq.s32.totalorder %s26, 0
      %p408 = por %p406, %p407
      %p409 = scmp.ne.s32.totalorder %s398, %s401
      %p410 = scmp.eq.s32.totalorder %s31, 1
      %p411 = por %p409, %p410
      %p412 = scmp.ne.s32.totalorder %s401, %s402
      %p413 = scmp.eq.s32.totalorder %s31, 0
      %p414 = por %p412, %p413
      %p415 = scmp.ne.s32.totalorder %s401, %s402
      %p416 = scmp.eq.s32.totalorder %s32, 1
      %p417 = por %p415, %p416
      %p419 = scmp.ne.s32.totalorder %s402, %s418
      %p420 = scmp.eq.s32.totalorder %s32, 0
      %p421 = por %p419, %p420
      %p422 = scmp.le.s32.totalorder 1, %s26
      %p423 = scmp.lt.s32.totalorder %s26, 3
      %p424 = pnand %p422, %p423
      %p425 = pneg %p424
      // Predicated region
      $region9: #{tpu_custom_call.1} parent=5 // pred_check
        _
      $region10: #{tpu_custom_call.1} parent=5 // pred_check_branch
        %427 = sbr.rel (%p424) target = $region12
      $region11: #{tpu_custom_call.1} parent=5 // pred_region
        %s428 = ssub.s32 %s26, 1
        // Predicated region
        $region13: #{tpu_custom_call.1} parent=11 // pred_check
          %p429 = pneg %p73
        $region14: #{tpu_custom_call.1} parent=11 // pred_check_branch
          %431 = sbr.rel (%p429) target = $region16
        $region15: #{tpu_custom_call.1} parent=11 // pred_region
          _
        $region16: #{tpu_custom_call.1} parent=11 // pred_fallthru
          _
        // Predicated region
        $region17: #{tpu_custom_call.1} parent=11 // pred_check
          %p432 = pneg %p94
        $region18: #{tpu_custom_call.1} parent=11 // pred_check_branch
          %434 = sbr.rel (%p432) target = $region20
        $region19: #{tpu_custom_call.1} parent=11 // pred_region
          _
        $region20: #{tpu_custom_call.1} parent=11 // pred_fallthru
          _
        // Predicated region
        $region21: #{tpu_custom_call.1} parent=11 // pred_check
          %p435 = pneg %p115
        $region22: #{tpu_custom_call.1} parent=11 // pred_check_branch
          %437 = sbr.rel (%p435) target = $region24
        $region23: #{tpu_custom_call.1} parent=11 // pred_region
          _
        $region24: #{tpu_custom_call.1} parent=11 // pred_fallthru
          _
        // Predicated region
        $region25: #{tpu_custom_call.1} parent=11 // pred_check
          %p438 = pneg %p136
        $region26: #{tpu_custom_call.1} parent=11 // pred_check_branch
          %440 = sbr.rel (%p438) target = $region28
        $region27: #{tpu_custom_call.1} parent=11 // pred_region
          _
        $region28: #{tpu_custom_call.1} parent=11 // pred_fallthru
          _
        // Predicated region
        $region29: #{tpu_custom_call.1} parent=11 // pred_check
          %p441 = pneg %p157
        $region30: #{tpu_custom_call.1} parent=11 // pred_check_branch
          %443 = sbr.rel (%p441) target = $region32
        $region31: #{tpu_custom_call.1} parent=11 // pred_region
          _
        $region32: #{tpu_custom_call.1} parent=11 // pred_fallthru
          _
        // Predicated region
        $region33: #{tpu_custom_call.1} parent=11 // pred_check
          %p444 = pneg %p178
        $region34: #{tpu_custom_call.1} parent=11 // pred_check_branch
          %446 = sbr.rel (%p444) target = $region36
        $region35: #{tpu_custom_call.1} parent=11 // pred_region
          _
        $region36: #{tpu_custom_call.1} parent=11 // pred_fallthru
          _
        // Predicated region
        $region37: #{tpu_custom_call.1} parent=11 // pred_check
          %p447 = pneg %p199
        $region38: #{tpu_custom_call.1} parent=11 // pred_check_branch
          %449 = sbr.rel (%p447) target = $region40
        $region39: #{tpu_custom_call.1} parent=11 // pred_region
          _
        $region40: #{tpu_custom_call.1} parent=11 // pred_fallthru
          _
        // Predicated region
        $region41: #{tpu_custom_call.1} parent=11 // pred_check
          %p450 = pneg %p220
        $region42: #{tpu_custom_call.1} parent=11 // pred_check_branch
          %452 = sbr.rel (%p450) target = $region44
        $region43: #{tpu_custom_call.1} parent=11 // pred_region
          _
        $region44: #{tpu_custom_call.1} parent=11 // pred_fallthru
          _
        // Predicated region
        $region45: #{tpu_custom_call.1} parent=11 // pred_check
          %p453 = pneg %p241
        $region46: #{tpu_custom_call.1} parent=11 // pred_check_branch
          %455 = sbr.rel (%p453) target = $region48
        $region47: #{tpu_custom_call.1} parent=11 // pred_region
          _
        $region48: #{tpu_custom_call.1} parent=11 // pred_fallthru
          _
        // Predicated region
        $region49: #{tpu_custom_call.1} parent=11 // pred_check
          %p456 = pneg %p262
        $region50: #{tpu_custom_call.1} parent=11 // pred_check_branch
          %458 = sbr.rel (%p456) target = $region52
        $region51: #{tpu_custom_call.1} parent=11 // pred_region
          _
        $region52: #{tpu_custom_call.1} parent=11 // pred_fallthru
          _
        // Predicated region
        $region53: #{tpu_custom_call.1} parent=11 // pred_check
          %p459 = pneg %p283
        $region54: #{tpu_custom_call.1} parent=11 // pred_check_branch
          %461 = sbr.rel (%p459) target = $region56
        $region55: #{tpu_custom_call.1} parent=11 // pred_region
          _
        $region56: #{tpu_custom_call.1} parent=11 // pred_fallthru
          _
        // Predicated region
        $region57: #{tpu_custom_call.1} parent=11 // pred_check
          %p462 = pneg %p304
        $region58: #{tpu_custom_call.1} parent=11 // pred_check_branch
          %464 = sbr.rel (%p462) target = $region60
        $region59: #{tpu_custom_call.1} parent=11 // pred_region
          _
        $region60: #{tpu_custom_call.1} parent=11 // pred_fallthru
          _
        // Predicated region
        $region61: #{tpu_custom_call.1} parent=11 // pred_check
          %p465 = pneg %p325
        $region62: #{tpu_custom_call.1} parent=11 // pred_check_branch
          %467 = sbr.rel (%p465) target = $region64
        $region63: #{tpu_custom_call.1} parent=11 // pred_region
          _
        $region64: #{tpu_custom_call.1} parent=11 // pred_fallthru
          _
        // Predicated region
        $region65: #{tpu_custom_call.1} parent=11 // pred_check
          %p468 = pneg %p346
        $region66: #{tpu_custom_call.1} parent=11 // pred_check_branch
          %470 = sbr.rel (%p468) target = $region68
        $region67: #{tpu_custom_call.1} parent=11 // pred_region
          _
        $region68: #{tpu_custom_call.1} parent=11 // pred_fallthru
          _
        // Predicated region
        $region69: #{tpu_custom_call.1} parent=11 // pred_check
          %p471 = pneg %p367
        $region70: #{tpu_custom_call.1} parent=11 // pred_check_branch
          %473 = sbr.rel (%p471) target = $region72
        $region71: #{tpu_custom_call.1} parent=11 // pred_region
          _
        $region72: #{tpu_custom_call.1} parent=11 // pred_fallthru
          _
        // Predicated region
        $region73: #{tpu_custom_call.1} parent=11 // pred_check
          %p474 = pneg %p388
        $region74: #{tpu_custom_call.1} parent=11 // pred_check_branch
          %476 = sbr.rel (%p474) target = $region76
        $region75: #{tpu_custom_call.1} parent=11 // pred_region
          _
        $region76: #{tpu_custom_call.1} parent=11 // pred_fallthru
          _
      $region12: #{tpu_custom_call.1} parent=5 // pred_fallthru
        _
      %p477 = scmp.lt.s32.totalorder %s26, 2
      // Predicated region
      $region77: #{tpu_custom_call.1} parent=5 // pred_check
        %p478 = pneg %p477
      $region78: #{tpu_custom_call.1} parent=5 // pred_check_branch
        %480 = sbr.rel (%p478) target = $region80
      $region79: #{tpu_custom_call.1} parent=5 // pred_region
        // Predicated region
        $region81: #{tpu_custom_call.1} parent=79 // pred_check
          %p481 = pneg %p46
        $region82: #{tpu_custom_call.1} parent=79 // pred_check_branch
          %483 = sbr.rel (%p481) target = $region84
        $region83: #{tpu_custom_call.1} parent=79 // pred_region
          %p484 = scmp.lt.s32.totalorder %s26, 1
          %s485 = scalar_select %p484, %s26, 1
          %s486 = smul.addr %s485, 8
          %s487 = smul.addr %s486, 8
          %s488 = scalar_lea.vmem %s0, %s487
        $region84: #{tpu_custom_call.1} parent=79 // pred_fallthru
          _
      $region80: #{tpu_custom_call.1} parent=5 // pred_fallthru
        _
      %p489 = scmp.le.s32.totalorder 1, %s26
      %p490 = scmp.lt.s32.totalorder %s26, 3
      %p491 = pnand %p489, %p490
      %p492 = pneg %p491
      // Predicated region
      $region85: #{tpu_custom_call.1} parent=5 // pred_check
        _
      $region86: #{tpu_custom_call.1} parent=5 // pred_check_branch
        %494 = sbr.rel (%p491) target = $region88
      $region87: #{tpu_custom_call.1} parent=5 // pred_region
        %s495 = ssub.s32 %s26, 1
        %p496 = scmp.lt.s32.totalorder %s31, 1
        %s497 = scalar_select %p496, %s31, 1
        %s498 = smul.addr %s497, 8
        %s499 = smul.addr %s498, 8
        %s500 = scalar_lea.vmem %s0, %s499
        %p501 = pneg %p52
        %p502 = pneg %p49
        %p503 = pneg %p73
        %p504 = pneg %p70
        %p505 = pneg %p94
        %p506 = pneg %p91
        %p507 = pneg %p115
        %p508 = pneg %p112
        %p509 = pneg %p136
        %p510 = pneg %p133
        %p511 = pneg %p157
        %p512 = pneg %p154
        %p513 = pneg %p178
        %p514 = pneg %p175
        %p515 = pneg %p199
        %p516 = pneg %p196
        %p517 = pneg %p220
        %p518 = pneg %p217
        %p519 = pneg %p241
        %p520 = pneg %p238
        %p521 = pneg %p262
        %p522 = pneg %p259
        %p523 = pneg %p283
        %p524 = pneg %p280
        %p525 = pneg %p304
        %p526 = pneg %p301
        %p527 = pneg %p325
        %p528 = pneg %p322
        %p529 = pneg %p346
        %p530 = pneg %p343
        %p531 = pneg %p367
        %p532 = pneg %p364
        %p533 = pneg %p388
        %p534 = pneg %p385
        %p535 = pneg %p414
        %p536 = pneg %p411
        %s537 = sand.u32 %s401, 1
        %s538 = scalar_lea.sflag [#allocation4], %s537
        %s539 = sand.u32 %s401, 1
        %s540 = smul.addr %s539, 64
        %s541 = scalar_lea.vmem [#allocation3], %s540
        %p542 = scmp.lt.s32.totalorder %s31, 1
        %s543 = scalar_select %p542, %s31, 1
        %s544 = smul.addr %s543, 8
        %s545 = smul.addr %s544, 8
        %s546 = scalar_lea.vmem %s0, %s545
        %v548 = vld [vmem:[%s546] sm:$0xff]
        %v549 = vld [vmem:[%s546 + $0x8] sm:$0xff]
        %v550 = vld [vmem:[%s546 + $0x10] sm:$0xff]
        %v551 = vld [vmem:[%s546 + $0x18] sm:$0xff]
        %v552 = vld [vmem:[%s546 + $0x20] sm:$0xff]
        %v553 = vld [vmem:[%s546 + $0x28] sm:$0xff]
        %v554 = vld [vmem:[%s546 + $0x30] sm:$0xff]
        %v555 = vld [vmem:[%s546 + $0x38] sm:$0xff]
        %v556 = vpack.c.bf16 %v550, %v548
        %v557 = vpack.c.bf16 %v551, %v549
        %v558 = vpack.c.bf16 %v554, %v552
        %v559 = vpack.c.bf16 %v555, %v553
        %v560 = vld [vmem:[%s1] sm:$0xf]
        %v561 = vld [vmem:[%s2] sm:$0xff]
        %563 = vset.pattern.permute.xlu0 0
        %564 = vperm.xlu0 %563, %v561
        %v565 = vpop.permute.xlu0 %564
        %vm567 = vcmask 261120
        %v569 = vsel %vm567, %v560, 0
        %571 = vmatprep.subr.bf16.mxu0 %v557
        %572 = vmatpush1.bf16.msra.mxu0 %v556
        %573 = vmatprep.subr.bf16.mxu0 %v559
        %574 = vmatpush1.bf16.msra.mxu0 %v558
        %575 = vmatprep.subr.bf16.mxu0 0
        %576 = vmatpush1.bf16.msra.mxu0 0
        %577 = vmatprep.subr.bf16.mxu0 0
        %578 = vmatpush1.bf16.msra.mxu0 0
        %579 = vmatprep.subr.bf16.mxu0 0
        %580 = vmatpush1.bf16.msra.mxu0 0
        %581 = vmatprep.subr.bf16.mxu0 0
        %582 = vmatpush1.bf16.msra.mxu0 0
        %583 = vmatprep.subr.bf16.mxu0 0
        %584 = vmatpush1.bf16.msra.mxu0 0
        %585 = vmatprep.subr.bf16.mxu0 0
        %586 = vmatpush1.bf16.msra.mxu0 0
        %587 = vmatprep.subr.bf16.mxu0 0
        %588 = vmatpush1.bf16.msra.mxu0 0
        %589 = vmatprep.subr.bf16.mxu0 0
        %590 = vmatpush1.bf16.msra.mxu0 0
        %591 = vmatprep.subr.bf16.mxu0 0
        %592 = vmatpush1.bf16.msra.mxu0 0
        %593 = vmatprep.subr.bf16.mxu0 0
        %594 = vmatpush1.bf16.msra.mxu0 0
        %595 = vmatprep.subr.bf16.mxu0 0
        %596 = vmatpush1.bf16.msra.mxu0 0
        %597 = vmatprep.subr.bf16.mxu0 0
        %598 = vmatpush1.bf16.msra.mxu0 0
        %599 = vmatprep.subr.bf16.mxu0 0
        %600 = vmatpush1.bf16.msra.mxu0 0
        %601 = vmatprep.subr.bf16.mxu0 0
        %602 = vmatpush1.bf16.msra.mxu0 0
        %603 = vmatprep.mubr.bf16.mxu0 0
        %604 = vmatmul.mubr.bf16.gmra.mrb[0].mxu0 %v569
        %v605 = vpop.f32.mrb[0].mxu0
        %v606 = vadd.f32 %v565, %v605
        %v607 = vpop.f32.mrb[0].mxu0
        %v608 = vadd.f32 %v565, %v607
        %v609 = vpop.f32.mrb[0].mxu0
        %v610 = vpop.f32.mrb[0].mxu0
        %611 = vdwg.mxu0
        %v612 = vmax.f32 %v606, 0.0
        %v613 = vmax.f32 %v608, 0.0
        %v614 = vmin.f32 %v612, 6.0
        %v615 = vmin.f32 %v613, 6.0
        %616 = vst [vmem:[#allocation2] sm:$0xff] 0.0
        %617 = vst [vmem:[#allocation2 + $0x18] sm:$0xff] 0.0
        %618 = vst [vmem:[#allocation2 + $0x8] sm:$0xff] %v614
        %619 = vst [vmem:[#allocation2 + $0x10] sm:$0xff] %v615
        %v620 = vld [vmem:[#allocation2] sm:$0xff]
        %v621 = vld [vmem:[#allocation2 + $0x8] sm:$0xff]
        %v622 = vld [vmem:[#allocation2 + $0x10] sm:$0xff]
        %v623 = vld [vmem:[%s3] sm:$0xff]
        %625 = vset.pattern.permute.xlu0 0
        %626 = vperm.xlu0 %625, %v623
        %v627 = vpop.permute.xlu0 %626
        %v629 = vmul.f32 %v620, %v627
        %v630 = vmul.f32 %v621, %v627
        %v631 = vmul.f32 %v622, %v627
        %v632 = vld [vmem:[%s5] ss:$8 sm:$0x3]
        %v634 = vlaneseq
        %v635 = vshrl.u32 %v634, 7
        %v636 = vsub.s32 0, %v635
        %v637 = vrot.slane %v632, %v636
        %v638 = vlaneseq
        %v639 = vshrl.u32 %v638, 7
        %v640 = vsub.s32 1, %v639
        %v641 = vrot.slane %v632, %v640
        %642 = vrot.lane.b32.xlu0 %v637, 77
        %v643 = vpop.permute.xlu0 %642
        %644 = vrot.lane.b32.xlu0 %v641, 77
        %v645 = vpop.permute.xlu0 %644
        %vm646 = vcmask 629760
        %v647 = vsel %vm646, %v643, %v645
        %v651 = vmul.f32 %v629, %v643
        %v652 = vmul.f32 %v630, %v647
        %v653 = vmul.f32 %v631, %v645
        %v654 = vadd.f32 %v651, 0.0
        %v655 = vadd.f32 %v652, 0.0
        %v656 = vadd.f32 %v653, 0.0
        %s657 = scalar_lea.vmem %s3, 8
        %v658 = vld [vmem:[%s657] sm:$0xff]
        %660 = vset.pattern.permute.xlu0 0
        %661 = vperm.xlu0 %660, %v658
        %v662 = vpop.permute.xlu0 %661
        %v664 = vmul.f32 %v620, %v662
        %v665 = vmul.f32 %v621, %v662
        %v666 = vmul.f32 %v622, %v662
        %670 = vrot.lane.b32.xlu0 %v664, 125
        %v671 = vpop.permute.xlu0 %670
        %672 = vrot.lane.b32.xlu0 %v665, 125
        %v673 = vpop.permute.xlu0 %672
        %674 = vrot.lane.b32.xlu0 %v666, 125
        %v675 = vpop.permute.xlu0 %674
        %vm676 = vcmask 1022976
        %v677 = vsel %vm676, %v671, %v673
        %v678 = vsel %vm676, %v673, %v675
        %v682 = vadd.f32 %v654, %v677
        %v683 = vadd.f32 %v655, %v678
        %v684 = vadd.f32 %v656, %v675
        %s685 = scalar_lea.vmem %s3, 16
        %v686 = vld [vmem:[%s685] sm:$0xff]
        %688 = vset.pattern.permute.xlu0 0
        %689 = vperm.xlu0 %688, %v686
        %v690 = vpop.permute.xlu0 %689
        %v692 = vmul.f32 %v620, %v690
        %v693 = vmul.f32 %v621, %v690
        %v694 = vmul.f32 %v622, %v690
        %s695 = scalar_lea.vmem %s5, 2
        %v696 = vld [vmem:[%s695] ss:$8 sm:$0x3]
        %v698 = vlaneseq
        %v699 = vshrl.u32 %v698, 7
        %v700 = vsub.s32 0, %v699
        %v701 = vrot.slane %v696, %v700
        %v702 = vlaneseq
        %v703 = vshrl.u32 %v702, 7
        %v704 = vsub.s32 1, %v703
        %v705 = vrot.slane %v696, %v704
        %706 = vrot.lane.b32.xlu0 %v701, 83
        %v707 = vpop.permute.xlu0 %706
        %708 = vrot.lane.b32.xlu0 %v705, 83
        %v709 = vpop.permute.xlu0 %708
        %vm710 = vcmask 678912
        %v711 = vsel %vm710, %v707, %v709
        %v715 = vmul.f32 %v692, %v707
        %v716 = vmul.f32 %v693, %v711
        %v717 = vmul.f32 %v694, %v709
        %721 = vrot.lane.b32.xlu0 %v715, 122
        %v722 = vpop.permute.xlu0 %721
        %723 = vrot.lane.b32.xlu0 %v716, 122
        %v724 = vpop.permute.xlu0 %723
        %725 = vrot.lane.b32.xlu0 %v717, 122
        %v726 = vpop.permute.xlu0 %725
        %vm727 = vcmask 998400
        %v728 = vsel %vm727, %v722, %v724
        %v729 = vsel %vm727, %v724, %v726
        %v733 = vadd.f32 %v682, %v728
        %v734 = vadd.f32 %v683, %v729
        %v735 = vadd.f32 %v684, %v726
        %s736 = scalar_lea.vmem %s3, 24
        %v737 = vld [vmem:[%s736] sm:$0xff]
        %739 = vset.pattern.permute.xlu0 0
        %740 = vperm.xlu0 %739, %v737
        %v741 = vpop.permute.xlu0 %740
        %v743 = vmul.f32 %v620, %v741
        %v744 = vmul.f32 %v621, %v741
        %v745 = vmul.f32 %v622, %v741
        %746 = vrot.lane.b32.xlu0 %v637, 125
        %v747 = vpop.permute.xlu0 %746
        %748 = vrot.lane.b32.xlu0 %v641, 125
        %v749 = vpop.permute.xlu0 %748
        %v750 = vsel %vm676, %v747, %v749
        %v754 = vmul.f32 %v743, %v747
        %v755 = vmul.f32 %v744, %v750
        %v756 = vmul.f32 %v745, %v749
        %760 = vrot.lane.b32.xlu0 %v754, 80
        %v761 = vpop.permute.xlu0 %760
        %762 = vrot.lane.b32.xlu0 %v755, 80
        %v763 = vpop.permute.xlu0 %762
        %764 = vrot.lane.b32.xlu0 %v756, 80
        %v765 = vpop.permute.xlu0 %764
        %vm766 = vcmask 654336
        %v767 = vsel %vm766, %v761, %v763
        %v768 = vsel %vm766, %v763, %v765
        %v772 = vadd.f32 %v733, %v767
        %v773 = vadd.f32 %v734, %v768
        %v774 = vadd.f32 %v735, %v765
        %s775 = scalar_lea.vmem %s3, 32
        %v776 = vld [vmem:[%s775] sm:$0xff]
        %778 = vset.pattern.permute.xlu0 0
        %779 = vperm.xlu0 %778, %v776
        %v780 = vpop.permute.xlu0 %779
        %v782 = vmul.f32 %v621, %v780
        %v783 = vmul.f32 %v622, %v780
        %786 = vrot.lane.b32.xlu0 %v782, 77
        %v787 = vpop.permute.xlu0 %786
        %788 = vrot.lane.b32.xlu0 %v783, 77
        %v789 = vpop.permute.xlu0 %788
        %v790 = vsel %vm646, %v787, %v789
        %v794 = vadd.f32 %v772, %v787
        %v795 = vadd.f32 %v773, %v790
        %v796 = vadd.f32 %v774, %v789
        %v797 = vld [vmem:[#allocation2 + $0x8] sm:$0xff]
        %v798 = vld [vmem:[#allocation2 + $0x10] sm:$0xff]
        %v799 = vld [vmem:[#allocation2 + $0x18] sm:$0xff]
        %s800 = scalar_lea.vmem %s3, 40
        %v801 = vld [vmem:[%s800] sm:$0xff]
        %803 = vset.pattern.permute.xlu0 0
        %804 = vperm.xlu0 %803, %v801
        %v805 = vpop.permute.xlu0 %804
        %v807 = vmul.f32 %v797, %v805
        %v808 = vmul.f32 %v798, %v805
        %v809 = vmul.f32 %v799, %v805
        %810 = vrot.lane.b32.xlu0 %v701, 3
        %v811 = vpop.permute.xlu0 %810
        %812 = vrot.lane.b32.xlu0 %v705, 3
        %v813 = vpop.permute.xlu0 %812
        %vm814 = vcmask 23552
        %v815 = vsel %vm814, %v811, %v813
        %v819 = vmul.f32 %v807, %v811
        %v820 = vmul.f32 %v808, %v815
        %v821 = vmul.f32 %v809, %v813
        %825 = vrot.lane.b32.xlu0 %v819, 74
        %v826 = vpop.permute.xlu0 %825
        %827 = vrot.lane.b32.xlu0 %v820, 74
        %v828 = vpop.permute.xlu0 %827
        %829 = vrot.lane.b32.xlu0 %v821, 74
        %v830 = vpop.permute.xlu0 %829
        %vm831 = vcmask 605184
        %v832 = vsel %vm831, %v826, %v828
        %v833 = vsel %vm831, %v828, %v830
        %v837 = vadd.f32 %v794, %v826
        %v838 = vadd.f32 %v795, %v832
        %v839 = vadd.f32 %v796, %v833
        %s840 = scalar_lea.vmem %s3, 48
        %v841 = vld [vmem:[%s840] sm:$0xff]
        %843 = vset.pattern.permute.xlu0 0
        %844 = vperm.xlu0 %843, %v841
        %v845 = vpop.permute.xlu0 %844
        %v847 = vmul.f32 %v797, %v845
        %v848 = vmul.f32 %v798, %v845
        %v849 = vmul.f32 %v799, %v845
        %850 = vrot.lane.b32.xlu0 %v637, 45
        %v851 = vpop.permute.xlu0 %850
        %852 = vrot.lane.b32.xlu0 %v641, 45
        %v853 = vpop.permute.xlu0 %852
        %vm854 = vcmask 367616
        %v855 = vsel %vm854, %v851, %v853
        %v859 = vmul.f32 %v847, %v851
        %v860 = vmul.f32 %v848, %v855
        %v861 = vmul.f32 %v849, %v853
        %865 = vrot.lane.b32.xlu0 %v859, 32
        %v866 = vpop.permute.xlu0 %865
        %867 = vrot.lane.b32.xlu0 %v860, 32
        %v868 = vpop.permute.xlu0 %867
        %869 = vrot.lane.b32.xlu0 %v861, 32
        %v870 = vpop.permute.xlu0 %869
        %v871 = vsel %vm567, %v866, %v868
        %v872 = vsel %vm567, %v868, %v870
        %v876 = vadd.f32 %v837, %v866
        %v877 = vadd.f32 %v838, %v871
        %v878 = vadd.f32 %v839, %v872
        %s879 = scalar_lea.vmem %s3, 56
        %v880 = vld [vmem:[%s879] sm:$0xff]
        %882 = vset.pattern.permute.xlu0 0
        %883 = vperm.xlu0 %882, %v880
        %v884 = vpop.permute.xlu0 %883
        %v886 = vmul.f32 %v797, %v884
        %v887 = vmul.f32 %v798, %v884
        %v888 = vmul.f32 %v799, %v884
        %892 = vrot.lane.b32.xlu0 %v886, 29
        %v893 = vpop.permute.xlu0 %892
        %894 = vrot.lane.b32.xlu0 %v887, 29
        %v895 = vpop.permute.xlu0 %894
        %896 = vrot.lane.b32.xlu0 %v888, 29
        %v897 = vpop.permute.xlu0 %896
        %vm898 = vcmask 236544
        %v899 = vsel %vm898, %v893, %v895
        %v900 = vsel %vm898, %v895, %v897
        %v904 = vadd.f32 %v876, %v893
        %v905 = vadd.f32 %v877, %v899
        %v906 = vadd.f32 %v878, %v900
        %s907 = scalar_lea.vmem %s3, 64
        %v908 = vld [vmem:[%s907] sm:$0xff]
        %910 = vset.pattern.permute.xlu0 0
        %911 = vperm.xlu0 %910, %v908
        %v912 = vpop.permute.xlu0 %911
        %v914 = vmul.f32 %v797, %v912
        %v915 = vmul.f32 %v798, %v912
        %v916 = vmul.f32 %v799, %v912
        %917 = vrot.lane.b32.xlu0 %v701, 51
        %v918 = vpop.permute.xlu0 %917
        %919 = vrot.lane.b32.xlu0 %v705, 51
        %v920 = vpop.permute.xlu0 %919
        %vm921 = vcmask 416768
        %v922 = vsel %vm921, %v918, %v920
        %v926 = vmul.f32 %v914, %v918
        %v927 = vmul.f32 %v915, %v922
        %v928 = vmul.f32 %v916, %v920
        %932 = vrot.lane.b32.xlu0 %v926, 26
        %v933 = vpop.permute.xlu0 %932
        %934 = vrot.lane.b32.xlu0 %v927, 26
        %v935 = vpop.permute.xlu0 %934
        %936 = vrot.lane.b32.xlu0 %v928, 26
        %v937 = vpop.permute.xlu0 %936
        %vm938 = vcmask 211968
        %v939 = vsel %vm938, %v933, %v935
        %v940 = vsel %vm938, %v935, %v937
        %v944 = vadd.f32 %v904, %v933
        %v945 = vadd.f32 %v905, %v939
        %v946 = vadd.f32 %v906, %v940
        %v947 = vld [vmem:[%s4] sm:$0xff]
        %949 = vset.pattern.permute.xlu0 0
        %950 = vperm.xlu0 %949, %v947
        %v951 = vpop.permute.xlu0 %950
        %v953 = vadd.f32 %v944, %v951
        %v954 = vadd.f32 %v945, %v951
        %v955 = vadd.f32 %v946, %v951
        %v956 = vmax.f32 %v953, 0.0
        %v957 = vmax.f32 %v954, 0.0
        %v958 = vmax.f32 %v955, 0.0
        %v959 = vmin.f32 %v956, 6.0
        %v960 = vmin.f32 %v957, 6.0
        %v961 = vmin.f32 %v958, 6.0
        %s962 = scalar_lea.vmem %s3, 72
        %v963 = vld [vmem:[%s962] sm:$0xff]
        %965 = vset.pattern.permute.xlu0 0
        %966 = vperm.xlu0 %965, %v963
        %v967 = vpop.permute.xlu0 %966
        %v969 = vmul.f32 %v620, %v967
        %v970 = vmul.f32 %v621, %v967
        %v971 = vmul.f32 %v622, %v967
        %s972 = scalar_lea.vmem %s5, 3
        %v973 = vld [vmem:[%s972] ss:$8 sm:$0x3]
        %v975 = vlaneseq
        %v976 = vshrl.u32 %v975, 7
        %v977 = vsub.s32 0, %v976
        %v978 = vrot.slane %v973, %v977
        %v979 = vlaneseq
        %v980 = vshrl.u32 %v979, 7
        %v981 = vsub.s32 1, %v980
        %v982 = vrot.slane %v973, %v981
        %983 = vrot.lane.b32.xlu0 %v978, 43
        %v984 = vpop.permute.xlu0 %983
        %985 = vrot.lane.b32.xlu0 %v982, 43
        %v986 = vpop.permute.xlu0 %985
        %vm987 = vcmask 351232
        %v988 = vsel %vm987, %v984, %v986
        %v992 = vmul.f32 %v969, %v984
        %v993 = vmul.f32 %v970, %v988
        %v994 = vmul.f32 %v971, %v986
        %v995 = vadd.f32 %v992, 0.0
        %v996 = vadd.f32 %v993, 0.0
        %v997 = vadd.f32 %v994, 0.0
        %s998 = scalar_lea.vmem %s3, 80
        %v999 = vld [vmem:[%s998] sm:$0xff]
        %1001 = vset.pattern.permute.xlu0 0
        %1002 = vperm.xlu0 %1001, %v999
        %v1003 = vpop.permute.xlu0 %1002
        %v1005 = vmul.f32 %v620, %v1003
        %v1006 = vmul.f32 %v621, %v1003
        %v1007 = vmul.f32 %v622, %v1003
        %1011 = vrot.lane.b32.xlu0 %v1005, 123
        %v1012 = vpop.permute.xlu0 %1011
        %1013 = vrot.lane.b32.xlu0 %v1006, 123
        %v1014 = vpop.permute.xlu0 %1013
        %1015 = vrot.lane.b32.xlu0 %v1007, 123
        %v1016 = vpop.permute.xlu0 %1015
        %vm1017 = vcmask 1006592
        %v1018 = vsel %vm1017, %v1012, %v1014
        %v1019 = vsel %vm1017, %v1014, %v1016
        %v1023 = vadd.f32 %v995, %v1018
        %v1024 = vadd.f32 %v996, %v1019
        %v1025 = vadd.f32 %v997, %v1016
        %s1026 = scalar_lea.vmem %s3, 88
        %v1027 = vld [vmem:[%s1026] sm:$0xff]
        %1029 = vset.pattern.permute.xlu0 0
        %1030 = vperm.xlu0 %1029, %v1027
        %v1031 = vpop.permute.xlu0 %1030
        %v1033 = vmul.f32 %v620, %v1031
        %v1034 = vmul.f32 %v621, %v1031
        %v1035 = vmul.f32 %v622, %v1031
        %s1036 = scalar_lea.vmem %s5, 5
        %v1037 = vld [vmem:[%s1036] ss:$8 sm:$0x3]
        %v1039 = vlaneseq
        %v1040 = vshrl.u32 %v1039, 7
        %v1041 = vsub.s32 0, %v1040
        %v1042 = vrot.slane %v1037, %v1041
        %v1043 = vlaneseq
        %v1044 = vshrl.u32 %v1043, 7
        %v1045 = vsub.s32 1, %v1044
        %v1046 = vrot.slane %v1037, %v1045
        %1047 = vrot.lane.b32.xlu0 %v1042, 53
        %v1048 = vpop.permute.xlu0 %1047
        %1049 = vrot.lane.b32.xlu0 %v1046, 53
        %v1050 = vpop.permute.xlu0 %1049
        %vm1051 = vcmask 433152
        %v1052 = vsel %vm1051, %v1048, %v1050
        %v1056 = vmul.f32 %v1033, %v1048
        %v1057 = vmul.f32 %v1034, %v1052
        %v1058 = vmul.f32 %v1035, %v1050
        %1062 = vrot.lane.b32.xlu0 %v1056, 118
        %v1063 = vpop.permute.xlu0 %1062
        %1064 = vrot.lane.b32.xlu0 %v1057, 118
        %v1065 = vpop.permute.xlu0 %1064
        %1066 = vrot.lane.b32.xlu0 %v1058, 118
        %v1067 = vpop.permute.xlu0 %1066
        %vm1068 = vcmask 965632
        %v1069 = vsel %vm1068, %v1063, %v1065
        %v1070 = vsel %vm1068, %v1065, %v1067
        %v1074 = vadd.f32 %v1023, %v1069
        %v1075 = vadd.f32 %v1024, %v1070
        %v1076 = vadd.f32 %v1025, %v1067
        %s1077 = scalar_lea.vmem %s3, 96
        %v1078 = vld [vmem:[%s1077] sm:$0xff]
        %1080 = vset.pattern.permute.xlu0 0
        %1081 = vperm.xlu0 %1080, %v1078
        %v1082 = vpop.permute.xlu0 %1081
        %v1084 = vmul.f32 %v620, %v1082
        %v1085 = vmul.f32 %v621, %v1082
        %v1086 = vmul.f32 %v622, %v1082
        %1087 = vrot.lane.b32.xlu0 %v978, 123
        %v1088 = vpop.permute.xlu0 %1087
        %1089 = vrot.lane.b32.xlu0 %v982, 123
        %v1090 = vpop.permute.xlu0 %1089
        %v1091 = vsel %vm1017, %v1088, %v1090
        %v1095 = vmul.f32 %v1084, %v1088
        %v1096 = vmul.f32 %v1085, %v1091
        %v1097 = vmul.f32 %v1086, %v1090
        %1101 = vrot.lane.b32.xlu0 %v1095, 48
        %v1102 = vpop.permute.xlu0 %1101
        %1103 = vrot.lane.b32.xlu0 %v1096, 48
        %v1104 = vpop.permute.xlu0 %1103
        %1105 = vrot.lane.b32.xlu0 %v1097, 48
        %v1106 = vpop.permute.xlu0 %1105
        %vm1107 = vcmask 392192
        %v1108 = vsel %vm1107, %v1102, %v1104
        %v1109 = vsel %vm1107, %v1104, %v1106
        %v1113 = vadd.f32 %v1074, %v1108
        %v1114 = vadd.f32 %v1075, %v1109
        %v1115 = vadd.f32 %v1076, %v1106
        %s1116 = scalar_lea.vmem %s3, 104
        %v1117 = vld [vmem:[%s1116] sm:$0xff]
        %1119 = vset.pattern.permute.xlu0 0
        %1120 = vperm.xlu0 %1119, %v1117
        %v1121 = vpop.permute.xlu0 %1120
        %v1123 = vmul.f32 %v621, %v1121
        %v1124 = vmul.f32 %v622, %v1121
        %1127 = vrot.lane.b32.xlu0 %v1123, 43
        %v1128 = vpop.permute.xlu0 %1127
        %1129 = vrot.lane.b32.xlu0 %v1124, 43
        %v1130 = vpop.permute.xlu0 %1129
        %v1131 = vsel %vm987, %v1128, %v1130
        %v1135 = vadd.f32 %v1113, %v1128
        %v1136 = vadd.f32 %v1114, %v1131
        %v1137 = vadd.f32 %v1115, %v1130
        %s1138 = scalar_lea.vmem %s3, 112
        %v1139 = vld [vmem:[%s1138] sm:$0xff]
        %1141 = vset.pattern.permute.xlu0 0
        %1142 = vperm.xlu0 %1141, %v1139
        %v1143 = vpop.permute.xlu0 %1142
        %v1145 = vmul.f32 %v797, %v1143
        %v1146 = vmul.f32 %v798, %v1143
        %v1147 = vmul.f32 %v799, %v1143
        %1148 = vrot.lane.b32.xlu0 %v1042, 5
        %v1149 = vpop.permute.xlu0 %1148
        %1150 = vrot.lane.b32.xlu0 %v1046, 5
        %v1151 = vpop.permute.xlu0 %1150
        %vm1152 = vcmask 39936
        %v1153 = vsel %vm1152, %v1149, %v1151
        %v1157 = vmul.f32 %v1145, %v1149
        %v1158 = vmul.f32 %v1146, %v1153
        %v1159 = vmul.f32 %v1147, %v1151
        %1163 = vrot.lane.b32.xlu0 %v1157, 38
        %v1164 = vpop.permute.xlu0 %1163
        %1165 = vrot.lane.b32.xlu0 %v1158, 38
        %v1166 = vpop.permute.xlu0 %1165
        %1167 = vrot.lane.b32.xlu0 %v1159, 38
        %v1168 = vpop.permute.xlu0 %1167
        %vm1169 = vcmask 310272
        %v1170 = vsel %vm1169, %v1164, %v1166
        %v1171 = vsel %vm1169, %v1166, %v1168
        %v1175 = vadd.f32 %v1135, %v1164
        %v1176 = vadd.f32 %v1136, %v1170
        %v1177 = vadd.f32 %v1137, %v1171
        %s1178 = scalar_lea.vmem %s3, 120
        %v1179 = vld [vmem:[%s1178] sm:$0xff]
        %1181 = vset.pattern.permute.xlu0 0
        %1182 = vperm.xlu0 %1181, %v1179
        %v1183 = vpop.permute.xlu0 %1182
        %v1185 = vmul.f32 %v797, %v1183
        %v1186 = vmul.f32 %v798, %v1183
        %v1187 = vmul.f32 %v799, %v1183
        %1188 = vrot.lane.b32.xlu0 %v978, 75
        %v1189 = vpop.permute.xlu0 %1188
        %1190 = vrot.lane.b32.xlu0 %v982, 75
        %v1191 = vpop.permute.xlu0 %1190
        %vm1192 = vcmask 613376
        %v1193 = vsel %vm1192, %v1189, %v1191
        %v1197 = vmul.f32 %v1185, %v1189
        %v1198 = vmul.f32 %v1186, %v1193
        %v1199 = vmul.f32 %v1187, %v1191
        %1203 = vrot.lane.b32.xlu0 %v1197, 96
        %v1204 = vpop.permute.xlu0 %1203
        %1205 = vrot.lane.b32.xlu0 %v1198, 96
        %v1206 = vpop.permute.xlu0 %1205
        %1207 = vrot.lane.b32.xlu0 %v1199, 96
        %v1208 = vpop.permute.xlu0 %1207
        %vm1209 = vcmask 785408
        %v1210 = vsel %vm1209, %v1204, %v1206
        %v1211 = vsel %vm1209, %v1206, %v1208
        %v1215 = vadd.f32 %v1175, %v1210
        %v1216 = vadd.f32 %v1176, %v1211
        %v1217 = vadd.f32 %v1177, %v1208
        %s1218 = scalar_lea.vmem %s3, 128
        %v1219 = vld [vmem:[%s1218] sm:$0xff]
        %1221 = vset.pattern.permute.xlu0 0
        %1222 = vperm.xlu0 %1221, %v1219
        %v1223 = vpop.permute.xlu0 %1222
        %v1225 = vmul.f32 %v797, %v1223
        %v1226 = vmul.f32 %v798, %v1223
        %v1227 = vmul.f32 %v799, %v1223
        %1231 = vrot.lane.b32.xlu0 %v1225, 91
        %v1232 = vpop.permute.xlu0 %1231
        %1233 = vrot.lane.b32.xlu0 %v1226, 91
        %v1234 = vpop.permute.xlu0 %1233
        %1235 = vrot.lane.b32.xlu0 %v1227, 91
        %v1236 = vpop.permute.xlu0 %1235
        %vm1237 = vcmask 744448
        %v1238 = vsel %vm1237, %v1232, %v1234
        %v1239 = vsel %vm1237, %v1234, %v1236
        %v1243 = vadd.f32 %v1215, %v1238
        %v1244 = vadd.f32 %v1216, %v1239
        %v1245 = vadd.f32 %v1217, %v1236
        %s1246 = scalar_lea.vmem %s3, 136
        %v1247 = vld [vmem:[%s1246] sm:$0xff]
        %1249 = vset.pattern.permute.xlu0 0
        %1250 = vperm.xlu0 %1249, %v1247
        %v1251 = vpop.permute.xlu0 %1250
        %v1253 = vmul.f32 %v797, %v1251
        %v1254 = vmul.f32 %v798, %v1251
        %v1255 = vmul.f32 %v799, %v1251
        %1256 = vrot.lane.b32.xlu0 %v1042, 85
        %v1257 = vpop.permute.xlu0 %1256
        %1258 = vrot.lane.b32.xlu0 %v1046, 85
        %v1259 = vpop.permute.xlu0 %1258
        %vm1260 = vcmask 695296
        %v1261 = vsel %vm1260, %v1257, %v1259
        %v1265 = vmul.f32 %v1253, %v1257
        %v1266 = vmul.f32 %v1254, %v1261
        %v1267 = vmul.f32 %v1255, %v1259
        %1271 = vrot.lane.b32.xlu0 %v1265, 86
        %v1272 = vpop.permute.xlu0 %1271
        %1273 = vrot.lane.b32.xlu0 %v1266, 86
        %v1274 = vpop.permute.xlu0 %1273
        %1275 = vrot.lane.b32.xlu0 %v1267, 86
        %v1276 = vpop.permute.xlu0 %1275
        %vm1277 = vcmask 703488
        %v1278 = vsel %vm1277, %v1272, %v1274
        %v1279 = vsel %vm1277, %v1274, %v1276
        %v1283 = vadd.f32 %v1243, %v1278
        %v1284 = vadd.f32 %v1244, %v1279
        %v1285 = vadd.f32 %v1245, %v1276
        %s1286 = scalar_lea.vmem %s4, 8
        %v1287 = vld [vmem:[%s1286] sm:$0xff]
        %1289 = vset.pattern.permute.xlu0 0
        %1290 = vperm.xlu0 %1289, %v1287
        %v1291 = vpop.permute.xlu0 %1290
        %v1293 = vadd.f32 %v1283, %v1291
        %v1294 = vadd.f32 %v1284, %v1291
        %v1295 = vadd.f32 %v1285, %v1291
        %v1296 = vmax.f32 %v1293, 0.0
        %v1297 = vmax.f32 %v1294, 0.0
        %v1298 = vmax.f32 %v1295, 0.0
        %v1299 = vmin.f32 %v1296, 6.0
        %v1300 = vmin.f32 %v1297, 6.0
        %v1301 = vmin.f32 %v1298, 6.0
        %s1302 = scalar_lea.vmem %s3, 144
        %v1303 = vld [vmem:[%s1302] sm:$0xff]
        %1305 = vset.pattern.permute.xlu0 0
        %1306 = vperm.xlu0 %1305, %v1303
        %v1307 = vpop.permute.xlu0 %1306
        %v1309 = vmul.f32 %v620, %v1307
        %v1310 = vmul.f32 %v621, %v1307
        %v1311 = vmul.f32 %v622, %v1307
        %s1312 = scalar_lea.vmem %s5, 6
        %v1313 = vld [vmem:[%s1312] ss:$8 sm:$0x3]
        %v1315 = vlaneseq
        %v1316 = vshrl.u32 %v1315, 7
        %v1317 = vsub.s32 0, %v1316
        %v1318 = vrot.slane %v1313, %v1317
        %v1319 = vlaneseq
        %v1320 = vshrl.u32 %v1319, 7
        %v1321 = vsub.s32 1, %v1320
        %v1322 = vrot.slane %v1313, %v1321
        %1323 = vrot.lane.b32.xlu0 %v1318, 9
        %v1324 = vpop.permute.xlu0 %1323
        %1325 = vrot.lane.b32.xlu0 %v1322, 9
        %v1326 = vpop.permute.xlu0 %1325
        %vm1327 = vcmask 72704
        %v1328 = vsel %vm1327, %v1324, %v1326
        %v1332 = vmul.f32 %v1309, %v1324
        %v1333 = vmul.f32 %v1310, %v1328
        %v1334 = vmul.f32 %v1311, %v1326
        %v1335 = vadd.f32 %v1332, 0.0
        %v1336 = vadd.f32 %v1333, 0.0
        %v1337 = vadd.f32 %v1334, 0.0
        %s1338 = scalar_lea.vmem %s3, 152
        %v1339 = vld [vmem:[%s1338] sm:$0xff]
        %1341 = vset.pattern.permute.xlu0 0
        %1342 = vperm.xlu0 %1341, %v1339
        %v1343 = vpop.permute.xlu0 %1342
        %v1345 = vmul.f32 %v620, %v1343
        %v1346 = vmul.f32 %v621, %v1343
        %v1347 = vmul.f32 %v622, %v1343
        %1351 = vrot.lane.b32.xlu0 %v1345, 121
        %v1352 = vpop.permute.xlu0 %1351
        %1353 = vrot.lane.b32.xlu0 %v1346, 121
        %v1354 = vpop.permute.xlu0 %1353
        %1355 = vrot.lane.b32.xlu0 %v1347, 121
        %v1356 = vpop.permute.xlu0 %1355
        %vm1357 = vcmask 990208
        %v1358 = vsel %vm1357, %v1352, %v1354
        %v1359 = vsel %vm1357, %v1354, %v1356
        %v1363 = vadd.f32 %v1335, %v1358
        %v1364 = vadd.f32 %v1336, %v1359
        %v1365 = vadd.f32 %v1337, %v1356
        %s1366 = scalar_lea.vmem %s3, 160
        %v1367 = vld [vmem:[%s1366] sm:$0xff]
        %1369 = vset.pattern.permute.xlu0 0
        %1370 = vperm.xlu0 %1369, %v1367
        %v1371 = vpop.permute.xlu0 %1370
        %v1373 = vmul.f32 %v620, %v1371
        %v1374 = vmul.f32 %v621, %v1371
        %v1375 = vmul.f32 %v622, %v1371
        %s1376 = scalar_lea.vmem %s5, 16
        %v1377 = vld [vmem:[%s1376] ss:$8 sm:$0x3]
        %v1379 = vlaneseq
        %v1380 = vshrl.u32 %v1379, 7
        %v1381 = vsub.s32 0, %v1380
        %v1382 = vrot.slane %v1377, %v1381
        %v1383 = vlaneseq
        %v1384 = vshrl.u32 %v1383, 7
        %v1385 = vsub.s32 1, %v1384
        %v1386 = vrot.slane %v1377, %v1385
        %1387 = vrot.lane.b32.xlu0 %v1382, 23
        %v1388 = vpop.permute.xlu0 %1387
        %1389 = vrot.lane.b32.xlu0 %v1386, 23
        %v1390 = vpop.permute.xlu0 %1389
        %vm1391 = vcmask 187392
        %v1392 = vsel %vm1391, %v1388, %v1390
        %v1396 = vmul.f32 %v1373, %v1388
        %v1397 = vmul.f32 %v1374, %v1392
        %v1398 = vmul.f32 %v1375, %v1390
        %1402 = vrot.lane.b32.xlu0 %v1396, 114
        %v1403 = vpop.permute.xlu0 %1402
        %1404 = vrot.lane.b32.xlu0 %v1397, 114
        %v1405 = vpop.permute.xlu0 %1404
        %1406 = vrot.lane.b32.xlu0 %v1398, 114
        %v1407 = vpop.permute.xlu0 %1406
        %vm1408 = vcmask 932864
        %v1409 = vsel %vm1408, %v1403, %v1405
        %v1410 = vsel %vm1408, %v1405, %v1407
        %v1414 = vadd.f32 %v1363, %v1409
        %v1415 = vadd.f32 %v1364, %v1410
        %v1416 = vadd.f32 %v1365, %v1407
        %s1417 = scalar_lea.vmem %s3, 168
        %v1418 = vld [vmem:[%s1417] sm:$0xff]
        %1420 = vset.pattern.permute.xlu0 0
        %1421 = vperm.xlu0 %1420, %v1418
        %v1422 = vpop.permute.xlu0 %1421
        %v1424 = vmul.f32 %v620, %v1422
        %v1425 = vmul.f32 %v621, %v1422
        %v1426 = vmul.f32 %v622, %v1422
        %1427 = vrot.lane.b32.xlu0 %v1318, 121
        %v1428 = vpop.permute.xlu0 %1427
        %1429 = vrot.lane.b32.xlu0 %v1322, 121
        %v1430 = vpop.permute.xlu0 %1429
        %v1431 = vsel %vm1357, %v1428, %v1430
        %v1435 = vmul.f32 %v1424, %v1428
        %v1436 = vmul.f32 %v1425, %v1431
        %v1437 = vmul.f32 %v1426, %v1430
        %1441 = vrot.lane.b32.xlu0 %v1435, 16
        %v1442 = vpop.permute.xlu0 %1441
        %1443 = vrot.lane.b32.xlu0 %v1436, 16
        %v1444 = vpop.permute.xlu0 %1443
        %1445 = vrot.lane.b32.xlu0 %v1437, 16
        %v1446 = vpop.permute.xlu0 %1445
        %vm1447 = vcmask 130048
        %v1448 = vsel %vm1447, %v1442, %v1444
        %v1449 = vsel %vm1447, %v1444, %v1446
        %v1453 = vadd.f32 %v1414, %v1448
        %v1454 = vadd.f32 %v1415, %v1449
        %v1455 = vadd.f32 %v1416, %v1446
        %s1456 = scalar_lea.vmem %s3, 176
        %v1457 = vld [vmem:[%s1456] sm:$0xff]
        %1459 = vset.pattern.permute.xlu0 0
        %1460 = vperm.xlu0 %1459, %v1457
        %v1461 = vpop.permute.xlu0 %1460
        %v1463 = vmul.f32 %v621, %v1461
        %v1464 = vmul.f32 %v622, %v1461
        %1467 = vrot.lane.b32.xlu0 %v1463, 9
        %v1468 = vpop.permute.xlu0 %1467
        %1469 = vrot.lane.b32.xlu0 %v1464, 9
        %v1470 = vpop.permute.xlu0 %1469
        %v1471 = vsel %vm1327, %v1468, %v1470
        %v1475 = vadd.f32 %v1453, %v1468
        %v1476 = vadd.f32 %v1454, %v1471
        %v1477 = vadd.f32 %v1455, %v1470
        %s1478 = scalar_lea.vmem %s3, 184
        %v1479 = vld [vmem:[%s1478] sm:$0xff]
        %1481 = vset.pattern.permute.xlu0 0
        %1482 = vperm.xlu0 %1481, %v1479
        %v1483 = vpop.permute.xlu0 %1482
        %v1485 = vmul.f32 %v797, %v1483
        %v1486 = vmul.f32 %v798, %v1483
        %v1487 = vmul.f32 %v799, %v1483
        %1488 = vrot.lane.b32.xlu0 %v1382, 7
        %v1489 = vpop.permute.xlu0 %1488
        %1490 = vrot.lane.b32.xlu0 %v1386, 7
        %v1491 = vpop.permute.xlu0 %1490
        %vm1492 = vcmask 56320
        %v1493 = vsel %vm1492, %v1489, %v1491
        %v1497 = vmul.f32 %v1485, %v1489
        %v1498 = vmul.f32 %v1486, %v1493
        %v1499 = vmul.f32 %v1487, %v1491
        %1503 = vrot.lane.b32.xlu0 %v1497, 2
        %v1504 = vpop.permute.xlu0 %1503
        %1505 = vrot.lane.b32.xlu0 %v1498, 2
        %v1506 = vpop.permute.xlu0 %1505
        %1507 = vrot.lane.b32.xlu0 %v1499, 2
        %v1508 = vpop.permute.xlu0 %1507
        %vm1509 = vcmask 15360
        %v1510 = vsel %vm1509, %v1504, %v1506
        %v1511 = vsel %vm1509, %v1506, %v1508
        %v1515 = vadd.f32 %v1475, %v1504
        %v1516 = vadd.f32 %v1476, %v1510
        %v1517 = vadd.f32 %v1477, %v1511
        %s1518 = scalar_lea.vmem %s3, 192
        %v1519 = vld [vmem:[%s1518] sm:$0xff]
        %1521 = vset.pattern.permute.xlu0 0
        %1522 = vperm.xlu0 %1521, %v1519
        %v1523 = vpop.permute.xlu0 %1522
        %v1525 = vmul.f32 %v797, %v1523
        %v1526 = vmul.f32 %v798, %v1523
        %v1527 = vmul.f32 %v799, %v1523
        %1528 = vrot.lane.b32.xlu0 %v1318, 105
        %v1529 = vpop.permute.xlu0 %1528
        %1530 = vrot.lane.b32.xlu0 %v1322, 105
        %v1531 = vpop.permute.xlu0 %1530
        %vm1532 = vcmask 859136
        %v1533 = vsel %vm1532, %v1529, %v1531
        %v1537 = vmul.f32 %v1525, %v1529
        %v1538 = vmul.f32 %v1526, %v1533
        %v1539 = vmul.f32 %v1527, %v1531
        %1543 = vrot.lane.b32.xlu0 %v1537, 32
        %v1544 = vpop.permute.xlu0 %1543
        %1545 = vrot.lane.b32.xlu0 %v1538, 32
        %v1546 = vpop.permute.xlu0 %1545
        %1547 = vrot.lane.b32.xlu0 %v1539, 32
        %v1548 = vpop.permute.xlu0 %1547
        %v1549 = vsel %vm567, %v1544, %v1546
        %v1550 = vsel %vm567, %v1546, %v1548
        %v1554 = vadd.f32 %v1515, %v1549
        %v1555 = vadd.f32 %v1516, %v1550
        %v1556 = vadd.f32 %v1517, %v1548
        %s1557 = scalar_lea.vmem %s3, 200
        %v1558 = vld [vmem:[%s1557] sm:$0xff]
        %1560 = vset.pattern.permute.xlu0 0
        %1561 = vperm.xlu0 %1560, %v1558
        %v1562 = vpop.permute.xlu0 %1561
        %v1564 = vmul.f32 %v797, %v1562
        %v1565 = vmul.f32 %v798, %v1562
        %v1566 = vmul.f32 %v799, %v1562
        %1570 = vrot.lane.b32.xlu0 %v1564, 25
        %v1571 = vpop.permute.xlu0 %1570
        %1572 = vrot.lane.b32.xlu0 %v1565, 25
        %v1573 = vpop.permute.xlu0 %1572
        %1574 = vrot.lane.b32.xlu0 %v1566, 25
        %v1575 = vpop.permute.xlu0 %1574
        %vm1576 = vcmask 203776
        %v1577 = vsel %vm1576, %v1571, %v1573
        %v1578 = vsel %vm1576, %v1573, %v1575
        %v1582 = vadd.f32 %v1554, %v1577
        %v1583 = vadd.f32 %v1555, %v1578
        %v1584 = vadd.f32 %v1556, %v1575
        %s1585 = scalar_lea.vmem %s3, 208
        %v1586 = vld [vmem:[%s1585] sm:$0xff]
        %1588 = vset.pattern.permute.xlu0 0
        %1589 = vperm.xlu0 %1588, %v1586
        %v1590 = vpop.permute.xlu0 %1589
        %v1592 = vmul.f32 %v797, %v1590
        %v1593 = vmul.f32 %v798, %v1590
        %v1594 = vmul.f32 %v799, %v1590
        %1595 = vrot.lane.b32.xlu0 %v1382, 119
        %v1596 = vpop.permute.xlu0 %1595
        %1597 = vrot.lane.b32.xlu0 %v1386, 119
        %v1598 = vpop.permute.xlu0 %1597
        %vm1599 = vcmask 973824
        %v1600 = vsel %vm1599, %v1596, %v1598
        %v1604 = vmul.f32 %v1592, %v1596
        %v1605 = vmul.f32 %v1593, %v1600
        %v1606 = vmul.f32 %v1594, %v1598
        %1610 = vrot.lane.b32.xlu0 %v1604, 18
        %v1611 = vpop.permute.xlu0 %1610
        %1612 = vrot.lane.b32.xlu0 %v1605, 18
        %v1613 = vpop.permute.xlu0 %1612
        %1614 = vrot.lane.b32.xlu0 %v1606, 18
        %v1615 = vpop.permute.xlu0 %1614
        %vm1616 = vcmask 146432
        %v1617 = vsel %vm1616, %v1611, %v1613
        %v1618 = vsel %vm1616, %v1613, %v1615
        %v1622 = vadd.f32 %v1582, %v1617
        %v1623 = vadd.f32 %v1583, %v1618
        %v1624 = vadd.f32 %v1584, %v1615
        %s1625 = scalar_lea.vmem %s4, 16
        %v1626 = vld [vmem:[%s1625] sm:$0xff]
        %1628 = vset.pattern.permute.xlu0 0
        %1629 = vperm.xlu0 %1628, %v1626
        %v1630 = vpop.permute.xlu0 %1629
        %v1632 = vadd.f32 %v1622, %v1630
        %v1633 = vadd.f32 %v1623, %v1630
        %v1634 = vadd.f32 %v1624, %v1630
        %v1635 = vmax.f32 %v1632, 0.0
        %v1636 = vmax.f32 %v1633, 0.0
        %v1637 = vmax.f32 %v1634, 0.0
        %v1638 = vmin.f32 %v1635, 6.0
        %v1639 = vmin.f32 %v1636, 6.0
        %v1640 = vmin.f32 %v1637, 6.0
        %1644 = vrot.lane.b32.xlu0 %v1299, 34
        %v1645 = vpop.permute.xlu0 %1644
        %1646 = vrot.lane.b32.xlu0 %v1300, 34
        %v1647 = vpop.permute.xlu0 %1646
        %1648 = vrot.lane.b32.xlu0 %v1301, 34
        %v1649 = vpop.permute.xlu0 %1648
        %vm1650 = vcmask 277504
        %v1651 = vsel %vm1650, %v1645, %v1647
        %v1652 = vsel %vm1650, %v1647, %v1649
        %1659 = vrot.lane.b32.xlu0 %v1638, 68
        %v1660 = vpop.permute.xlu0 %1659
        %1661 = vrot.lane.b32.xlu0 %v1639, 68
        %v1662 = vpop.permute.xlu0 %1661
        %1663 = vrot.lane.b32.xlu0 %v1640, 68
        %v1664 = vpop.permute.xlu0 %1663
        %vm1665 = vcmask 556032
        %v1666 = vsel %vm1665, %v1660, %v1662
        %v1667 = vsel %vm1665, %v1662, %v1664
        %v1671 = vpack.c.bf16 %v1645, %v959
        %v1672 = vpack.c.bf16 %v1651, %v960
        %v1673 = vpack.c.bf16 %v1652, %v961
        %v1674 = vpack.c.bf16 %v1660, %v1660
        %v1675 = vpack.c.bf16 %v1666, %v1666
        %v1676 = vpack.c.bf16 %v1667, %v1667
        %v1677 = vld [vmem:[%s6] sm:$0xf]
        %v1678 = vld [vmem:[%s6 + $0x4] sm:$0xf]
        %v1679 = vld [vmem:[%s6 + $0x8] sm:$0xf]
        %v1680 = vld [vmem:[%s6 + $0xc] sm:$0xf]
        %v1681 = vld [vmem:[%s6 + $0x10] sm:$0xf]
        %v1682 = vld [vmem:[%s6 + $0x14] sm:$0xf]
        %v1683 = vld [vmem:[%s6 + $0x18] sm:$0xf]
        %v1684 = vld [vmem:[%s6 + $0x1c] sm:$0xf]
        %v1685 = vld [vmem:[%s6 + $0x20] sm:$0xf]
        %v1686 = vld [vmem:[%s6 + $0x24] sm:$0xf]
        %v1687 = vld [vmem:[%s6 + $0x28] sm:$0xf]
        %v1688 = vld [vmem:[%s6 + $0x2c] sm:$0xf]
        %v1689 = vld [vmem:[%s7] sm:$0xff]
        %v1690 = vld [vmem:[%s7 + $0x8] sm:$0xff]
        %v1691 = vld [vmem:[%s7 + $0x10] sm:$0xff]
        %v1692 = vld [vmem:[%s7 + $0x18] sm:$0xff]
        %v1693 = vld [vmem:[%s7 + $0x20] sm:$0xff]
        %v1694 = vld [vmem:[%s7 + $0x28] sm:$0xff]
        %v1695 = vld [vmem:[%s7 + $0x30] sm:$0xff]
        %v1696 = vld [vmem:[%s7 + $0x38] sm:$0xff]
        %v1697 = vld [vmem:[%s7 + $0x40] sm:$0xff]
        %v1698 = vld [vmem:[%s7 + $0x48] sm:$0xff]
        %v1699 = vld [vmem:[%s7 + $0x50] sm:$0xff]
        %v1700 = vld [vmem:[%s7 + $0x58] sm:$0xff]
        %1702 = vset.pattern.permute.xlu0 0
        %1703 = vperm.xlu0 %1702, %v1689
        %v1704 = vpop.permute.xlu0 %1703
        %1707 = vset.pattern.permute.xlu0 0
        %1708 = vperm.xlu0 %1707, %v1690
        %v1709 = vpop.permute.xlu0 %1708
        %1712 = vset.pattern.permute.xlu0 0
        %1713 = vperm.xlu0 %1712, %v1691
        %v1714 = vpop.permute.xlu0 %1713
        %1717 = vset.pattern.permute.xlu0 0
        %1718 = vperm.xlu0 %1717, %v1692
        %v1719 = vpop.permute.xlu0 %1718
        %1722 = vset.pattern.permute.xlu0 0
        %1723 = vperm.xlu0 %1722, %v1693
        %v1724 = vpop.permute.xlu0 %1723
        %1727 = vset.pattern.permute.xlu0 0
        %1728 = vperm.xlu0 %1727, %v1694
        %v1729 = vpop.permute.xlu0 %1728
        %1732 = vset.pattern.permute.xlu0 0
        %1733 = vperm.xlu0 %1732, %v1695
        %v1734 = vpop.permute.xlu0 %1733
        %1737 = vset.pattern.permute.xlu0 0
        %1738 = vperm.xlu0 %1737, %v1696
        %v1739 = vpop.permute.xlu0 %1738
        %1742 = vset.pattern.permute.xlu0 0
        %1743 = vperm.xlu0 %1742, %v1697
        %v1744 = vpop.permute.xlu0 %1743
        %1747 = vset.pattern.permute.xlu0 0
        %1748 = vperm.xlu0 %1747, %v1698
        %v1749 = vpop.permute.xlu0 %1748
        %1752 = vset.pattern.permute.xlu0 0
        %1753 = vperm.xlu0 %1752, %v1699
        %v1754 = vpop.permute.xlu0 %1753
        %1757 = vset.pattern.permute.xlu0 0
        %1758 = vperm.xlu0 %1757, %v1700
        %v1759 = vpop.permute.xlu0 %1758
        %v1773 = vunpack.c.l.b16 %v1677
        %v1774 = vunpack.c.l.b16 %v1678
        %v1775 = vunpack.c.l.b16 %v1679
        %v1776 = vunpack.c.l.b16 %v1680
        %v1777 = vunpack.c.l.b16 %v1681
        %v1778 = vunpack.c.l.b16 %v1682
        %v1779 = vunpack.c.l.b16 %v1683
        %v1780 = vunpack.c.l.b16 %v1684
        %v1781 = vunpack.c.l.b16 %v1685
        %v1782 = vunpack.c.l.b16 %v1686
        %v1783 = vunpack.c.l.b16 %v1687
        %v1784 = vunpack.c.l.b16 %v1688
        %v1785 = vpack.c.b16 %v1774, %v1773
        %v1786 = vpack.c.b16 %v1776, %v1775
        %v1787 = vpack.c.b16 %v1778, %v1777
        %v1788 = vpack.c.b16 %v1780, %v1779
        %v1789 = vpack.c.b16 %v1782, %v1781
        %v1790 = vpack.c.b16 %v1784, %v1783
        %1797 = vrot.lane.b32.xlu0 %v1671, 51
        %v1798 = vpop.permute.xlu0 %1797
        %1799 = vrot.lane.b32.xlu0 %v1672, 51
        %v1800 = vpop.permute.xlu0 %1799
        %1801 = vrot.lane.b32.xlu0 %v1673, 51
        %v1802 = vpop.permute.xlu0 %1801
        %1803 = vrot.lane.b32.xlu0 %v1674, 51
        %v1804 = vpop.permute.xlu0 %1803
        %1805 = vrot.lane.b32.xlu0 %v1675, 51
        %v1806 = vpop.permute.xlu0 %1805
        %1807 = vrot.lane.b32.xlu0 %v1676, 51
        %v1808 = vpop.permute.xlu0 %1807
        %vm1809 = vcmask 416768
        %v1810 = vsel %vm1809, %v1798, %v1800
        %v1811 = vsel %vm1809, %v1800, %v1802
        %v1812 = vsel %vm1809, %v1804, %v1806
        %v1813 = vsel %vm1809, %v1806, %v1808
        %vm1816 = vcmask 195584
        %v1818 = vsel %vm1816, %v1785, 0
        %v1821 = vsel %vm1816, %v1786, 0
        %v1824 = vsel %vm1816, %v1787, 0
        %v1827 = vsel %vm1816, %v1788, 0
        %v1830 = vsel %vm1816, %v1789, 0
        %v1833 = vsel %vm1816, %v1790, 0
        %vm1835 = vcmask 1043456
        %v1837 = vsel %vm1835, %v1812, 0
        %v1840 = vsel %vm1835, %v1813, 0
        %1842 = vmatprep.subr.bf16.mxu0 %v1811
        %1843 = vmatpush1.bf16.msra.mxu0 %v1810
        %1844 = vmatprep.subr.bf16.mxu0 %v1840
        %1845 = vmatpush1.bf16.msra.mxu0 %v1837
        %1846 = vmatprep.subr.bf16.mxu0 0
        %1847 = vmatpush1.bf16.msra.mxu0 0
        %1848 = vmatprep.subr.bf16.mxu0 0
        %1849 = vmatpush1.bf16.msra.mxu0 0
        %1850 = vmatprep.subr.bf16.mxu0 0
        %1851 = vmatpush1.bf16.msra.mxu0 0
        %1852 = vmatprep.subr.bf16.mxu0 0
        %1853 = vmatpush1.bf16.msra.mxu0 0
        %1854 = vmatprep.subr.bf16.mxu0 0
        %1855 = vmatpush1.bf16.msra.mxu0 0
        %1856 = vmatprep.subr.bf16.mxu0 0
        %1857 = vmatpush1.bf16.msra.mxu0 0
        %1858 = vmatprep.subr.bf16.mxu0 0
        %1859 = vmatpush1.bf16.msra.mxu0 0
        %1860 = vmatprep.subr.bf16.mxu0 0
        %1861 = vmatpush1.bf16.msra.mxu0 0
        %1862 = vmatprep.subr.bf16.mxu0 0
        %1863 = vmatpush1.bf16.msra.mxu0 0
        %1864 = vmatprep.subr.bf16.mxu0 0
        %1865 = vmatpush1.bf16.msra.mxu0 0
        %1866 = vmatprep.subr.bf16.mxu0 0
        %1867 = vmatpush1.bf16.msra.mxu0 0
        %1868 = vmatprep.subr.bf16.mxu0 0
        %1869 = vmatpush1.bf16.msra.mxu0 0
        %1870 = vmatprep.subr.bf16.mxu0 0
        %1871 = vmatpush1.bf16.msra.mxu0 0
        %1872 = vmatprep.subr.bf16.mxu0 0
        %1873 = vmatpush1.bf16.msra.mxu0 0
        %1874 = vmatprep.mubr.bf16.mxu0 0
        %1875 = vmatmul.mubr.bf16.gmra.mrb[0].mxu0 %v1818
        %v1876 = vpop.f32.mrb[0].mxu0
        %v1877 = vadd.f32 %v1704, %v1876
        %v1878 = vpop.f32.mrb[0].mxu0
        %v1879 = vadd.f32 %v1704, %v1878
        %v1880 = vpop.f32.mrb[0].mxu0
        %v1881 = vadd.f32 %v1709, %v1880
        %v1882 = vpop.f32.mrb[0].mxu0
        %v1883 = vadd.f32 %v1709, %v1882
        %1884 = vmatprep.mubr.bf16.mxu0 0
        %1885 = vmatmul.mubr.bf16.gmra.mrb[0].mxu0 %v1821
        %v1886 = vpop.f32.mrb[0].mxu0
        %v1887 = vadd.f32 %v1714, %v1886
        %v1888 = vpop.f32.mrb[0].mxu0
        %v1889 = vadd.f32 %v1714, %v1888
        %v1890 = vpop.f32.mrb[0].mxu0
        %v1891 = vadd.f32 %v1719, %v1890
        %v1892 = vpop.f32.mrb[0].mxu0
        %v1893 = vadd.f32 %v1719, %v1892
        %1894 = vmatprep.mubr.bf16.mxu0 0
        %1895 = vmatmul.mubr.bf16.gmra.mrb[0].mxu0 %v1824
        %v1896 = vpop.f32.mrb[0].mxu0
        %v1897 = vadd.f32 %v1724, %v1896
        %v1898 = vpop.f32.mrb[0].mxu0
        %v1899 = vadd.f32 %v1724, %v1898
        %v1900 = vpop.f32.mrb[0].mxu0
        %v1901 = vadd.f32 %v1729, %v1900
        %v1902 = vpop.f32.mrb[0].mxu0
        %v1903 = vadd.f32 %v1729, %v1902
        %1904 = vmatprep.mubr.bf16.mxu0 0
        %1905 = vmatmul.mubr.bf16.gmra.mrb[0].mxu0 %v1827
        %v1906 = vpop.f32.mrb[0].mxu0
        %v1907 = vadd.f32 %v1734, %v1906
        %v1908 = vpop.f32.mrb[0].mxu0
        %v1909 = vadd.f32 %v1734, %v1908
        %v1910 = vpop.f32.mrb[0].mxu0
        %v1911 = vadd.f32 %v1739, %v1910
        %v1912 = vpop.f32.mrb[0].mxu0
        %v1913 = vadd.f32 %v1739, %v1912
        %1914 = vmatprep.mubr.bf16.mxu0 0
        %1915 = vmatmul.mubr.bf16.gmra.mrb[0].mxu0 %v1830
        %v1916 = vpop.f32.mrb[0].mxu0
        %v1917 = vadd.f32 %v1744, %v1916
        %v1918 = vpop.f32.mrb[0].mxu0
        %v1919 = vadd.f32 %v1744, %v1918
        %v1920 = vpop.f32.mrb[0].mxu0
        %v1921 = vadd.f32 %v1749, %v1920
        %v1922 = vpop.f32.mrb[0].mxu0
        %v1923 = vadd.f32 %v1749, %v1922
        %1924 = vmatprep.mubr.bf16.mxu0 0
        %1925 = vmatmul.mubr.bf16.gmra.mrb[0].mxu0 %v1833
        %v1926 = vpop.f32.mrb[0].mxu0
        %v1927 = vadd.f32 %v1754, %v1926
        %v1928 = vpop.f32.mrb[0].mxu0
        %v1929 = vadd.f32 %v1754, %v1928
        %v1930 = vpop.f32.mrb[0].mxu0
        %v1931 = vadd.f32 %v1759, %v1930
        %v1932 = vpop.f32.mrb[0].mxu0
        %v1933 = vadd.f32 %v1759, %v1932
        %1934 = vdwg.mxu0
        %v1935 = vmax.f32 %v1877, 0.0
        %v1936 = vmax.f32 %v1879, 0.0
        %v1937 = vmax.f32 %v1881, 0.0
        %v1938 = vmax.f32 %v1883, 0.0
        %v1939 = vmax.f32 %v1887, 0.0
        %v1940 = vmax.f32 %v1889, 0.0
        %v1941 = vmax.f32 %v1891, 0.0
        %v1942 = vmax.f32 %v1893, 0.0
        %v1943 = vmax.f32 %v1897, 0.0
        %v1944 = vmax.f32 %v1899, 0.0
        %v1945 = vmax.f32 %v1901, 0.0
        %v1946 = vmax.f32 %v1903, 0.0
        %v1947 = vmax.f32 %v1907, 0.0
        %v1948 = vmax.f32 %v1909, 0.0
        %v1949 = vmax.f32 %v1911, 0.0
        %v1950 = vmax.f32 %v1913, 0.0
        %v1951 = vmax.f32 %v1917, 0.0
        %v1952 = vmax.f32 %v1919, 0.0
        %v1953 = vmax.f32 %v1921, 0.0
        %v1954 = vmax.f32 %v1923, 0.0
        %v1955 = vmax.f32 %v1927, 0.0
        %v1956 = vmax.f32 %v1929, 0.0
        %v1957 = vmax.f32 %v1931, 0.0
        %v1958 = vmax.f32 %v1933, 0.0
        %v1959 = vmin.f32 %v1935, 6.0
        %v1960 = vmin.f32 %v1936, 6.0
        %v1961 = vmin.f32 %v1937, 6.0
        %v1962 = vmin.f32 %v1938, 6.0
        %v1963 = vmin.f32 %v1939, 6.0
        %v1964 = vmin.f32 %v1940, 6.0
        %v1965 = vmin.f32 %v1941, 6.0
        %v1966 = vmin.f32 %v1942, 6.0
        %v1967 = vmin.f32 %v1943, 6.0
        %v1968 = vmin.f32 %v1944, 6.0
        %v1969 = vmin.f32 %v1945, 6.0
        %v1970 = vmin.f32 %v1946, 6.0
        %v1971 = vmin.f32 %v1947, 6.0
        %v1972 = vmin.f32 %v1948, 6.0
        %v1973 = vmin.f32 %v1949, 6.0
        %v1974 = vmin.f32 %v1950, 6.0
        %v1975 = vmin.f32 %v1951, 6.0
        %v1976 = vmin.f32 %v1952, 6.0
        %v1977 = vmin.f32 %v1953, 6.0
        %v1978 = vmin.f32 %v1954, 6.0
        %v1979 = vmin.f32 %v1955, 6.0
        %v1980 = vmin.f32 %v1956, 6.0
        %v1981 = vmin.f32 %v1957, 6.0
        %v1982 = vmin.f32 %v1958, 6.0
        %v1983 = vadd.f32 %v1959, %v1967
        %v1984 = vadd.f32 %v1960, %v1968
        %v1985 = vadd.f32 %v1961, %v1969
        %v1986 = vadd.f32 %v1962, %v1970
        %v1987 = vadd.f32 %v1963, %v1971
        %v1988 = vadd.f32 %v1964, %v1972
        %v1989 = vadd.f32 %v1965, %v1973
        %v1990 = vadd.f32 %v1966, %v1974
        %v1991 = vadd.f32 %v1983, %v1975
        %v1992 = vadd.f32 %v1984, %v1976
        %v1993 = vadd.f32 %v1985, %v1977
        %v1994 = vadd.f32 %v1986, %v1978
        %v1995 = vadd.f32 %v1987, %v1979
        %v1996 = vadd.f32 %v1988, %v1980
        %v1997 = vadd.f32 %v1989, %v1981
        %v1998 = vadd.f32 %v1990, %v1982
        %v1999 = vld [vmem:[%s8] sm:$0xf]
        %v2000 = vld [vmem:[%s8 + $0x4] sm:$0xf]
        %v2001 = vld [vmem:[%s8 + $0x8] sm:$0xf]
        %v2002 = vld [vmem:[%s8 + $0xc] sm:$0xf]
        %v2003 = vpack.c.bf16 %v1993, %v1991
        %v2004 = vpack.c.bf16 %v1994, %v1992
        %v2005 = vpack.c.bf16 %v1997, %v1995
        %v2006 = vpack.c.bf16 %v1998, %v1996
        %v2007 = vld [vmem:[%s9] sm:$0xff]
        %v2008 = vld [vmem:[%s9 + $0x8] sm:$0xff]
        %v2009 = vld [vmem:[%s9 + $0x10] sm:$0xff]
        %v2010 = vld [vmem:[%s9 + $0x18] sm:$0xff]
        %2012 = vset.pattern.permute.xlu0 0
        %2013 = vperm.xlu0 %2012, %v2007
        %v2014 = vpop.permute.xlu0 %2013
        %2017 = vset.pattern.permute.xlu0 0
        %2018 = vperm.xlu0 %2017, %v2008
        %v2019 = vpop.permute.xlu0 %2018
        %2022 = vset.pattern.permute.xlu0 0
        %2023 = vperm.xlu0 %2022, %v2009
        %v2024 = vpop.permute.xlu0 %2023
        %2027 = vset.pattern.permute.xlu0 0
        %2028 = vperm.xlu0 %2027, %v2010
        %v2029 = vpop.permute.xlu0 %2028
        %v2035 = vunpack.c.l.b16 %v1999
        %v2036 = vunpack.c.l.b16 %v2000
        %v2037 = vunpack.c.l.b16 %v2001
        %v2038 = vunpack.c.l.b16 %v2002
        %v2039 = vpack.c.b16 %v2036, %v2035
        %v2040 = vpack.c.b16 %v2038, %v2037
        %v2042 = vsel %vm567, %v2039, 0
        %v2045 = vsel %vm567, %v2040, 0
        %2047 = vmatprep.subr.bf16.mxu0 %v2004
        %2048 = vmatpush1.bf16.msra.mxu0 %v2003
        %2049 = vmatprep.subr.bf16.mxu0 %v2006
        %2050 = vmatpush1.bf16.msra.mxu0 %v2005
        %2051 = vmatprep.subr.bf16.mxu0 0
        %2052 = vmatpush1.bf16.msra.mxu0 0
        %2053 = vmatprep.subr.bf16.mxu0 0
        %2054 = vmatpush1.bf16.msra.mxu0 0
        %2055 = vmatprep.subr.bf16.mxu0 0
        %2056 = vmatpush1.bf16.msra.mxu0 0
        %2057 = vmatprep.subr.bf16.mxu0 0
        %2058 = vmatpush1.bf16.msra.mxu0 0
        %2059 = vmatprep.subr.bf16.mxu0 0
        %2060 = vmatpush1.bf16.msra.mxu0 0
        %2061 = vmatprep.subr.bf16.mxu0 0
        %2062 = vmatpush1.bf16.msra.mxu0 0
        %2063 = vmatprep.subr.bf16.mxu0 0
        %2064 = vmatpush1.bf16.msra.mxu0 0
        %2065 = vmatprep.subr.bf16.mxu0 0
        %2066 = vmatpush1.bf16.msra.mxu0 0
        %2067 = vmatprep.subr.bf16.mxu0 0
        %2068 = vmatpush1.bf16.msra.mxu0 0
        %2069 = vmatprep.subr.bf16.mxu0 0
        %2070 = vmatpush1.bf16.msra.mxu0 0
        %2071 = vmatprep.subr.bf16.mxu0 0
        %2072 = vmatpush1.bf16.msra.mxu0 0
        %2073 = vmatprep.subr.bf16.mxu0 0
        %2074 = vmatpush1.bf16.msra.mxu0 0
        %2075 = vmatprep.subr.bf16.mxu0 0
        %2076 = vmatpush1.bf16.msra.mxu0 0
        %2077 = vmatprep.subr.bf16.mxu0 0
        %2078 = vmatpush1.bf16.msra.mxu0 0
        %2079 = vmatprep.mubr.bf16.mxu0 0
        %2080 = vmatmul.mubr.bf16.gmra.mrb[0].mxu0 %v2042
        %v2081 = vpop.f32.mrb[0].mxu0
        %v2082 = vadd.f32 %v2014, %v2081
        %v2083 = vpop.f32.mrb[0].mxu0
        %v2084 = vadd.f32 %v2014, %v2083
        %v2085 = vpop.f32.mrb[0].mxu0
        %v2086 = vadd.f32 %v2019, %v2085
        %v2087 = vpop.f32.mrb[0].mxu0
        %v2088 = vadd.f32 %v2019, %v2087
        %2089 = vmatprep.mubr.bf16.mxu0 0
        %2090 = vmatmul.mubr.bf16.gmra.mrb[0].mxu0 %v2045
        %v2091 = vpop.f32.mrb[0].mxu0
        %v2092 = vadd.f32 %v2024, %v2091
        %v2093 = vpop.f32.mrb[0].mxu0
        %v2094 = vadd.f32 %v2024, %v2093
        %v2095 = vpop.f32.mrb[0].mxu0
        %v2096 = vadd.f32 %v2029, %v2095
        %v2097 = vpop.f32.mrb[0].mxu0
        %v2098 = vadd.f32 %v2029, %v2097
        %2099 = vdwg.mxu0
        %v2100 = vmax.f32 %v2082, 0.0
        %v2101 = vmax.f32 %v2084, 0.0
        %v2102 = vmax.f32 %v2086, 0.0
        %v2103 = vmax.f32 %v2088, 0.0
        %v2104 = vmax.f32 %v2092, 0.0
        %v2105 = vmax.f32 %v2094, 0.0
        %v2106 = vmax.f32 %v2096, 0.0
        %v2107 = vmax.f32 %v2098, 0.0
        %v2108 = vmin.f32 %v2100, 6.0
        %v2109 = vmin.f32 %v2101, 6.0
        %v2110 = vmin.f32 %v2102, 6.0
        %v2111 = vmin.f32 %v2103, 6.0
        %v2112 = vmin.f32 %v2104, 6.0
        %v2113 = vmin.f32 %v2105, 6.0
        %v2114 = vmin.f32 %v2106, 6.0
        %v2115 = vmin.f32 %v2107, 6.0
        %v2116 = vmul.f32 %v2108, %v548
        %v2117 = vmul.f32 %v2109, %v549
        %v2118 = vmul.f32 %v2110, %v550
        %v2119 = vmul.f32 %v2111, %v551
        %v2120 = vmul.f32 %v2112, %v552
        %v2121 = vmul.f32 %v2113, %v553
        %v2122 = vmul.f32 %v2114, %v554
        %v2123 = vmul.f32 %v2115, %v555
        %v2124 = vpack.c.bf16 %v2118, %v2116
        %v2125 = vpack.c.bf16 %v2119, %v2117
        %v2126 = vpack.c.bf16 %v2122, %v2120
        %v2127 = vpack.c.bf16 %v2123, %v2121
        %v2128 = vld [vmem:[%s10] sm:$0xf]
        %v2129 = vld [vmem:[%s10 + $0x4] sm:$0xf]
        %v2130 = vld [vmem:[%s10 + $0x8] sm:$0xf]
        %v2131 = vld [vmem:[%s10 + $0xc] sm:$0xf]
        %v2132 = vld [vmem:[%s10 + $0x10] sm:$0xf]
        %v2133 = vld [vmem:[%s10 + $0x14] sm:$0xf]
        %v2134 = vld [vmem:[%s10 + $0x18] sm:$0xf]
        %v2135 = vld [vmem:[%s10 + $0x1c] sm:$0xf]
        %v2136 = vld [vmem:[%s10 + $0x20] sm:$0xf]
        %v2137 = vld [vmem:[%s10 + $0x24] sm:$0xf]
        %v2138 = vld [vmem:[%s10 + $0x28] sm:$0xf]
        %v2139 = vld [vmem:[%s10 + $0x2c] sm:$0xf]
        %v2140 = vld [vmem:[%s10 + $0x30] sm:$0xf]
        %v2141 = vld [vmem:[%s10 + $0x34] sm:$0xf]
        %v2142 = vld [vmem:[%s10 + $0x38] sm:$0xf]
        %v2143 = vld [vmem:[%s10 + $0x3c] sm:$0xf]
        %v2144 = vld [vmem:[%s10 + $0x40] sm:$0xf]
        %v2145 = vld [vmem:[%s10 + $0x44] sm:$0xf]
        %v2146 = vld [vmem:[%s10 + $0x48] sm:$0xf]
        %v2147 = vld [vmem:[%s10 + $0x4c] sm:$0xf]
        %v2148 = vld [vmem:[%s10 + $0x50] sm:$0xf]
        %v2149 = vld [vmem:[%s10 + $0x54] sm:$0xf]
        %v2150 = vld [vmem:[%s10 + $0x58] sm:$0xf]
        %v2151 = vld [vmem:[%s10 + $0x5c] sm:$0xf]
        %v2152 = vld [vmem:[%s10 + $0x60] sm:$0xf]
        %v2153 = vld [vmem:[%s10 + $0x64] sm:$0xf]
        %v2154 = vld [vmem:[%s10 + $0x68] sm:$0xf]
        %v2155 = vld [vmem:[%s10 + $0x6c] sm:$0xf]
        %v2156 = vld [vmem:[%s10 + $0x70] sm:$0xf]
        %v2157 = vld [vmem:[%s10 + $0x74] sm:$0xf]
        %v2158 = vld [vmem:[%s10 + $0x78] sm:$0xf]
        %v2159 = vld [vmem:[%s10 + $0x7c] sm:$0xf]
        %v2192 = vunpack.c.l.b16 %v2128
        %v2193 = vunpack.c.l.b16 %v2129
        %v2194 = vunpack.c.l.b16 %v2130
        %v2195 = vunpack.c.l.b16 %v2131
        %v2196 = vunpack.c.l.b16 %v2132
        %v2197 = vunpack.c.l.b16 %v2133
        %v2198 = vunpack.c.l.b16 %v2134
        %v2199 = vunpack.c.l.b16 %v2135
        %v2200 = vunpack.c.l.b16 %v2136
        %v2201 = vunpack.c.l.b16 %v2137
        %v2202 = vunpack.c.l.b16 %v2138
        %v2203 = vunpack.c.l.b16 %v2139
        %v2204 = vunpack.c.l.b16 %v2140
        %v2205 = vunpack.c.l.b16 %v2141
        %v2206 = vunpack.c.l.b16 %v2142
        %v2207 = vunpack.c.l.b16 %v2143
        %v2208 = vunpack.c.l.b16 %v2144
        %v2209 = vunpack.c.l.b16 %v2145
        %v2210 = vunpack.c.l.b16 %v2146
        %v2211 = vunpack.c.l.b16 %v2147
        %v2212 = vunpack.c.l.b16 %v2148
        %v2213 = vunpack.c.l.b16 %v2149
        %v2214 = vunpack.c.l.b16 %v2150
        %v2215 = vunpack.c.l.b16 %v2151
        %v2216 = vunpack.c.l.b16 %v2152
        %v2217 = vunpack.c.l.b16 %v2153
        %v2218 = vunpack.c.l.b16 %v2154
        %v2219 = vunpack.c.l.b16 %v2155
        %v2220 = vunpack.c.l.b16 %v2156
        %v2221 = vunpack.c.l.b16 %v2157
        %v2222 = vunpack.c.l.b16 %v2158
        %v2223 = vunpack.c.l.b16 %v2159
        %v2224 = vpack.c.b16 %v2193, %v2192
        %v2225 = vpack.c.b16 %v2195, %v2194
        %v2226 = vpack.c.b16 %v2197, %v2196
        %v2227 = vpack.c.b16 %v2199, %v2198
        %v2228 = vpack.c.b16 %v2201, %v2200
        %v2229 = vpack.c.b16 %v2203, %v2202
        %v2230 = vpack.c.b16 %v2205, %v2204
        %v2231 = vpack.c.b16 %v2207, %v2206
        %v2232 = vpack.c.b16 %v2209, %v2208
        %v2233 = vpack.c.b16 %v2211, %v2210
        %v2234 = vpack.c.b16 %v2213, %v2212
        %v2235 = vpack.c.b16 %v2215, %v2214
        %v2236 = vpack.c.b16 %v2217, %v2216
        %v2237 = vpack.c.b16 %v2219, %v2218
        %v2238 = vpack.c.b16 %v2221, %v2220
        %v2239 = vpack.c.b16 %v2223, %v2222
        %2256 = vmatprep.subr.bf16.mxu0 0
        %2257 = vmatpush1.bf16.msra.mxu0 %v2224
        %2258 = vmatprep.subr.bf16.mxu0 0
        %2259 = vmatpush1.bf16.msra.mxu0 %v2225
        %2260 = vmatprep.subr.bf16.mxu0 0
        %2261 = vmatpush1.bf16.msra.mxu0 %v2226
        %2262 = vmatprep.subr.bf16.mxu0 0
        %2263 = vmatpush1.bf16.msra.mxu0 %v2227
        %2264 = vmatprep.subr.bf16.mxu0 0
        %2265 = vmatpush1.bf16.msra.mxu0 %v2228
        %2266 = vmatprep.subr.bf16.mxu0 0
        %2267 = vmatpush1.bf16.msra.mxu0 %v2229
        %2268 = vmatprep.subr.bf16.mxu0 0
        %2269 = vmatpush1.bf16.msra.mxu0 %v2230
        %2270 = vmatprep.subr.bf16.mxu0 0
        %2271 = vmatpush1.bf16.msra.mxu0 %v2231
        %2272 = vmatprep.subr.bf16.mxu0 0
        %2273 = vmatpush1.bf16.msra.mxu0 %v2232
        %2274 = vmatprep.subr.bf16.mxu0 0
        %2275 = vmatpush1.bf16.msra.mxu0 %v2233
        %2276 = vmatprep.subr.bf16.mxu0 0
        %2277 = vmatpush1.bf16.msra.mxu0 %v2234
        %2278 = vmatprep.subr.bf16.mxu0 0
        %2279 = vmatpush1.bf16.msra.mxu0 %v2235
        %2280 = vmatprep.subr.bf16.mxu0 0
        %2281 = vmatpush1.bf16.msra.mxu0 %v2236
        %2282 = vmatprep.subr.bf16.mxu0 0
        %2283 = vmatpush1.bf16.msra.mxu0 %v2237
        %2284 = vmatprep.subr.bf16.mxu0 0
        %2285 = vmatpush1.bf16.msra.mxu0 %v2238
        %2286 = vmatprep.subr.bf16.mxu0 0
        %2287 = vmatpush1.bf16.msra.mxu0 %v2239
        %2288 = vmatprep.mubr.bf16.mxu0 %v2125
        %2289 = vmatmul.mubr.bf16.gmra.mrb[0].mxu0 %v2124
        %v2290 = vpop.f32.mrb[0].mxu0
        %v2291 = vadd.f32 0.0, %v2290
        %v2292 = vpop.f32.mrb[0].mxu0
        %v2293 = vpop.f32.mrb[0].mxu0
        %v2294 = vadd.f32 0.0, %v2293
        %v2295 = vpop.f32.mrb[0].mxu0
        %2296 = vmatprep.mubr.bf16.mxu0 %v2127
        %2297 = vmatmul.mubr.bf16.gmra.mrb[0].mxu0 %v2126
        %v2298 = vpop.f32.mrb[0].mxu0
        %v2299 = vadd.f32 0.0, %v2298
        %v2300 = vpop.f32.mrb[0].mxu0
        %v2301 = vpop.f32.mrb[0].mxu0
        %v2302 = vadd.f32 0.0, %v2301
        %v2303 = vpop.f32.mrb[0].mxu0
        %2304 = vdwg.mxu0
        %v2305 = vld [vmem:[%s11] sm:$0xf]
        %v2306 = vld [vmem:[%s11 + $0x4] sm:$0xf]
        %v2307 = vld [vmem:[%s11 + $0x8] sm:$0xf]
        %v2308 = vld [vmem:[%s11 + $0xc] sm:$0xf]
        %v2309 = vld [vmem:[%s11 + $0x10] sm:$0xf]
        %v2310 = vld [vmem:[%s11 + $0x14] sm:$0xf]
        %v2311 = vld [vmem:[%s11 + $0x18] sm:$0xf]
        %v2312 = vld [vmem:[%s11 + $0x1c] sm:$0xf]
        %v2313 = vpack.c.bf16 %v2294, %v2291
        %v2314 = vpack.c.bf16 %v2302, %v2299
        %v2323 = vunpack.c.l.b16 %v2305
        %v2324 = vunpack.c.l.b16 %v2306
        %v2325 = vunpack.c.l.b16 %v2307
        %v2326 = vunpack.c.l.b16 %v2308
        %v2327 = vunpack.c.l.b16 %v2309
        %v2328 = vunpack.c.l.b16 %v2310
        %v2329 = vunpack.c.l.b16 %v2311
        %v2330 = vunpack.c.l.b16 %v2312
        %v2331 = vpack.c.b16 %v2324, %v2323
        %v2332 = vpack.c.b16 %v2326, %v2325
        %v2333 = vpack.c.b16 %v2328, %v2327
        %v2334 = vpack.c.b16 %v2330, %v2329
        %v2336 = vsel %vm567, %v2331, 0
        %v2339 = vsel %vm567, %v2332, 0
        %v2342 = vsel %vm567, %v2333, 0
        %v2345 = vsel %vm567, %v2334, 0
        %2347 = vmatprep.subr.bf16.mxu0 0
        %2348 = vmatpush1.bf16.msra.mxu0 %v2313
        %2349 = vmatprep.subr.bf16.mxu0 0
        %2350 = vmatpush1.bf16.msra.mxu0 %v2314
        %2351 = vmatprep.subr.bf16.mxu0 0
        %2352 = vmatpush1.bf16.msra.mxu0 0
        %2353 = vmatprep.subr.bf16.mxu0 0
        %2354 = vmatpush1.bf16.msra.mxu0 0
        %2355 = vmatprep.subr.bf16.mxu0 0
        %2356 = vmatpush1.bf16.msra.mxu0 0
        %2357 = vmatprep.subr.bf16.mxu0 0
        %2358 = vmatpush1.bf16.msra.mxu0 0
        %2359 = vmatprep.subr.bf16.mxu0 0
        %2360 = vmatpush1.bf16.msra.mxu0 0
        %2361 = vmatprep.subr.bf16.mxu0 0
        %2362 = vmatpush1.bf16.msra.mxu0 0
        %2363 = vmatprep.subr.bf16.mxu0 0
        %2364 = vmatpush1.bf16.msra.mxu0 0
        %2365 = vmatprep.subr.bf16.mxu0 0
        %2366 = vmatpush1.bf16.msra.mxu0 0
        %2367 = vmatprep.subr.bf16.mxu0 0
        %2368 = vmatpush1.bf16.msra.mxu0 0
        %2369 = vmatprep.subr.bf16.mxu0 0
        %2370 = vmatpush1.bf16.msra.mxu0 0
        %2371 = vmatprep.subr.bf16.mxu0 0
        %2372 = vmatpush1.bf16.msra.mxu0 0
        %2373 = vmatprep.subr.bf16.mxu0 0
        %2374 = vmatpush1.bf16.msra.mxu0 0
        %2375 = vmatprep.subr.bf16.mxu0 0
        %2376 = vmatpush1.bf16.msra.mxu0 0
        %2377 = vmatprep.subr.bf16.mxu0 0
        %2378 = vmatpush1.bf16.msra.mxu0 0
        %2379 = vmatprep.mubr.bf16.mxu0 0
        %2380 = vmatmul.mubr.bf16.gmra.mrb[0].mxu0 %v2336
        %v2381 = vpop.f32.mrb[0].mxu0
        %v2382 = vadd.f32 0.0, %v2381
        %v2383 = vpop.f32.mrb[0].mxu0
        %v2384 = vpop.f32.mrb[0].mxu0
        %v2385 = vadd.f32 0.0, %v2384
        %v2386 = vpop.f32.mrb[0].mxu0
        %2387 = vmatprep.mubr.bf16.mxu0 0
        %2388 = vmatmul.mubr.bf16.gmra.mrb[0].mxu0 %v2339
        %v2389 = vpop.f32.mrb[0].mxu0
        %v2390 = vadd.f32 0.0, %v2389
        %v2391 = vpop.f32.mrb[0].mxu0
        %v2392 = vpop.f32.mrb[0].mxu0
        %v2393 = vadd.f32 0.0, %v2392
        %v2394 = vpop.f32.mrb[0].mxu0
        %2395 = vmatprep.mubr.bf16.mxu0 0
        %2396 = vmatmul.mubr.bf16.gmra.mrb[0].mxu0 %v2342
        %v2397 = vpop.f32.mrb[0].mxu0
        %v2398 = vadd.f32 0.0, %v2397
        %v2399 = vpop.f32.mrb[0].mxu0
        %v2400 = vpop.f32.mrb[0].mxu0
        %v2401 = vadd.f32 0.0, %v2400
        %v2402 = vpop.f32.mrb[0].mxu0
        %2403 = vmatprep.mubr.bf16.mxu0 0
        %2404 = vmatmul.mubr.bf16.gmra.mrb[0].mxu0 %v2345
        %v2405 = vpop.f32.mrb[0].mxu0
        %v2406 = vadd.f32 0.0, %v2405
        %v2407 = vpop.f32.mrb[0].mxu0
        %v2408 = vpop.f32.mrb[0].mxu0
        %v2409 = vadd.f32 0.0, %v2408
        %v2410 = vpop.f32.mrb[0].mxu0
        %2411 = vdwg.mxu0
        %v2412 = vld [vmem:[%s12] sm:$0xf]
        %v2413 = vld [vmem:[%s12 + $0x4] sm:$0xf]
        %v2414 = vld [vmem:[%s12 + $0x8] sm:$0xf]
        %v2415 = vld [vmem:[%s12 + $0xc] sm:$0xf]
        %v2416 = vpack.c.bf16 %v2385, %v2382
        %v2417 = vpack.c.bf16 %v2393, %v2390
        %v2422 = vunpack.c.l.b16 %v2412
        %v2423 = vunpack.c.l.b16 %v2413
        %v2424 = vunpack.c.l.b16 %v2414
        %v2425 = vunpack.c.l.b16 %v2415
        %v2426 = vpack.c.b16 %v2423, %v2422
        %v2427 = vpack.c.b16 %v2425, %v2424
        %v2430 = vmul.bf16 %v2416, %v2426
        %v2431 = vmul.bf16 %v2417, %v2427
        %v2432 = vpack.c.bf16 %v2401, %v2398
        %v2433 = vpack.c.bf16 %v2409, %v2406
        %v2434 = vmul.bf16 %v2432, %v2426
        %v2435 = vmul.bf16 %v2433, %v2427
        %2436 = vxpose.xlu0.c.b16.start [1/8] %v2430, 128
        %2437 = vxpose.xlu0.c.b16.cont [2/8] %v2431, 128
        %2438 = vxpose.xlu0.c.b16.cont [3/8] 0, 128
        %2439 = vxpose.xlu0.c.b16.cont [4/8] 0, 128
        %2440 = vxpose.xlu0.c.b16.cont [5/8] 0, 128
        %2441 = vxpose.xlu0.c.b16.cont [6/8] 0, 128
        %2442 = vxpose.xlu0.c.b16.cont [7/8] 0, 128
        %2443 = vxpose.xlu0.c.b16.end [8/8] 0, 128
        %v2444 = vpop.trf.xlu0
        %v2445 = vpop.trf.xlu0
        %v2446 = vpop.trf.xlu0
        %v2447 = vpop.trf.xlu0
        %v2448 = vpop.trf.xlu0
        %v2449 = vpop.trf.xlu0
        %v2450 = vpop.trf.xlu0
        %v2451 = vpop.trf.xlu0
        %v2453 = vsel %vm567, %v2444, 0
        %v2456 = vsel %vm567, %v2445, 0
        %v2459 = vsel %vm567, %v2446, 0
        %v2462 = vsel %vm567, %v2447, 0
        %2464 = vmatprep.subr.bf16.mxu0 %v557
        %2465 = vmatpush1.bf16.msra.mxu0 %v556
        %2466 = vmatprep.subr.bf16.mxu0 %v559
        %2467 = vmatpush1.bf16.msra.mxu0 %v558
        %2468 = vmatprep.subr.bf16.mxu0 0
        %2469 = vmatpush1.bf16.msra.mxu0 0
        %2470 = vmatprep.subr.bf16.mxu0 0
        %2471 = vmatpush1.bf16.msra.mxu0 0
        %2472 = vmatprep.subr.bf16.mxu0 0
        %2473 = vmatpush1.bf16.msra.mxu0 0
        %2474 = vmatprep.subr.bf16.mxu0 0
        %2475 = vmatpush1.bf16.msra.mxu0 0
        %2476 = vmatprep.subr.bf16.mxu0 0
        %2477 = vmatpush1.bf16.msra.mxu0 0
        %2478 = vmatprep.subr.bf16.mxu0 0
        %2479 = vmatpush1.bf16.msra.mxu0 0
        %2480 = vmatprep.subr.bf16.mxu0 0
        %2481 = vmatpush1.bf16.msra.mxu0 0
        %2482 = vmatprep.subr.bf16.mxu0 0
        %2483 = vmatpush1.bf16.msra.mxu0 0
        %2484 = vmatprep.subr.bf16.mxu0 0
        %2485 = vmatpush1.bf16.msra.mxu0 0
        %2486 = vmatprep.subr.bf16.mxu0 0
        %2487 = vmatpush1.bf16.msra.mxu0 0
        %2488 = vmatprep.subr.bf16.mxu0 0
        %2489 = vmatpush1.bf16.msra.mxu0 0
        %2490 = vmatprep.subr.bf16.mxu0 0
        %2491 = vmatpush1.bf16.msra.mxu0 0
        %2492 = vmatprep.subr.bf16.mxu0 0
        %2493 = vmatpush1.bf16.msra.mxu0 0
        %2494 = vmatprep.subr.bf16.mxu0 0
        %2495 = vmatpush1.bf16.msra.mxu0 0
        %2496 = vmatprep.mubr.bf16.mxu0 0
        %2497 = vmatmul.mubr.bf16.gmra.mrb[0].mxu0 %v2453
        %v2498 = vpop.f32.mrb[0].mxu0
        %v2499 = vadd.f32 0.0, %v2498
        %v2500 = vpop.f32.mrb[0].mxu0
        %v2501 = vadd.f32 0.0, %v2500
        %v2502 = vpop.f32.mrb[0].mxu0
        %v2503 = vadd.f32 0.0, %v2502
        %v2504 = vpop.f32.mrb[0].mxu0
        %v2505 = vadd.f32 0.0, %v2504
        %2506 = vmatprep.mubr.bf16.mxu0 0
        %2507 = vmatmul.mubr.bf16.gmra.mrb[0].mxu0 %v2456
        %v2508 = vpop.f32.mrb[0].mxu0
        %v2509 = vadd.f32 0.0, %v2508
        %v2510 = vpop.f32.mrb[0].mxu0
        %v2511 = vadd.f32 0.0, %v2510
        %v2512 = vpop.f32.mrb[0].mxu0
        %v2513 = vadd.f32 0.0, %v2512
        %v2514 = vpop.f32.mrb[0].mxu0
        %v2515 = vadd.f32 0.0, %v2514
        %2516 = vmatprep.mubr.bf16.mxu0 0
        %2517 = vmatmul.mubr.bf16.gmra.mrb[0].mxu0 %v2459
        %v2518 = vpop.f32.mrb[0].mxu0
        %v2519 = vadd.f32 0.0, %v2518
        %v2520 = vpop.f32.mrb[0].mxu0
        %v2521 = vadd.f32 0.0, %v2520
        %v2522 = vpop.f32.mrb[0].mxu0
        %v2523 = vadd.f32 0.0, %v2522
        %v2524 = vpop.f32.mrb[0].mxu0
        %v2525 = vadd.f32 0.0, %v2524
        %2526 = vmatprep.mubr.bf16.mxu0 0
        %2527 = vmatmul.mubr.bf16.gmra.mrb[0].mxu0 %v2462
        %v2528 = vpop.f32.mrb[0].mxu0
        %v2529 = vadd.f32 0.0, %v2528
        %v2530 = vpop.f32.mrb[0].mxu0
        %v2531 = vadd.f32 0.0, %v2530
        %v2532 = vpop.f32.mrb[0].mxu0
        %v2533 = vadd.f32 0.0, %v2532
        %v2534 = vpop.f32.mrb[0].mxu0
        %v2535 = vadd.f32 0.0, %v2534
        %2536 = vdwg.mxu0
        %v2537 = vmax.f32 %v2499, %v2503
        %v2538 = vrot.slane %v2537, 4
        %v2539 = vmax.f32 %v2537, %v2538
        %v2540 = vrot.slane %v2539, 2
        %v2541 = vmax.f32 %v2539, %v2540
        %v2542 = vrot.slane %v2541, 1
        %v2543 = vmax.f32 %v2541, %v2542
        %v2544 = vmax.f32 %v2501, %v2505
        %v2545 = vrot.slane %v2544, 4
        %v2546 = vmax.f32 %v2544, %v2545
        %v2547 = vrot.slane %v2546, 2
        %v2548 = vmax.f32 %v2546, %v2547
        %v2549 = vrot.slane %v2548, 1
        %v2550 = vmax.f32 %v2548, %v2549
        %v2551 = vsub.f32 %v2499, %v2543
        %v2552 = vsub.f32 %v2501, %v2550
        %v2553 = vsub.f32 %v2503, %v2543
        %v2554 = vsub.f32 %v2505, %v2550
        %v2555 = vmul.f32 %v2551, 1.442695
        %v2556 = vpow.pop %v2555
        %v2557 = vmul.f32 %v2552, 1.442695
        %v2558 = vpow.pop %v2557
        %v2559 = vmul.f32 %v2553, 1.442695
        %v2560 = vpow.pop %v2559
        %v2561 = vmul.f32 %v2554, 1.442695
        %v2562 = vpow.pop %v2561
        %v2563 = vadd.f32 %v2556, %v2560
        %v2564 = vrot.slane %v2563, 4
        %v2565 = vadd.f32 %v2563, %v2564
        %v2566 = vrot.slane %v2565, 2
        %v2567 = vadd.f32 %v2565, %v2566
        %v2568 = vrot.slane %v2567, 1
        %v2569 = vadd.f32 %v2567, %v2568
        %v2570 = vadd.f32 %v2558, %v2562
        %v2571 = vrot.slane %v2570, 4
        %v2572 = vadd.f32 %v2570, %v2571
        %v2573 = vrot.slane %v2572, 2
        %v2574 = vadd.f32 %v2572, %v2573
        %v2575 = vrot.slane %v2574, 1
        %v2576 = vadd.f32 %v2574, %v2575
        %v2577 = vrcp.pop %v2569
        %v2578 = vrcp.pop %v2576
        %v2579 = vmul.f32 %v2556, %v2577
        %v2580 = vmul.f32 %v2558, %v2578
        %v2581 = vmul.f32 %v2560, %v2577
        %v2582 = vmul.f32 %v2562, %v2578
        %v2583 = vpack.c.bf16 %v2581, %v2579
        %v2584 = vpack.c.bf16 %v2582, %v2580
        %v2585 = vmax.f32 %v2509, %v2513
        %v2586 = vrot.slane %v2585, 4
        %v2587 = vmax.f32 %v2585, %v2586
        %v2588 = vrot.slane %v2587, 2
        %v2589 = vmax.f32 %v2587, %v2588
        %v2590 = vrot.slane %v2589, 1
        %v2591 = vmax.f32 %v2589, %v2590
        %v2592 = vmax.f32 %v2511, %v2515
        %v2593 = vrot.slane %v2592, 4
        %v2594 = vmax.f32 %v2592, %v2593
        %v2595 = vrot.slane %v2594, 2
        %v2596 = vmax.f32 %v2594, %v2595
        %v2597 = vrot.slane %v2596, 1
        %v2598 = vmax.f32 %v2596, %v2597
        %v2599 = vsub.f32 %v2509, %v2591
        %v2600 = vsub.f32 %v2511, %v2598
        %v2601 = vsub.f32 %v2513, %v2591
        %v2602 = vsub.f32 %v2515, %v2598
        %v2603 = vmul.f32 %v2599, 1.442695
        %v2604 = vpow.pop %v2603
        %v2605 = vmul.f32 %v2600, 1.442695
        %v2606 = vpow.pop %v2605
        %v2607 = vmul.f32 %v2601, 1.442695
        %v2608 = vpow.pop %v2607
        %v2609 = vmul.f32 %v2602, 1.442695
        %v2610 = vpow.pop %v2609
        %v2611 = vadd.f32 %v2604, %v2608
        %v2612 = vrot.slane %v2611, 4
        %v2613 = vadd.f32 %v2611, %v2612
        %v2614 = vrot.slane %v2613, 2
        %v2615 = vadd.f32 %v2613, %v2614
        %v2616 = vrot.slane %v2615, 1
        %v2617 = vadd.f32 %v2615, %v2616
        %v2618 = vadd.f32 %v2606, %v2610
        %v2619 = vrot.slane %v2618, 4
        %v2620 = vadd.f32 %v2618, %v2619
        %v2621 = vrot.slane %v2620, 2
        %v2622 = vadd.f32 %v2620, %v2621
        %v2623 = vrot.slane %v2622, 1
        %v2624 = vadd.f32 %v2622, %v2623
        %v2625 = vrcp.pop %v2617
        %v2626 = vrcp.pop %v2624
        %v2627 = vmul.f32 %v2604, %v2625
        %v2628 = vmul.f32 %v2606, %v2626
        %v2629 = vmul.f32 %v2608, %v2625
        %v2630 = vmul.f32 %v2610, %v2626
        %v2631 = vpack.c.bf16 %v2629, %v2627
        %v2632 = vpack.c.bf16 %v2630, %v2628
        %v2633 = vmax.f32 %v2519, %v2523
        %v2634 = vrot.slane %v2633, 4
        %v2635 = vmax.f32 %v2633, %v2634
        %v2636 = vrot.slane %v2635, 2
        %v2637 = vmax.f32 %v2635, %v2636
        %v2638 = vrot.slane %v2637, 1
        %v2639 = vmax.f32 %v2637, %v2638
        %v2640 = vmax.f32 %v2521, %v2525
        %v2641 = vrot.slane %v2640, 4
        %v2642 = vmax.f32 %v2640, %v2641
        %v2643 = vrot.slane %v2642, 2
        %v2644 = vmax.f32 %v2642, %v2643
        %v2645 = vrot.slane %v2644, 1
        %v2646 = vmax.f32 %v2644, %v2645
        %v2647 = vsub.f32 %v2519, %v2639
        %v2648 = vsub.f32 %v2521, %v2646
        %v2649 = vsub.f32 %v2523, %v2639
        %v2650 = vsub.f32 %v2525, %v2646
        %v2651 = vmul.f32 %v2647, 1.442695
        %v2652 = vpow.pop %v2651
        %v2653 = vmul.f32 %v2648, 1.442695
        %v2654 = vpow.pop %v2653
        %v2655 = vmul.f32 %v2649, 1.442695
        %v2656 = vpow.pop %v2655
        %v2657 = vmul.f32 %v2650, 1.442695
        %v2658 = vpow.pop %v2657
        %v2659 = vadd.f32 %v2652, %v2656
        %v2660 = vrot.slane %v2659, 4
        %v2661 = vadd.f32 %v2659, %v2660
        %v2662 = vrot.slane %v2661, 2
        %v2663 = vadd.f32 %v2661, %v2662
        %v2664 = vrot.slane %v2663, 1
        %v2665 = vadd.f32 %v2663, %v2664
        %v2666 = vadd.f32 %v2654, %v2658
        %v2667 = vrot.slane %v2666, 4
        %v2668 = vadd.f32 %v2666, %v2667
        %v2669 = vrot.slane %v2668, 2
        %v2670 = vadd.f32 %v2668, %v2669
        %v2671 = vrot.slane %v2670, 1
        %v2672 = vadd.f32 %v2670, %v2671
        %v2673 = vrcp.pop %v2665
        %v2674 = vrcp.pop %v2672
        %v2675 = vmul.f32 %v2652, %v2673
        %v2676 = vmul.f32 %v2654, %v2674
        %v2677 = vmul.f32 %v2656, %v2673
        %v2678 = vmul.f32 %v2658, %v2674
        %v2679 = vpack.c.bf16 %v2677, %v2675
        %v2680 = vpack.c.bf16 %v2678, %v2676
        %v2681 = vmax.f32 %v2529, %v2533
        %v2682 = vrot.slane %v2681, 4
        %v2683 = vmax.f32 %v2681, %v2682
        %v2684 = vrot.slane %v2683, 2
        %v2685 = vmax.f32 %v2683, %v2684
        %v2686 = vrot.slane %v2685, 1
        %v2687 = vmax.f32 %v2685, %v2686
        %v2688 = vmax.f32 %v2531, %v2535
        %v2689 = vrot.slane %v2688, 4
        %v2690 = vmax.f32 %v2688, %v2689
        %v2691 = vrot.slane %v2690, 2
        %v2692 = vmax.f32 %v2690, %v2691
        %v2693 = vrot.slane %v2692, 1
        %v2694 = vmax.f32 %v2692, %v2693
        %v2695 = vsub.f32 %v2529, %v2687
        %v2696 = vsub.f32 %v2531, %v2694
        %v2697 = vsub.f32 %v2533, %v2687
        %v2698 = vsub.f32 %v2535, %v2694
        %v2699 = vmul.f32 %v2695, 1.442695
        %v2700 = vpow.pop %v2699
        %v2701 = vmul.f32 %v2696, 1.442695
        %v2702 = vpow.pop %v2701
        %v2703 = vmul.f32 %v2697, 1.442695
        %v2704 = vpow.pop %v2703
        %v2705 = vmul.f32 %v2698, 1.442695
        %v2706 = vpow.pop %v2705
        %v2707 = vadd.f32 %v2700, %v2704
        %v2708 = vrot.slane %v2707, 4
        %v2709 = vadd.f32 %v2707, %v2708
        %v2710 = vrot.slane %v2709, 2
        %v2711 = vadd.f32 %v2709, %v2710
        %v2712 = vrot.slane %v2711, 1
        %v2713 = vadd.f32 %v2711, %v2712
        %v2714 = vadd.f32 %v2702, %v2706
        %v2715 = vrot.slane %v2714, 4
        %v2716 = vadd.f32 %v2714, %v2715
        %v2717 = vrot.slane %v2716, 2
        %v2718 = vadd.f32 %v2716, %v2717
        %v2719 = vrot.slane %v2718, 1
        %v2720 = vadd.f32 %v2718, %v2719
        %v2721 = vrcp.pop %v2713
        %v2722 = vrcp.pop %v2720
        %v2723 = vmul.f32 %v2700, %v2721
        %v2724 = vmul.f32 %v2702, %v2722
        %v2725 = vmul.f32 %v2704, %v2721
        %v2726 = vmul.f32 %v2706, %v2722
        %v2727 = vpack.c.bf16 %v2725, %v2723
        %v2728 = vpack.c.bf16 %v2726, %v2724
        %v2729 = vadd.f32 %v548, %v549
        %2730 = vadd.xlane.f32.xlu0 %v2729
        %v2731 = vpop.xlane.xlu0 %2730
        %v2732 = vadd.f32 %v550, %v551
        %2733 = vadd.xlane.f32.xlu0 %v2732
        %v2734 = vpop.xlane.xlu0 %2733
        %v2735 = vadd.f32 %v552, %v553
        %2736 = vadd.xlane.f32.xlu0 %v2735
        %v2737 = vpop.xlane.xlu0 %2736
        %v2738 = vadd.f32 %v554, %v555
        %2739 = vadd.xlane.f32.xlu0 %v2738
        %v2740 = vpop.xlane.xlu0 %2739
        %v2741 = vmul.f32 %v2731, 0.00390625
        %v2742 = vmul.f32 %v2734, 0.00390625
        %v2743 = vmul.f32 %v2737, 0.00390625
        %v2744 = vmul.f32 %v2740, 0.00390625
        %v2745 = vld [vmem:[%s13] sm:$0xff]
        %v2746 = vld [vmem:[%s14] sm:$0xff]
        %v2748 = vsel %vm567, %v2745, 0
        %2750 = vmatprep.subr.mxu0 0.0
        %2751 = vmatpush1.msra.mxu0 %v2741
        %2752 = vmatprep.subr.mxu0 0.0
        %2753 = vmatpush1.msra.mxu0 %v2742
        %2754 = vmatprep.subr.mxu0 0.0
        %2755 = vmatpush1.msra.mxu0 %v2743
        %2756 = vmatprep.subr.mxu0 0.0
        %2757 = vmatpush1.msra.mxu0 %v2744
        %2758 = vmatprep.subr.mxu0 0.0
        %2759 = vmatpush1.msra.mxu0 0.0
        %2760 = vmatprep.subr.mxu0 0.0
        %2761 = vmatpush1.msra.mxu0 0.0
        %2762 = vmatprep.subr.mxu0 0.0
        %2763 = vmatpush1.msra.mxu0 0.0
        %2764 = vmatprep.subr.mxu0 0.0
        %2765 = vmatpush1.msra.mxu0 0.0
        %2766 = vmatprep.subr.mxu0 0.0
        %2767 = vmatpush1.msra.mxu0 0.0
        %2768 = vmatprep.subr.mxu0 0.0
        %2769 = vmatpush1.msra.mxu0 0.0
        %2770 = vmatprep.subr.mxu0 0.0
        %2771 = vmatpush1.msra.mxu0 0.0
        %2772 = vmatprep.subr.mxu0 0.0
        %2773 = vmatpush1.msra.mxu0 0.0
        %2774 = vmatprep.subr.mxu0 0.0
        %2775 = vmatpush1.msra.mxu0 0.0
        %2776 = vmatprep.subr.mxu0 0.0
        %2777 = vmatpush1.msra.mxu0 0.0
        %2778 = vmatprep.subr.mxu0 0.0
        %2779 = vmatpush1.msra.mxu0 0.0
        %2780 = vmatprep.subr.mxu0 0.0
        %2781 = vmatpush1.msra.mxu0 0.0
        %2782 = vmatprep.subr.mxu0 0.0
        %2783 = vmatpush1.msra.mxu0 0.0
        %2784 = vmatprep.subr.mxu0 0.0
        %2785 = vmatpush1.msra.mxu0 0.0
        %2786 = vmatprep.subr.mxu0 0.0
        %2787 = vmatpush1.msra.mxu0 0.0
        %2788 = vmatprep.subr.mxu0 0.0
        %2789 = vmatpush1.msra.mxu0 0.0
        %2790 = vmatprep.subr.mxu0 0.0
        %2791 = vmatpush1.msra.mxu0 0.0
        %2792 = vmatprep.subr.mxu0 0.0
        %2793 = vmatpush1.msra.mxu0 0.0
        %2794 = vmatprep.subr.mxu0 0.0
        %2795 = vmatpush1.msra.mxu0 0.0
        %2796 = vmatprep.subr.mxu0 0.0
        %2797 = vmatpush1.msra.mxu0 0.0
        %2798 = vmatprep.subr.mxu0 0.0
        %2799 = vmatpush1.msra.mxu0 0.0
        %2800 = vmatprep.subr.mxu0 0.0
        %2801 = vmatpush1.msra.mxu0 0.0
        %2802 = vmatprep.subr.mxu0 0.0
        %2803 = vmatpush1.msra.mxu0 0.0
        %2804 = vmatprep.subr.mxu0 0.0
        %2805 = vmatpush1.msra.mxu0 0.0
        %2806 = vmatprep.subr.mxu0 0.0
        %2807 = vmatpush1.msra.mxu0 0.0
        %2808 = vmatprep.subr.mxu0 0.0
        %2809 = vmatpush1.msra.mxu0 0.0
        %2810 = vmatprep.subr.mxu0 0.0
        %2811 = vmatpush1.msra.mxu0 0.0
        %2812 = vmatprep.subr.mxu0 0.0
        %2813 = vmatpush1.msra.mxu0 0.0
        %2814 = vmatprep.mubr.f32.mxu0 0.0
        %2815 = vmatmul.mubr.f32.gmra.mrb[0].mxu0 %v2748
        %v2816 = vpop.f32.mrb[0].mxu0
        %v2817 = vadd.f32 %v2746, %v2816
        %v2818 = vpop.f32.mrb[0].mxu0
        %2819 = vdwg.mxu0
        %v2820 = vmax.f32 %v2817, 0.0
        %v2821 = vmin.f32 %v2820, 6.0
        %v2822 = vld [vmem:[%s15] sm:$0xff]
        %v2823 = vld [vmem:[%s15 + $0x8] sm:$0xff]
        %v2824 = vld [vmem:[%s15 + $0x10] sm:$0xff]
        %v2825 = vld [vmem:[%s15 + $0x18] sm:$0xff]
        %v2826 = vld [vmem:[%s16] sm:$0xff]
        %v2827 = vld [vmem:[%s16 + $0x8] sm:$0xff]
        %v2828 = vld [vmem:[%s16 + $0x10] sm:$0xff]
        %v2829 = vld [vmem:[%s16 + $0x18] sm:$0xff]
        %vm2830 = vcmask 64512
        %v2832 = vsel %vm2830, %v2822, 0
        %v2835 = vsel %vm2830, %v2823, 0
        %v2838 = vsel %vm2830, %v2824, 0
        %v2841 = vsel %vm2830, %v2825, 0
        %2843 = vmatprep.subr.mxu0 0.0
        %2844 = vmatpush1.msra.mxu0 %v2821
        %2845 = vmatprep.subr.mxu0 0.0
        %2846 = vmatpush1.msra.mxu0 0.0
        %2847 = vmatprep.subr.mxu0 0.0
        %2848 = vmatpush1.msra.mxu0 0.0
        %2849 = vmatprep.subr.mxu0 0.0
        %2850 = vmatpush1.msra.mxu0 0.0
        %2851 = vmatprep.subr.mxu0 0.0
        %2852 = vmatpush1.msra.mxu0 0.0
        %2853 = vmatprep.subr.mxu0 0.0
        %2854 = vmatpush1.msra.mxu0 0.0
        %2855 = vmatprep.subr.mxu0 0.0
        %2856 = vmatpush1.msra.mxu0 0.0
        %2857 = vmatprep.subr.mxu0 0.0
        %2858 = vmatpush1.msra.mxu0 0.0
        %2859 = vmatprep.subr.mxu0 0.0
        %2860 = vmatpush1.msra.mxu0 0.0
        %2861 = vmatprep.subr.mxu0 0.0
        %2862 = vmatpush1.msra.mxu0 0.0
        %2863 = vmatprep.subr.mxu0 0.0
        %2864 = vmatpush1.msra.mxu0 0.0
        %2865 = vmatprep.subr.mxu0 0.0
        %2866 = vmatpush1.msra.mxu0 0.0
        %2867 = vmatprep.subr.mxu0 0.0
        %2868 = vmatpush1.msra.mxu0 0.0
        %2869 = vmatprep.subr.mxu0 0.0
        %2870 = vmatpush1.msra.mxu0 0.0
        %2871 = vmatprep.subr.mxu0 0.0
        %2872 = vmatpush1.msra.mxu0 0.0
        %2873 = vmatprep.subr.mxu0 0.0
        %2874 = vmatpush1.msra.mxu0 0.0
        %2875 = vmatprep.subr.mxu0 0.0
        %2876 = vmatpush1.msra.mxu0 0.0
        %2877 = vmatprep.subr.mxu0 0.0
        %2878 = vmatpush1.msra.mxu0 0.0
        %2879 = vmatprep.subr.mxu0 0.0
        %2880 = vmatpush1.msra.mxu0 0.0
        %2881 = vmatprep.subr.mxu0 0.0
        %2882 = vmatpush1.msra.mxu0 0.0
        %2883 = vmatprep.subr.mxu0 0.0
        %2884 = vmatpush1.msra.mxu0 0.0
        %2885 = vmatprep.subr.mxu0 0.0
        %2886 = vmatpush1.msra.mxu0 0.0
        %2887 = vmatprep.subr.mxu0 0.0
        %2888 = vmatpush1.msra.mxu0 0.0
        %2889 = vmatprep.subr.mxu0 0.0
        %2890 = vmatpush1.msra.mxu0 0.0
        %2891 = vmatprep.subr.mxu0 0.0
        %2892 = vmatpush1.msra.mxu0 0.0
        %2893 = vmatprep.subr.mxu0 0.0
        %2894 = vmatpush1.msra.mxu0 0.0
        %2895 = vmatprep.subr.mxu0 0.0
        %2896 = vmatpush1.msra.mxu0 0.0
        %2897 = vmatprep.subr.mxu0 0.0
        %2898 = vmatpush1.msra.mxu0 0.0
        %2899 = vmatprep.subr.mxu0 0.0
        %2900 = vmatpush1.msra.mxu0 0.0
        %2901 = vmatprep.subr.mxu0 0.0
        %2902 = vmatpush1.msra.mxu0 0.0
        %2903 = vmatprep.subr.mxu0 0.0
        %2904 = vmatpush1.msra.mxu0 0.0
        %2905 = vmatprep.subr.mxu0 0.0
        %2906 = vmatpush1.msra.mxu0 0.0
        %2907 = vmatprep.mubr.f32.mxu0 0.0
        %2908 = vmatmul.mubr.f32.gmra.mrb[0].mxu0 %v2832
        %v2909 = vpop.f32.mrb[0].mxu0
        %v2910 = vadd.f32 %v2826, %v2909
        %v2911 = vpop.f32.mrb[0].mxu0
        %2912 = vmatprep.mubr.f32.mxu0 0.0
        %2913 = vmatmul.mubr.f32.gmra.mrb[0].mxu0 %v2835
        %v2914 = vpop.f32.mrb[0].mxu0
        %v2915 = vadd.f32 %v2827, %v2914
        %v2916 = vpop.f32.mrb[0].mxu0
        %2917 = vmatprep.mubr.f32.mxu0 0.0
        %2918 = vmatmul.mubr.f32.gmra.mrb[0].mxu0 %v2838
        %v2919 = vpop.f32.mrb[0].mxu0
        %v2920 = vadd.f32 %v2828, %v2919
        %v2921 = vpop.f32.mrb[0].mxu0
        %2922 = vmatprep.mubr.f32.mxu0 0.0
        %2923 = vmatmul.mubr.f32.gmra.mrb[0].mxu0 %v2841
        %v2924 = vpop.f32.mrb[0].mxu0
        %v2925 = vadd.f32 %v2829, %v2924
        %v2926 = vpop.f32.mrb[0].mxu0
        %2927 = vdwg.mxu0
        %v2928 = vsub.f32 0.0, %v2910
        %v2929 = vsub.f32 0.0, %v2915
        %v2930 = vsub.f32 0.0, %v2920
        %v2931 = vsub.f32 0.0, %v2925
        %v2932 = vmul.f32 %v2928, 1.442695
        %v2933 = vpow.pop %v2932
        %v2934 = vmul.f32 %v2929, 1.442695
        %v2935 = vpow.pop %v2934
        %v2936 = vmul.f32 %v2930, 1.442695
        %v2937 = vpow.pop %v2936
        %v2938 = vmul.f32 %v2931, 1.442695
        %v2939 = vpow.pop %v2938
        %v2940 = vadd.f32 %v2933, 1.0
        %v2941 = vadd.f32 %v2935, 1.0
        %v2942 = vadd.f32 %v2937, 1.0
        %v2943 = vadd.f32 %v2939, 1.0
        %v2944 = vrcp.pop %v2940
        %v2945 = vmul.f32 1.0, %v2944
        %v2946 = vrcp.pop %v2941
        %v2947 = vmul.f32 1.0, %v2946
        %v2948 = vrcp.pop %v2942
        %v2949 = vmul.f32 1.0, %v2948
        %v2950 = vrcp.pop %v2943
        %v2951 = vmul.f32 1.0, %v2950
        %2953 = vset.pattern.permute.xlu0 0
        %2954 = vperm.xlu0 %2953, %v2945
        %v2955 = vpop.permute.xlu0 %2954
        %2958 = vset.pattern.permute.xlu0 0
        %2959 = vperm.xlu0 %2958, %v2947
        %v2960 = vpop.permute.xlu0 %2959
        %2963 = vset.pattern.permute.xlu0 0
        %2964 = vperm.xlu0 %2963, %v2949
        %v2965 = vpop.permute.xlu0 %2964
        %2968 = vset.pattern.permute.xlu0 0
        %2969 = vperm.xlu0 %2968, %v2951
        %v2970 = vpop.permute.xlu0 %2969
        %v2972 = vmul.f32 %v2955, %v548
        %v2973 = vmul.f32 %v2955, %v549
        %v2974 = vmul.f32 %v2960, %v550
        %v2975 = vmul.f32 %v2960, %v551
        %v2976 = vmul.f32 %v2965, %v552
        %v2977 = vmul.f32 %v2965, %v553
        %v2978 = vmul.f32 %v2970, %v554
        %v2979 = vmul.f32 %v2970, %v555
        %vm2980 = vcmask 523264
        %v2982 = vsel %vm2980, %v2434, 0
        %v2985 = vsel %vm2980, %v2435, 0
        %2987 = vmatprep.subr.bf16.mxu0 %v2584
        %2988 = vmatpush1.bf16.msra.mxu0 %v2583
        %2989 = vmatprep.subr.bf16.mxu0 %v2632
        %2990 = vmatpush1.bf16.msra.mxu0 %v2631
        %2991 = vmatprep.subr.bf16.mxu0 %v2680
        %2992 = vmatpush1.bf16.msra.mxu0 %v2679
        %2993 = vmatprep.subr.bf16.mxu0 %v2728
        %2994 = vmatpush1.bf16.msra.mxu0 %v2727
        %2995 = vmatprep.subr.bf16.mxu0 0
        %2996 = vmatpush1.bf16.msra.mxu0 0
        %2997 = vmatprep.subr.bf16.mxu0 0
        %2998 = vmatpush1.bf16.msra.mxu0 0
        %2999 = vmatprep.subr.bf16.mxu0 0
        %3000 = vmatpush1.bf16.msra.mxu0 0
        %3001 = vmatprep.subr.bf16.mxu0 0
        %3002 = vmatpush1.bf16.msra.mxu0 0
        %3003 = vmatprep.subr.bf16.mxu0 0
        %3004 = vmatpush1.bf16.msra.mxu0 0
        %3005 = vmatprep.subr.bf16.mxu0 0
        %3006 = vmatpush1.bf16.msra.mxu0 0
        %3007 = vmatprep.subr.bf16.mxu0 0
        %3008 = vmatpush1.bf16.msra.mxu0 0
        %3009 = vmatprep.subr.bf16.mxu0 0
        %3010 = vmatpush1.bf16.msra.mxu0 0
        %3011 = vmatprep.subr.bf16.mxu0 0
        %3012 = vmatpush1.bf16.msra.mxu0 0
        %3013 = vmatprep.subr.bf16.mxu0 0
        %3014 = vmatpush1.bf16.msra.mxu0 0
        %3015 = vmatprep.subr.bf16.mxu0 0
        %3016 = vmatpush1.bf16.msra.mxu0 0
        %3017 = vmatprep.subr.bf16.mxu0 0
        %3018 = vmatpush1.bf16.msra.mxu0 0
        %3019 = vmatprep.mubr.bf16.mxu0 0
        %3020 = vmatmul.mubr.bf16.gmra.mrb[0].mxu0 %v2982
        %v3021 = vpop.f32.mrb[0].mxu0
        %v3022 = vadd.f32 %v2972, %v3021
        %v3023 = vpop.f32.mrb[0].mxu0
        %v3024 = vadd.f32 %v2973, %v3023
        %v3025 = vpop.f32.mrb[0].mxu0
        %v3026 = vadd.f32 %v2974, %v3025
        %v3027 = vpop.f32.mrb[0].mxu0
        %v3028 = vadd.f32 %v2975, %v3027
        %3029 = vmatprep.mubr.bf16.mxu0 0
        %3030 = vmatmul.mubr.bf16.gmra.mrb[0].mxu0 %v2985
        %v3031 = vpop.f32.mrb[0].mxu0
        %v3032 = vadd.f32 %v2976, %v3031
        %v3033 = vpop.f32.mrb[0].mxu0
        %v3034 = vadd.f32 %v2977, %v3033
        %v3035 = vpop.f32.mrb[0].mxu0
        %v3036 = vadd.f32 %v2978, %v3035
        %v3037 = vpop.f32.mrb[0].mxu0
        %v3038 = vadd.f32 %v2979, %v3037
        %3039 = vdwg.mxu0
        %3040 = vst [vmem:[%s541] sm:$0xff] %v3022
        %3041 = vst [vmem:[%s541 + $0x8] sm:$0xff] %v3024
        %3042 = vst [vmem:[%s541 + $0x10] sm:$0xff] %v3026
        %3043 = vst [vmem:[%s541 + $0x18] sm:$0xff] %v3028
        %3044 = vst [vmem:[%s541 + $0x20] sm:$0xff] %v3032
        %3045 = vst [vmem:[%s541 + $0x28] sm:$0xff] %v3034
        %3046 = vst [vmem:[%s541 + $0x30] sm:$0xff] %v3036
        %3047 = vst [vmem:[%s541 + $0x38] sm:$0xff] %v3038
        %s3048 = sand.u32 %s401, 1
        %s3049 = scalar_lea.sflag [#allocation4], %s3048
        %s3050 = sand.u32 %s401, 1
        %s3051 = smul.addr %s3050, 64
        %s3052 = scalar_lea.vmem [#allocation3], %s3051
        // Predicated region
        $region89: #{tpu_custom_call.1} parent=87 // pred_check
          %p3053 = pneg %p411
        $region90: #{tpu_custom_call.1} parent=87 // pred_check_branch
          %3055 = sbr.rel (%p3053) target = $region92
        $region91: #{tpu_custom_call.1} parent=87 // pred_region
          %s3057 = ssub.s32 1024, 1024
          %3058 = vsyncadd %s3049, %s3057
          %s3059 = smul.addr %s31, 8
          %s3060 = smul.addr %s3059, 128
          %s3061 = scalar_lea.hbm %s17, %s3060
          %s3062 = sshll.u32 %s3052, 4
          %s3063 = int_to_ptr.vmem [resolvable:$true] %s3062
          %3068 = dma.vmem_to_hbm [thread:$0]  %s3063, 1024, %s3061, %s3049, 256, 256, 16
        $region92: #{tpu_custom_call.1} parent=87 // pred_fallthru
          _
      $region88: #{tpu_custom_call.1} parent=5 // pred_fallthru
        _
      %p3069 = scmp.le.s32.totalorder 2, %s26
      // Predicated region
      $region93: #{tpu_custom_call.1} parent=5 // pred_check
        %p3070 = pneg %p3069
      $region94: #{tpu_custom_call.1} parent=5 // pred_check_branch
        %3072 = sbr.rel (%p3070) target = $region96
      $region95: #{tpu_custom_call.1} parent=5 // pred_region
        %s3073 = ssub.s32 %s26, 2
        // Predicated region
        $region97: #{tpu_custom_call.1} parent=95 // pred_check
          %p3074 = pneg %p417
        $region98: #{tpu_custom_call.1} parent=95 // pred_check_branch
          %3076 = sbr.rel (%p3074) target = $region100
        $region99: #{tpu_custom_call.1} parent=95 // pred_region
          %s3077 = sand.u32 %s402, 1
          %s3078 = scalar_lea.sflag [#allocation4], %s3077
          %s3079 = sand.u32 %s402, 1
          %s3080 = smul.addr %s3079, 64
          %s3081 = scalar_lea.vmem [#allocation3], %s3080
          %3082 = dma.done %s3078, 1024
        $region100: #{tpu_custom_call.1} parent=95 // pred_fallthru
          _
      $region96: #{tpu_custom_call.1} parent=5 // pred_fallthru
        _
    $region6: #{tpu_custom_call.1} parent=1 // loop_footer
      %s30 = sadd.s32 1, %s26
    $region7: #{tpu_custom_call.1} parent=1 // loop_footer_branch
      %25 = sbr.rel target = $region3
    $region8: #{tpu_custom_call.1} parent=1 // loop_exit
      _
    %3083 = vsyncpa [#allocation4], 1
    %s3084 = scalar_lea.sflag [#allocation4], 1
    %3085 = vsyncpa %s3084, 1

</llo_original>
